<compile_context>
chip_gen: v7x
topology: tpu7x:2x2x1
jax: 0.10.0
libtpu: 0.0.40
codegen_flags: <defaults>
</compile_context>

<pallas_src>
import functools
import math

import jax
import jax.numpy as jnp
from jax import lax
from jax.experimental import pallas as pl
from jax.experimental.pallas import tpu as pltpu

EVENT_TYPES = 3
LN_EPS = 1e-5          # PyTorch LayerNorm default
NEG_INF = -1e30        # additive mask for cross-batch attention entries


# ----------------------------------------------------------------------------
# Fused forward kernel
# ----------------------------------------------------------------------------
def _layernorm(y, g, b):
    # Single-pass LN: var = E[y^2] - mean^2 (one lane reduction instead of two).
    mean = jnp.mean(y, axis=-1, keepdims=True)
    msq = jnp.mean(y * y, axis=-1, keepdims=True)
    var = msq - mean * mean
    return (y - mean) * lax.rsqrt(var + LN_EPS) * g + b


def _make_fused_kernel(num_layers, nhead):
    def kernel(*refs):
        # refs: h(1,M,D), t_bias(1,M,D), mask(M,M), w_top(D,D),
        #       12 refs per layer, out(1,M,D)
        h_ref, tb_ref, mask_ref, wt_ref = refs[:4]
        layer_refs = refs[4:4 + 12 * num_layers]
        o_ref = refs[-1]

        # Fused input projection: cat([h, t_emb], -1) @ W_in + b_in
        #   == h @ W_top + (t_emb @ W_bot + b_in)
        # The second term is the precomputed per-row bias tb_ref.
        h = (jnp.dot(h_ref[0], wt_ref[...], preferred_element_type=jnp.float32)
             + tb_ref[0])                                              # [M, D]

        neg = mask_ref[...]                                            # [M, M]

        for li in range(num_layers):
            (a_ref, u_ref, b_ref, ab_ref, g1_ref, be1_ref,
             w1_ref, fb1_ref, w2_ref, fb2_ref, g2_ref, be2_ref) = (
                 layer_refs[12 * li: 12 * (li + 1)])

            # ---- self-attention (head weights pre-folded host-side) ----
            attn = jnp.zeros_like(h)
            for hh in range(nhead):
                # Q-side, pre-scaled and pre-multiplied by Wk^T: full-D matmul.
                qa = (jnp.dot(h, a_ref[hh], preferred_element_type=jnp.float32)
                      + u_ref[hh])                                     # [M, D]
                s = lax.dot_general(qa, h, (((1,), (1,)), ((), ())),
                                    preferred_element_type=jnp.float32)  # [M, M]
                s = s + neg                                            # batch mask
                s = s - jnp.max(s, axis=-1, keepdims=True)
                p = jnp.exp(s)
                p = p / jnp.sum(p, axis=-1, keepdims=True)
                # Value path with the out-projection pre-folded into B_h.
                vb = jnp.dot(h, b_ref[hh],
                             preferred_element_type=jnp.float32)       # [M, D]
                attn = attn + jnp.dot(p, vb,
                                      preferred_element_type=jnp.float32)
            attn = attn + ab_ref[...]          # folded bv@Wo + out_proj bias

            # ---- post-norm residual 1 ----
            h = _layernorm(h + attn, g1_ref[...], be1_ref[...])

            # ---- feed-forward (ReLU, PyTorch default) ----
            f = jnp.maximum(
                jnp.dot(h, w1_ref[...], preferred_element_type=jnp.float32)
                + fb1_ref[...], 0.0)
            f = (jnp.dot(f, w2_ref[...], preferred_element_type=jnp.float32)
                 + fb2_ref[...])

            # ---- post-norm residual 2 ----
            h = _layernorm(h + f, g2_ref[...], be2_ref[...])

        o_ref[0] = h     # lane-dense (D-wide) output; fc_out done in wrapper

    return kernel


def fused_transformer(h, t_emb, params, *, nhead):
    """h: [B, L, D] embedded tokens; t_emb: [B, D]. Returns [B, L, D]."""
    B, L, D = h.shape
    num_layers = len(params["layers"])
    Dh = D // nhead
    scale = 1.0 / math.sqrt(Dh)

    # Batch fold: <= 2 fat grid steps (one per TensorCore on v7x megacore),
    # each processing Bblk batch rows flattened into M = Bblk*L matmul rows.
    num_steps = 2 if (B >= 2 and B % 2 == 0) else 1
    Bblk = B // num_steps
    M = Bblk * L

    h_flat = h.reshape(num_steps, M, D)

    # t-dependent half of the input projection precomputed once per batch row
    # (removes the in-kernel M=1 matmul and the resident W_bot buffer).
    t_bias = t_emb @ params["input_w"][D:] + params["input_b"]          # [B, D]
    t_bias = jnp.broadcast_to(t_bias[:, None, :], (B, L, D)
                              ).reshape(num_steps, M, D)

    # Additive mask blocking cross-batch attention inside a flattened slab.
    row_batch = jnp.arange(M, dtype=jnp.int32) // L
    neg_mask = jnp.where(row_batch[:, None] == row_batch[None, :],
                         0.0, NEG_INF).astype(jnp.float32)

    w_top = params["input_w"][:D]

    def resident(shape):
        # Constant block index -> stays in VMEM across all grid steps.
        nd = len(shape)
        return pl.BlockSpec(shape, lambda s, _nd=nd: (0,) * _nd)

    # TODO(synk): at non-toy sizes, stream per-layer weights via a layer grid
    # axis (stacked [num_layers, ...] weights, "arbitrary" semantics) and cast
    # weights/activations to bf16 with f32 accumulation; at these shapes
    # everything stays VMEM-resident in f32 well under the scoped limit.

    args = [h_flat, t_bias, neg_mask, w_top]
    in_specs = [
        pl.BlockSpec((1, M, D), lambda s: (s, 0, 0)),   # h slab
        pl.BlockSpec((1, M, D), lambda s: (s, 0, 0)),   # t bias slab
        resident((M, M)),
        resident((D, D)),
    ]

    for lp in params["layers"]:
        F = lp["ffn_w1"].shape[1]
        wq = lp["in_proj_w"][:, :D].reshape(D, nhead, Dh)
        wk = lp["in_proj_w"][:, D:2 * D].reshape(D, nhead, Dh)
        wv = lp["in_proj_w"][:, 2 * D:].reshape(D, nhead, Dh)
        bq = lp["in_proj_b"][:D].reshape(nhead, Dh)
        bv = lp["in_proj_b"][2 * D:]
        wo = lp["out_proj_w"].reshape(nhead, Dh, D)

        # Host-side algebraic head folding (exact, modulo softmax-invariant
        # row-constant terms): everything the kernel touches is D-wide.
        a_stack = jnp.einsum("dhe,fhe->hdf", wq, wk) * scale            # [H,D,D]
        u_stack = (jnp.einsum("dhe,he->hd", wk, bq) * scale
                   ).reshape(nhead, 1, D)                               # [H,1,D]
        b_stack = jnp.einsum("dhe,hef->hdf", wv, wo)                    # [H,D,D]
        attn_bias = (bv @ lp["out_proj_w"] + lp["out_proj_b"]).reshape(1, D)

        args += [
            a_stack, u_stack, b_stack, attn_bias,
            lp["ln1_g"].reshape(1, D), lp["ln1_b"].reshape(1, D),
            lp["ffn_w1"], lp["ffn_b1"].reshape(1, F),
            lp["ffn_w2"], lp["ffn_b2"].reshape(1, D),
            lp["ln2_g"].reshape(1, D), lp["ln2_b"].reshape(1, D),
        ]
        in_specs += [
            resident((nhead, D, D)), resident((nhead, 1, D)),
            resident((nhead, D, D)), resident((1, D)),
            resident((1, D)), resident((1, D)),
            resident((D, F)), resident((1, F)),
            resident((F, D)), resident((1, D)),
            resident((1, D)), resident((1, D)),
        ]

    kernel = _make_fused_kernel(num_layers, nhead)

    h_out = pl.pallas_call(
        kernel,
        out_shape=jax.ShapeDtypeStruct((num_steps, M, D), jnp.float32),
        grid=(num_steps,),
        in_specs=in_specs,
        out_specs=pl.BlockSpec((1, M, D), lambda s: (s, 0, 0)),
        compiler_params=pltpu.CompilerParams(
            dimension_semantics=("parallel",)),   # megacore sharding on v7x
    )(*args)

    return h_out.reshape(B, L, D)


# ----------------------------------------------------------------------------
# Model glue (plain JAX: gathers / sin-cos / tiny output head only)
# ----------------------------------------------------------------------------
def timestep_embedding(t, dim):
    half = dim // 2
    factor = math.log(10000.0) / (half - 1)
    freqs = jnp.exp(jnp.arange(half, dtype=jnp.float32) * -factor)
    args = t.astype(jnp.float32)[:, None] * freqs[None, :]
    emb = jnp.concatenate([jnp.sin(args), jnp.cos(args)], axis=-1)
    if dim % 2 == 1:
        emb = jnp.pad(emb, ((0, 0), (0, 1)))
    return emb


def _embed_tokens(params, tok, pos_slice):
    et = jnp.clip(tok[:, :, 0].astype(jnp.int32), 0, EVENT_TYPES - 1)
    vals = tok[:, :, 1:2].astype(jnp.float32)                   # [B, L, 1]
    # TODO(synk): embedding-table gather stays in plain JAX (no dense hot path).
    ee = params["event_emb"][et]                                # [B, L, D]
    # K=1 value projection as a VPU broadcast FMA (no K=1 MXU matmul).
    ve = (vals * params["value_w"][0][None, None, :]
          + params["value_b"][None, None, :])
    return ee + ve + pos_slice


def forward(params, x, t, context=None, *, nhead):
    # x: [B, S, 2]  (event_type, value);  t: [B]
    B, S, _ = x.shape
    D = params["pos_emb"].shape[1]

    if context is not None:
        Lc = context.shape[1]
        pos = params["pos_emb"][:Lc + S][None]                  # [1, Lc+S, D]
        ctx_emb = _embed_tokens(params, context, pos[:, :Lc])
        x_emb = _embed_tokens(params, x, pos[:, Lc:])
        h = jnp.concatenate([ctx_emb, x_emb], axis=1)
    else:
        Lc = 0
        h = _embed_tokens(params, x, params["pos_emb"][:S][None])

    t_emb = timestep_embedding(t, D)                            # [B, D]
    h = fused_transformer(h, t_emb, params, nhead=nhead)        # [B, Lc+S, D]

    # Lane-width-2 output head stays in plain JAX so the kernel's output block
    # is lane-dense (D wide) instead of 2 wide.
    out = h @ params["fc_out_w"] + params["fc_out_b"]           # [B, Lc+S, 2]
    if context is not None:
        out = out[:, Lc:]
    return out


# ----------------------------------------------------------------------------
# Pure-JAX reference (standard multi-head formulation) for validation
# ----------------------------------------------------------------------------
def reference_forward(params, x, t, context=None, *, nhead):
    D = params["pos_emb"].shape[1]
    Dh = D // nhead
    S = x.shape[1]
    if context is not None:
        Lc = context.shape[1]
        pos = params["pos_emb"][:Lc + S][None]
        h = jnp.concatenate([_embed_tokens(params, context, pos[:, :Lc]),
                             _embed_tokens(params, x, pos[:, Lc:])], axis=1)
    else:
        Lc = 0
        h = _embed_tokens(params, x, params["pos_emb"][:S][None])
    B, L, _ = h.shape

    t_full = jnp.broadcast_to(timestep_embedding(t, D)[:, None, :], (B, L, D))
    h = (jnp.concatenate([h, t_full], axis=-1) @ params["input_w"]
         + params["input_b"])

    def ln(y, g, b):
        mu = jnp.mean(y, axis=-1, keepdims=True)
        var = jnp.mean((y - mu) ** 2, axis=-1, keepdims=True)
        return (y - mu) / jnp.sqrt(var + LN_EPS) * g + b

    for lp in params["layers"]:
        qkv = h @ lp["in_proj_w"] + lp["in_proj_b"]
        q, k, v = jnp.split(qkv, 3, axis=-1)
        heads = lambda z: z.reshape(B, L, nhead, Dh).transpose(0, 2, 1, 3)
        q, k, v = heads(q), heads(k), heads(v)
        s = jnp.einsum("bhqd,bhkd->bhqk", q, k) / math.sqrt(Dh)
        p = jax.nn.softmax(s, axis=-1)
        o = jnp.einsum("bhqk,bhkd->bhqd", p, v)
        o = o.transpose(0, 2, 1, 3).reshape(B, L, D)
        attn = o @ lp["out_proj_w"] + lp["out_proj_b"]
        h = ln(h + attn, lp["ln1_g"], lp["ln1_b"])
        f = (jax.nn.relu(h @ lp["ffn_w1"] + lp["ffn_b1"]) @ lp["ffn_w2"]
             + lp["ffn_b2"])
        h = ln(h + f, lp["ln2_g"], lp["ln2_b"])

    out = h @ params["fc_out_w"] + params["fc_out_b"]
    if context is not None:
        out = out[:, Lc:]
    return out


# ----------------------------------------------------------------------------
# Deterministic parameter init
# ----------------------------------------------------------------------------
def init_params(key, d_model, nhead, num_layers, dff, max_seq_len):
    def nrm(k, shape):
        return jax.random.normal(k, shape, jnp.float32) * 0.02

    keys = iter(jax.random.split(key, 8 + 8 * num_layers))
    params = {
        "event_emb": nrm(next(keys), (EVENT_TYPES, d_model)),
        "value_w": nrm(next(keys), (1, d_model)),
        "value_b": nrm(next(keys), (d_model,)),
        "pos_emb": nrm(next(keys), (max_seq_len, d_model)),
        "input_w": nrm(next(keys), (2 * d_model, d_model)),
        "input_b": nrm(next(keys), (d_model,)),
        "fc_out_w": nrm(next(keys), (d_model, 2)),
        "fc_out_b": nrm(next(keys), (2,)),
        "layers": [],
    }
    for _ in range(num_layers):
        params["layers"].append(
            {
                "in_proj_w": nrm(next(keys), (d_model, 3 * d_model)),
                "in_proj_b": nrm(next(keys), (3 * d_model,)),
                "out_proj_w": nrm(next(keys), (d_model, d_model)),
                "out_proj_b": nrm(next(keys), (d_model,)),
                "ln1_g": jnp.ones((d_model,), jnp.float32),
                "ln1_b": jnp.zeros((d_model,), jnp.float32),
                "ffn_w1": nrm(next(keys), (d_model, dff)),
                "ffn_b1": nrm(next(keys), (dff,)),
                "ffn_w2": nrm(next(keys), (dff, d_model)),
                "ffn_b2": nrm(next(keys), (d_model,)),
                "ln2_g": jnp.ones((d_model,), jnp.float32),
                "ln2_b": jnp.zeros((d_model,), jnp.float32),
            }
        )
    return params


# ----------------------------------------------------------------------------
if __name__ == "__main__":
    D_MODEL, NHEAD, NUM_LAYERS, DFF, MAX_SEQ = 32, 4, 2, 64, 32
    B, S, CTX = 4, 8, 4

    root = jax.random.PRNGKey(0)
    kp, kx, kt, kc = jax.random.split(root, 4)
    params = init_params(kp, D_MODEL, NHEAD, NUM_LAYERS, DFF, MAX_SEQ)

    # x[:, :, 0] -> event type in [0, EVENT_TYPES); x[:, :, 1] -> value
    ev = jax.random.randint(kx, (B, S, 1), 0, EVENT_TYPES).astype(jnp.float32)
    vals = jax.random.normal(jax.random.fold_in(kx, 1), (B, S, 1), jnp.float32)
    x = jnp.concatenate([ev, vals], axis=-1)

    t = jax.random.randint(kt, (B,), 0, 1000).astype(jnp.float32)

    ctx_ev = jax.random.randint(kc, (B, CTX, 1), 0, EVENT_TYPES).astype(jnp.float32)
    ctx_vals = jax.random.normal(jax.random.fold_in(kc, 1), (B, CTX, 1), jnp.float32)
    context = jnp.concatenate([ctx_ev, ctx_vals], axis=-1)

    fwd = jax.jit(functools.partial(forward, nhead=NHEAD))
    out_nc = fwd(params, x, t, None)
    out_ctx = fwd(params, x, t, context)
    jax.block_until_ready((out_nc, out_ctx))

    assert out_nc.shape == (B, S, 2)
    assert out_ctx.shape == (B, S, 2)

    # Validate the batch folding + algebraic head folding against a plain-JAX
    # reference of the PyTorch eval-mode forward.
    ref_nc = reference_forward(params, x, t, None, nhead=NHEAD)
    ref_ctx = reference_forward(params, x, t, context, nhead=NHEAD)
    assert jnp.allclose(out_nc, ref_nc, atol=2e-3, rtol=2e-3), \
        float(jnp.max(jnp.abs(out_nc - ref_nc)))
    assert jnp.allclose(out_ctx, ref_ctx, atol=2e-3, rtol=2e-3), \
        float(jnp.max(jnp.abs(out_ctx - ref_ctx)))

    print("KERNEL_OK")
</pallas_src>

<mosaic_0001>
module attributes {stable_mosaic.version = 11 : i64} {
  func.func @kernel(%arg0: i32, %arg1: memref<1x16x32xf32, #tpu.memory_space<vmem>>, %arg2: memref<1x16x32xf32, #tpu.memory_space<vmem>>, %arg3: memref<16x16xf32, #tpu.memory_space<vmem>>, %arg4: memref<32x32xf32, #tpu.memory_space<vmem>>, %arg5: memref<4x32x32xf32, #tpu.memory_space<vmem>>, %arg6: memref<4x1x32xf32, #tpu.memory_space<vmem>>, %arg7: memref<4x32x32xf32, #tpu.memory_space<vmem>>, %arg8: memref<1x32xf32, #tpu.memory_space<vmem>>, %arg9: memref<1x32xf32, #tpu.memory_space<vmem>>, %arg10: memref<1x32xf32, #tpu.memory_space<vmem>>, %arg11: memref<32x64xf32, #tpu.memory_space<vmem>>, %arg12: memref<1x64xf32, #tpu.memory_space<vmem>>, %arg13: memref<64x32xf32, #tpu.memory_space<vmem>>, %arg14: memref<1x32xf32, #tpu.memory_space<vmem>>, %arg15: memref<1x32xf32, #tpu.memory_space<vmem>>, %arg16: memref<1x32xf32, #tpu.memory_space<vmem>>, %arg17: memref<4x32x32xf32, #tpu.memory_space<vmem>>, %arg18: memref<4x1x32xf32, #tpu.memory_space<vmem>>, %arg19: memref<4x32x32xf32, #tpu.memory_space<vmem>>, %arg20: memref<1x32xf32, #tpu.memory_space<vmem>>, %arg21: memref<1x32xf32, #tpu.memory_space<vmem>>, %arg22: memref<1x32xf32, #tpu.memory_space<vmem>>, %arg23: memref<32x64xf32, #tpu.memory_space<vmem>>, %arg24: memref<1x64xf32, #tpu.memory_space<vmem>>, %arg25: memref<64x32xf32, #tpu.memory_space<vmem>>, %arg26: memref<1x32xf32, #tpu.memory_space<vmem>>, %arg27: memref<1x32xf32, #tpu.memory_space<vmem>>, %arg28: memref<1x32xf32, #tpu.memory_space<vmem>>, %arg29: memref<1x16x32xf32, #tpu.memory_space<vmem>>) attributes {dimension_semantics = [#tpu.dimension_semantics<parallel>], iteration_bounds = array<i64: 2>, scalar_prefetch = 0 : i64, scratch_operands = 0 : i64, tpu.core_type = #tpu.core_type<tc>, window_params = [{transform_indices = @transform_0, window_bounds = array<i64: 1, 16, 32>}, {transform_indices = @transform_1, window_bounds = array<i64: 1, 16, 32>}, {pipeline_mode = #tpu.pipeline_mode<synchronous>, transform_indices = @transform_2, window_bounds = array<i64: 16, 16>}, {pipeline_mode = #tpu.pipeline_mode<synchronous>, transform_indices = @transform_3, window_bounds = array<i64: 32, 32>}, {pipeline_mode = #tpu.pipeline_mode<synchronous>, transform_indices = @transform_4, window_bounds = array<i64: 4, 32, 32>}, {pipeline_mode = #tpu.pipeline_mode<synchronous>, transform_indices = @transform_5, window_bounds = array<i64: 4, 1, 32>}, {pipeline_mode = #tpu.pipeline_mode<synchronous>, transform_indices = @transform_6, window_bounds = array<i64: 4, 32, 32>}, {pipeline_mode = #tpu.pipeline_mode<synchronous>, transform_indices = @transform_7, window_bounds = array<i64: 1, 32>}, {pipeline_mode = #tpu.pipeline_mode<synchronous>, transform_indices = @transform_8, window_bounds = array<i64: 1, 32>}, {pipeline_mode = #tpu.pipeline_mode<synchronous>, transform_indices = @transform_9, window_bounds = array<i64: 1, 32>}, {pipeline_mode = #tpu.pipeline_mode<synchronous>, transform_indices = @transform_10, window_bounds = array<i64: 32, 64>}, {pipeline_mode = #tpu.pipeline_mode<synchronous>, transform_indices = @transform_11, window_bounds = array<i64: 1, 64>}, {pipeline_mode = #tpu.pipeline_mode<synchronous>, transform_indices = @transform_12, window_bounds = array<i64: 64, 32>}, {pipeline_mode = #tpu.pipeline_mode<synchronous>, transform_indices = @transform_13, window_bounds = array<i64: 1, 32>}, {pipeline_mode = #tpu.pipeline_mode<synchronous>, transform_indices = @transform_14, window_bounds = array<i64: 1, 32>}, {pipeline_mode = #tpu.pipeline_mode<synchronous>, transform_indices = @transform_15, window_bounds = array<i64: 1, 32>}, {pipeline_mode = #tpu.pipeline_mode<synchronous>, transform_indices = @transform_16, window_bounds = array<i64: 4, 32, 32>}, {pipeline_mode = #tpu.pipeline_mode<synchronous>, transform_indices = @transform_17, window_bounds = array<i64: 4, 1, 32>}, {pipeline_mode = #tpu.pipeline_mode<synchronous>, transform_indices = @transform_18, window_bounds = array<i64: 4, 32, 32>}, {pipeline_mode = #tpu.pipeline_mode<synchronous>, transform_indices = @transform_19, window_bounds = array<i64: 1, 32>}, {pipeline_mode = #tpu.pipeline_mode<synchronous>, transform_indices = @transform_20, window_bounds = array<i64: 1, 32>}, {pipeline_mode = #tpu.pipeline_mode<synchronous>, transform_indices = @transform_21, window_bounds = array<i64: 1, 32>}, {pipeline_mode = #tpu.pipeline_mode<synchronous>, transform_indices = @transform_22, window_bounds = array<i64: 32, 64>}, {pipeline_mode = #tpu.pipeline_mode<synchronous>, transform_indices = @transform_23, window_bounds = array<i64: 1, 64>}, {pipeline_mode = #tpu.pipeline_mode<synchronous>, transform_indices = @transform_24, window_bounds = array<i64: 64, 32>}, {pipeline_mode = #tpu.pipeline_mode<synchronous>, transform_indices = @transform_25, window_bounds = array<i64: 1, 32>}, {pipeline_mode = #tpu.pipeline_mode<synchronous>, transform_indices = @transform_26, window_bounds = array<i64: 1, 32>}, {pipeline_mode = #tpu.pipeline_mode<synchronous>, transform_indices = @transform_27, window_bounds = array<i64: 1, 32>}, {transform_indices = @transform_28, window_bounds = array<i64: 1, 16, 32>}]} {
    %c0 = arith.constant 0 : index
    %c0_0 = arith.constant 0 : index
    %c0_1 = arith.constant 0 : index
    %0 = vector.load %arg1[%c0, %c0_0, %c0_1] : memref<1x16x32xf32, #tpu.memory_space<vmem>>, vector<1x16x32xf32>
    %1 = vector.shape_cast %0 : vector<1x16x32xf32> to vector<16x32xf32>
    %c0_2 = arith.constant 0 : index
    %c0_3 = arith.constant 0 : index
    %2 = vector.load %arg4[%c0_2, %c0_3] : memref<32x32xf32, #tpu.memory_space<vmem>>, vector<32x32xf32>
    %cst = arith.constant dense<0.000000e+00> : vector<16x32xf32>
    %3 = tpu.matmul %1, %2, %cst {dimension_numbers = #tpu.dot_dimension_numbers<[1], [0], [0], [1], [0, 0, 1, 1], [], []>} : vector<16x32xf32>, vector<32x32xf32>, vector<16x32xf32> -> vector<16x32xf32>
    %c0_4 = arith.constant 0 : index
    %c0_5 = arith.constant 0 : index
    %c0_6 = arith.constant 0 : index
    %4 = vector.load %arg2[%c0_4, %c0_5, %c0_6] : memref<1x16x32xf32, #tpu.memory_space<vmem>>, vector<1x16x32xf32>
    %5 = vector.shape_cast %4 : vector<1x16x32xf32> to vector<16x32xf32>
    %6 = arith.addf %3, %5 : vector<16x32xf32>
    %c0_7 = arith.constant 0 : index
    %c0_8 = arith.constant 0 : index
    %7 = vector.load %arg3[%c0_7, %c0_8] : memref<16x16xf32, #tpu.memory_space<vmem>>, vector<16x16xf32>
    %cst_9 = arith.constant 0.000000e+00 : f32
    %8 = vector.broadcast %cst_9 : f32 to vector<16x32xf32>
    %c0_10 = arith.constant 0 : index
    %c0_11 = arith.constant 0 : index
    %c0_12 = arith.constant 0 : index
    %9 = vector.load %arg5[%c0_10, %c0_11, %c0_12] : memref<4x32x32xf32, #tpu.memory_space<vmem>>, vector<1x32x32xf32>
    %10 = vector.shape_cast %9 : vector<1x32x32xf32> to vector<32x32xf32>
    %cst_13 = arith.constant dense<0.000000e+00> : vector<16x32xf32>
    %11 = tpu.matmul %6, %10, %cst_13 {dimension_numbers = #tpu.dot_dimension_numbers<[1], [0], [0], [1], [0, 0, 1, 1], [], []>} : vector<16x32xf32>, vector<32x32xf32>, vector<16x32xf32> -> vector<16x32xf32>
    %c0_14 = arith.constant 0 : index
    %c0_15 = arith.constant 0 : index
    %c0_16 = arith.constant 0 : index
    %12 = vector.load %arg6[%c0_14, %c0_15, %c0_16] : memref<4x1x32xf32, #tpu.memory_space<vmem>>, vector<1x1x32xf32>
    %13 = vector.shape_cast %12 : vector<1x1x32xf32> to vector<1x32xf32>
    %14 = vector.broadcast %13 : vector<1x32xf32> to vector<16x32xf32>
    %15 = arith.addf %11, %14 : vector<16x32xf32>
    %cst_17 = arith.constant dense<0.000000e+00> : vector<16x16xf32>
    %16 = tpu.matmul %15, %6, %cst_17 {dimension_numbers = #tpu.dot_dimension_numbers<[1], [1], [0], [0], [0, 0, 1, 0], [], []>} : vector<16x32xf32>, vector<16x32xf32>, vector<16x16xf32> -> vector<16x16xf32>
    %17 = arith.addf %16, %7 : vector<16x16xf32>
    %cst_18 = arith.constant dense<0xFF800000> : vector<16xf32>
    %18 = vector.multi_reduction <maximumf>, %17, %cst_18 [1] : vector<16x16xf32> to vector<16xf32>
    %19 = vector.shape_cast %18 : vector<16xf32> to vector<16x1xf32>
    %20 = vector.broadcast %19 : vector<16x1xf32> to vector<16x16xf32>
    %21 = arith.subf %17, %20 : vector<16x16xf32>
    %22 = math.exp %21 : vector<16x16xf32>
    %cst_19 = arith.constant dense<0.000000e+00> : vector<16xf32>
    %23 = vector.multi_reduction <add>, %22, %cst_19 [1] : vector<16x16xf32> to vector<16xf32>
    %24 = vector.shape_cast %23 : vector<16xf32> to vector<16x1xf32>
    %25 = vector.broadcast %24 : vector<16x1xf32> to vector<16x16xf32>
    %26 = arith.divf %22, %25 : vector<16x16xf32>
    %c0_20 = arith.constant 0 : index
    %c0_21 = arith.constant 0 : index
    %c0_22 = arith.constant 0 : index
    %27 = vector.load %arg7[%c0_20, %c0_21, %c0_22] : memref<4x32x32xf32, #tpu.memory_space<vmem>>, vector<1x32x32xf32>
    %28 = vector.shape_cast %27 : vector<1x32x32xf32> to vector<32x32xf32>
    %cst_23 = arith.constant dense<0.000000e+00> : vector<16x32xf32>
    %29 = tpu.matmul %6, %28, %cst_23 {dimension_numbers = #tpu.dot_dimension_numbers<[1], [0], [0], [1], [0, 0, 1, 1], [], []>} : vector<16x32xf32>, vector<32x32xf32>, vector<16x32xf32> -> vector<16x32xf32>
    %cst_24 = arith.constant dense<0.000000e+00> : vector<16x32xf32>
    %30 = tpu.matmul %26, %29, %cst_24 {dimension_numbers = #tpu.dot_dimension_numbers<[1], [0], [0], [1], [0, 0, 1, 1], [], []>} : vector<16x16xf32>, vector<16x32xf32>, vector<16x32xf32> -> vector<16x32xf32>
    %31 = arith.addf %8, %30 : vector<16x32xf32>
    %c1 = arith.constant 1 : index
    %c0_25 = arith.constant 0 : index
    %c0_26 = arith.constant 0 : index
    %32 = vector.load %arg5[%c1, %c0_25, %c0_26] : memref<4x32x32xf32, #tpu.memory_space<vmem>>, vector<1x32x32xf32>
    %33 = vector.shape_cast %32 : vector<1x32x32xf32> to vector<32x32xf32>
    %cst_27 = arith.constant dense<0.000000e+00> : vector<16x32xf32>
    %34 = tpu.matmul %6, %33, %cst_27 {dimension_numbers = #tpu.dot_dimension_numbers<[1], [0], [0], [1], [0, 0, 1, 1], [], []>} : vector<16x32xf32>, vector<32x32xf32>, vector<16x32xf32> -> vector<16x32xf32>
    %c1_28 = arith.constant 1 : index
    %c0_29 = arith.constant 0 : index
    %c0_30 = arith.constant 0 : index
    %35 = vector.load %arg6[%c1_28, %c0_29, %c0_30] : memref<4x1x32xf32, #tpu.memory_space<vmem>>, vector<1x1x32xf32>
    %36 = vector.shape_cast %35 : vector<1x1x32xf32> to vector<1x32xf32>
    %37 = vector.broadcast %36 : vector<1x32xf32> to vector<16x32xf32>
    %38 = arith.addf %34, %37 : vector<16x32xf32>
    %cst_31 = arith.constant dense<0.000000e+00> : vector<16x16xf32>
    %39 = tpu.matmul %38, %6, %cst_31 {dimension_numbers = #tpu.dot_dimension_numbers<[1], [1], [0], [0], [0, 0, 1, 0], [], []>} : vector<16x32xf32>, vector<16x32xf32>, vector<16x16xf32> -> vector<16x16xf32>
    %40 = arith.addf %39, %7 : vector<16x16xf32>
    %cst_32 = arith.constant dense<0xFF800000> : vector<16xf32>
    %41 = vector.multi_reduction <maximumf>, %40, %cst_32 [1] : vector<16x16xf32> to vector<16xf32>
    %42 = vector.shape_cast %41 : vector<16xf32> to vector<16x1xf32>
    %43 = vector.broadcast %42 : vector<16x1xf32> to vector<16x16xf32>
    %44 = arith.subf %40, %43 : vector<16x16xf32>
    %45 = math.exp %44 : vector<16x16xf32>
    %cst_33 = arith.constant dense<0.000000e+00> : vector<16xf32>
    %46 = vector.multi_reduction <add>, %45, %cst_33 [1] : vector<16x16xf32> to vector<16xf32>
    %47 = vector.shape_cast %46 : vector<16xf32> to vector<16x1xf32>
    %48 = vector.broadcast %47 : vector<16x1xf32> to vector<16x16xf32>
    %49 = arith.divf %45, %48 : vector<16x16xf32>
    %c1_34 = arith.constant 1 : index
    %c0_35 = arith.constant 0 : index
    %c0_36 = arith.constant 0 : index
    %50 = vector.load %arg7[%c1_34, %c0_35, %c0_36] : memref<4x32x32xf32, #tpu.memory_space<vmem>>, vector<1x32x32xf32>
    %51 = vector.shape_cast %50 : vector<1x32x32xf32> to vector<32x32xf32>
    %cst_37 = arith.constant dense<0.000000e+00> : vector<16x32xf32>
    %52 = tpu.matmul %6, %51, %cst_37 {dimension_numbers = #tpu.dot_dimension_numbers<[1], [0], [0], [1], [0, 0, 1, 1], [], []>} : vector<16x32xf32>, vector<32x32xf32>, vector<16x32xf32> -> vector<16x32xf32>
    %cst_38 = arith.constant dense<0.000000e+00> : vector<16x32xf32>
    %53 = tpu.matmul %49, %52, %cst_38 {dimension_numbers = #tpu.dot_dimension_numbers<[1], [0], [0], [1], [0, 0, 1, 1], [], []>} : vector<16x16xf32>, vector<16x32xf32>, vector<16x32xf32> -> vector<16x32xf32>
    %54 = arith.addf %31, %53 : vector<16x32xf32>
    %c2 = arith.constant 2 : index
    %c0_39 = arith.constant 0 : index
    %c0_40 = arith.constant 0 : index
    %55 = vector.load %arg5[%c2, %c0_39, %c0_40] : memref<4x32x32xf32, #tpu.memory_space<vmem>>, vector<1x32x32xf32>
    %56 = vector.shape_cast %55 : vector<1x32x32xf32> to vector<32x32xf32>
    %cst_41 = arith.constant dense<0.000000e+00> : vector<16x32xf32>
    %57 = tpu.matmul %6, %56, %cst_41 {dimension_numbers = #tpu.dot_dimension_numbers<[1], [0], [0], [1], [0, 0, 1, 1], [], []>} : vector<16x32xf32>, vector<32x32xf32>, vector<16x32xf32> -> vector<16x32xf32>
    %c2_42 = arith.constant 2 : index
    %c0_43 = arith.constant 0 : index
    %c0_44 = arith.constant 0 : index
    %58 = vector.load %arg6[%c2_42, %c0_43, %c0_44] : memref<4x1x32xf32, #tpu.memory_space<vmem>>, vector<1x1x32xf32>
    %59 = vector.shape_cast %58 : vector<1x1x32xf32> to vector<1x32xf32>
    %60 = vector.broadcast %59 : vector<1x32xf32> to vector<16x32xf32>
    %61 = arith.addf %57, %60 : vector<16x32xf32>
    %cst_45 = arith.constant dense<0.000000e+00> : vector<16x16xf32>
    %62 = tpu.matmul %61, %6, %cst_45 {dimension_numbers = #tpu.dot_dimension_numbers<[1], [1], [0], [0], [0, 0, 1, 0], [], []>} : vector<16x32xf32>, vector<16x32xf32>, vector<16x16xf32> -> vector<16x16xf32>
    %63 = arith.addf %62, %7 : vector<16x16xf32>
    %cst_46 = arith.constant dense<0xFF800000> : vector<16xf32>
    %64 = vector.multi_reduction <maximumf>, %63, %cst_46 [1] : vector<16x16xf32> to vector<16xf32>
    %65 = vector.shape_cast %64 : vector<16xf32> to vector<16x1xf32>
    %66 = vector.broadcast %65 : vector<16x1xf32> to vector<16x16xf32>
    %67 = arith.subf %63, %66 : vector<16x16xf32>
    %68 = math.exp %67 : vector<16x16xf32>
    %cst_47 = arith.constant dense<0.000000e+00> : vector<16xf32>
    %69 = vector.multi_reduction <add>, %68, %cst_47 [1] : vector<16x16xf32> to vector<16xf32>
    %70 = vector.shape_cast %69 : vector<16xf32> to vector<16x1xf32>
    %71 = vector.broadcast %70 : vector<16x1xf32> to vector<16x16xf32>
    %72 = arith.divf %68, %71 : vector<16x16xf32>
    %c2_48 = arith.constant 2 : index
    %c0_49 = arith.constant 0 : index
    %c0_50 = arith.constant 0 : index
    %73 = vector.load %arg7[%c2_48, %c0_49, %c0_50] : memref<4x32x32xf32, #tpu.memory_space<vmem>>, vector<1x32x32xf32>
    %74 = vector.shape_cast %73 : vector<1x32x32xf32> to vector<32x32xf32>
    %cst_51 = arith.constant dense<0.000000e+00> : vector<16x32xf32>
    %75 = tpu.matmul %6, %74, %cst_51 {dimension_numbers = #tpu.dot_dimension_numbers<[1], [0], [0], [1], [0, 0, 1, 1], [], []>} : vector<16x32xf32>, vector<32x32xf32>, vector<16x32xf32> -> vector<16x32xf32>
    %cst_52 = arith.constant dense<0.000000e+00> : vector<16x32xf32>
    %76 = tpu.matmul %72, %75, %cst_52 {dimension_numbers = #tpu.dot_dimension_numbers<[1], [0], [0], [1], [0, 0, 1, 1], [], []>} : vector<16x16xf32>, vector<16x32xf32>, vector<16x32xf32> -> vector<16x32xf32>
    %77 = arith.addf %54, %76 : vector<16x32xf32>
    %c3 = arith.constant 3 : index
    %c0_53 = arith.constant 0 : index
    %c0_54 = arith.constant 0 : index
    %78 = vector.load %arg5[%c3, %c0_53, %c0_54] : memref<4x32x32xf32, #tpu.memory_space<vmem>>, vector<1x32x32xf32>
    %79 = vector.shape_cast %78 : vector<1x32x32xf32> to vector<32x32xf32>
    %cst_55 = arith.constant dense<0.000000e+00> : vector<16x32xf32>
    %80 = tpu.matmul %6, %79, %cst_55 {dimension_numbers = #tpu.dot_dimension_numbers<[1], [0], [0], [1], [0, 0, 1, 1], [], []>} : vector<16x32xf32>, vector<32x32xf32>, vector<16x32xf32> -> vector<16x32xf32>
    %c3_56 = arith.constant 3 : index
    %c0_57 = arith.constant 0 : index
    %c0_58 = arith.constant 0 : index
    %81 = vector.load %arg6[%c3_56, %c0_57, %c0_58] : memref<4x1x32xf32, #tpu.memory_space<vmem>>, vector<1x1x32xf32>
    %82 = vector.shape_cast %81 : vector<1x1x32xf32> to vector<1x32xf32>
    %83 = vector.broadcast %82 : vector<1x32xf32> to vector<16x32xf32>
    %84 = arith.addf %80, %83 : vector<16x32xf32>
    %cst_59 = arith.constant dense<0.000000e+00> : vector<16x16xf32>
    %85 = tpu.matmul %84, %6, %cst_59 {dimension_numbers = #tpu.dot_dimension_numbers<[1], [1], [0], [0], [0, 0, 1, 0], [], []>} : vector<16x32xf32>, vector<16x32xf32>, vector<16x16xf32> -> vector<16x16xf32>
    %86 = arith.addf %85, %7 : vector<16x16xf32>
    %cst_60 = arith.constant dense<0xFF800000> : vector<16xf32>
    %87 = vector.multi_reduction <maximumf>, %86, %cst_60 [1] : vector<16x16xf32> to vector<16xf32>
    %88 = vector.shape_cast %87 : vector<16xf32> to vector<16x1xf32>
    %89 = vector.broadcast %88 : vector<16x1xf32> to vector<16x16xf32>
    %90 = arith.subf %86, %89 : vector<16x16xf32>
    %91 = math.exp %90 : vector<16x16xf32>
    %cst_61 = arith.constant dense<0.000000e+00> : vector<16xf32>
    %92 = vector.multi_reduction <add>, %91, %cst_61 [1] : vector<16x16xf32> to vector<16xf32>
    %93 = vector.shape_cast %92 : vector<16xf32> to vector<16x1xf32>
    %94 = vector.broadcast %93 : vector<16x1xf32> to vector<16x16xf32>
    %95 = arith.divf %91, %94 : vector<16x16xf32>
    %c3_62 = arith.constant 3 : index
    %c0_63 = arith.constant 0 : index
    %c0_64 = arith.constant 0 : index
    %96 = vector.load %arg7[%c3_62, %c0_63, %c0_64] : memref<4x32x32xf32, #tpu.memory_space<vmem>>, vector<1x32x32xf32>
    %97 = vector.shape_cast %96 : vector<1x32x32xf32> to vector<32x32xf32>
    %cst_65 = arith.constant dense<0.000000e+00> : vector<16x32xf32>
    %98 = tpu.matmul %6, %97, %cst_65 {dimension_numbers = #tpu.dot_dimension_numbers<[1], [0], [0], [1], [0, 0, 1, 1], [], []>} : vector<16x32xf32>, vector<32x32xf32>, vector<16x32xf32> -> vector<16x32xf32>
    %cst_66 = arith.constant dense<0.000000e+00> : vector<16x32xf32>
    %99 = tpu.matmul %95, %98, %cst_66 {dimension_numbers = #tpu.dot_dimension_numbers<[1], [0], [0], [1], [0, 0, 1, 1], [], []>} : vector<16x16xf32>, vector<16x32xf32>, vector<16x32xf32> -> vector<16x32xf32>
    %100 = arith.addf %77, %99 : vector<16x32xf32>
    %c0_67 = arith.constant 0 : index
    %c0_68 = arith.constant 0 : index
    %101 = vector.load %arg8[%c0_67, %c0_68] : memref<1x32xf32, #tpu.memory_space<vmem>>, vector<1x32xf32>
    %102 = vector.broadcast %101 : vector<1x32xf32> to vector<16x32xf32>
    %103 = arith.addf %100, %102 : vector<16x32xf32>
    %104 = arith.addf %6, %103 : vector<16x32xf32>
    %c0_69 = arith.constant 0 : index
    %c0_70 = arith.constant 0 : index
    %105 = vector.load %arg9[%c0_69, %c0_70] : memref<1x32xf32, #tpu.memory_space<vmem>>, vector<1x32xf32>
    %c0_71 = arith.constant 0 : index
    %c0_72 = arith.constant 0 : index
    %106 = vector.load %arg10[%c0_71, %c0_72] : memref<1x32xf32, #tpu.memory_space<vmem>>, vector<1x32xf32>
    %cst_73 = arith.constant dense<0.000000e+00> : vector<16xf32>
    %107 = vector.multi_reduction <add>, %104, %cst_73 [1] : vector<16x32xf32> to vector<16xf32>
    %108 = vector.shape_cast %107 : vector<16xf32> to vector<16x1xf32>
    %cst_74 = arith.constant 3.200000e+01 : f32
    %109 = vector.broadcast %cst_74 : f32 to vector<16x1xf32>
    %110 = arith.divf %108, %109 : vector<16x1xf32>
    %111 = arith.mulf %104, %104 : vector<16x32xf32>
    %cst_75 = arith.constant dense<0.000000e+00> : vector<16xf32>
    %112 = vector.multi_reduction <add>, %111, %cst_75 [1] : vector<16x32xf32> to vector<16xf32>
    %113 = vector.shape_cast %112 : vector<16xf32> to vector<16x1xf32>
    %cst_76 = arith.constant 3.200000e+01 : f32
    %114 = vector.broadcast %cst_76 : f32 to vector<16x1xf32>
    %115 = arith.divf %113, %114 : vector<16x1xf32>
    %116 = arith.mulf %110, %110 : vector<16x1xf32>
    %117 = arith.subf %115, %116 : vector<16x1xf32>
    %118 = vector.broadcast %110 : vector<16x1xf32> to vector<16x32xf32>
    %119 = arith.subf %104, %118 : vector<16x32xf32>
    %cst_77 = arith.constant 9.99999974E-6 : f32
    %120 = vector.broadcast %cst_77 : f32 to vector<16x1xf32>
    %121 = arith.addf %117, %120 : vector<16x1xf32>
    %122 = math.rsqrt %121 : vector<16x1xf32>
    %123 = vector.broadcast %122 : vector<16x1xf32> to vector<16x32xf32>
    %124 = arith.mulf %119, %123 : vector<16x32xf32>
    %125 = vector.broadcast %105 : vector<1x32xf32> to vector<16x32xf32>
    %126 = arith.mulf %124, %125 : vector<16x32xf32>
    %127 = vector.broadcast %106 : vector<1x32xf32> to vector<16x32xf32>
    %128 = arith.addf %126, %127 : vector<16x32xf32>
    %c0_78 = arith.constant 0 : index
    %c0_79 = arith.constant 0 : index
    %129 = vector.load %arg11[%c0_78, %c0_79] : memref<32x64xf32, #tpu.memory_space<vmem>>, vector<32x64xf32>
    %cst_80 = arith.constant dense<0.000000e+00> : vector<16x64xf32>
    %130 = tpu.matmul %128, %129, %cst_80 {dimension_numbers = #tpu.dot_dimension_numbers<[1], [0], [0], [1], [0, 0, 1, 1], [], []>} : vector<16x32xf32>, vector<32x64xf32>, vector<16x64xf32> -> vector<16x64xf32>
    %c0_81 = arith.constant 0 : index
    %c0_82 = arith.constant 0 : index
    %131 = vector.load %arg12[%c0_81, %c0_82] : memref<1x64xf32, #tpu.memory_space<vmem>>, vector<1x64xf32>
    %132 = vector.broadcast %131 : vector<1x64xf32> to vector<16x64xf32>
    %133 = arith.addf %130, %132 : vector<16x64xf32>
    %cst_83 = arith.constant 0.000000e+00 : f32
    %134 = vector.broadcast %cst_83 : f32 to vector<16x64xf32>
    %135 = arith.maximumf %133, %134 : vector<16x64xf32>
    %c0_84 = arith.constant 0 : index
    %c0_85 = arith.constant 0 : index
    %136 = vector.load %arg13[%c0_84, %c0_85] : memref<64x32xf32, #tpu.memory_space<vmem>>, vector<64x32xf32>
    %cst_86 = arith.constant dense<0.000000e+00> : vector<16x32xf32>
    %137 = tpu.matmul %135, %136, %cst_86 {dimension_numbers = #tpu.dot_dimension_numbers<[1], [0], [0], [1], [0, 0, 1, 1], [], []>} : vector<16x64xf32>, vector<64x32xf32>, vector<16x32xf32> -> vector<16x32xf32>
    %c0_87 = arith.constant 0 : index
    %c0_88 = arith.constant 0 : index
    %138 = vector.load %arg14[%c0_87, %c0_88] : memref<1x32xf32, #tpu.memory_space<vmem>>, vector<1x32xf32>
    %139 = vector.broadcast %138 : vector<1x32xf32> to vector<16x32xf32>
    %140 = arith.addf %137, %139 : vector<16x32xf32>
    %141 = arith.addf %128, %140 : vector<16x32xf32>
    %c0_89 = arith.constant 0 : index
    %c0_90 = arith.constant 0 : index
    %142 = vector.load %arg15[%c0_89, %c0_90] : memref<1x32xf32, #tpu.memory_space<vmem>>, vector<1x32xf32>
    %c0_91 = arith.constant 0 : index
    %c0_92 = arith.constant 0 : index
    %143 = vector.load %arg16[%c0_91, %c0_92] : memref<1x32xf32, #tpu.memory_space<vmem>>, vector<1x32xf32>
    %cst_93 = arith.constant dense<0.000000e+00> : vector<16xf32>
    %144 = vector.multi_reduction <add>, %141, %cst_93 [1] : vector<16x32xf32> to vector<16xf32>
    %145 = vector.shape_cast %144 : vector<16xf32> to vector<16x1xf32>
    %cst_94 = arith.constant 3.200000e+01 : f32
    %146 = vector.broadcast %cst_94 : f32 to vector<16x1xf32>
    %147 = arith.divf %145, %146 : vector<16x1xf32>
    %148 = arith.mulf %141, %141 : vector<16x32xf32>
    %cst_95 = arith.constant dense<0.000000e+00> : vector<16xf32>
    %149 = vector.multi_reduction <add>, %148, %cst_95 [1] : vector<16x32xf32> to vector<16xf32>
    %150 = vector.shape_cast %149 : vector<16xf32> to vector<16x1xf32>
    %cst_96 = arith.constant 3.200000e+01 : f32
    %151 = vector.broadcast %cst_96 : f32 to vector<16x1xf32>
    %152 = arith.divf %150, %151 : vector<16x1xf32>
    %153 = arith.mulf %147, %147 : vector<16x1xf32>
    %154 = arith.subf %152, %153 : vector<16x1xf32>
    %155 = vector.broadcast %147 : vector<16x1xf32> to vector<16x32xf32>
    %156 = arith.subf %141, %155 : vector<16x32xf32>
    %cst_97 = arith.constant 9.99999974E-6 : f32
    %157 = vector.broadcast %cst_97 : f32 to vector<16x1xf32>
    %158 = arith.addf %154, %157 : vector<16x1xf32>
    %159 = math.rsqrt %158 : vector<16x1xf32>
    %160 = vector.broadcast %159 : vector<16x1xf32> to vector<16x32xf32>
    %161 = arith.mulf %156, %160 : vector<16x32xf32>
    %162 = vector.broadcast %142 : vector<1x32xf32> to vector<16x32xf32>
    %163 = arith.mulf %161, %162 : vector<16x32xf32>
    %164 = vector.broadcast %143 : vector<1x32xf32> to vector<16x32xf32>
    %165 = arith.addf %163, %164 : vector<16x32xf32>
    %cst_98 = arith.constant 0.000000e+00 : f32
    %166 = vector.broadcast %cst_98 : f32 to vector<16x32xf32>
    %c0_99 = arith.constant 0 : index
    %c0_100 = arith.constant 0 : index
    %c0_101 = arith.constant 0 : index
    %167 = vector.load %arg17[%c0_99, %c0_100, %c0_101] : memref<4x32x32xf32, #tpu.memory_space<vmem>>, vector<1x32x32xf32>
    %168 = vector.shape_cast %167 : vector<1x32x32xf32> to vector<32x32xf32>
    %cst_102 = arith.constant dense<0.000000e+00> : vector<16x32xf32>
    %169 = tpu.matmul %165, %168, %cst_102 {dimension_numbers = #tpu.dot_dimension_numbers<[1], [0], [0], [1], [0, 0, 1, 1], [], []>} : vector<16x32xf32>, vector<32x32xf32>, vector<16x32xf32> -> vector<16x32xf32>
    %c0_103 = arith.constant 0 : index
    %c0_104 = arith.constant 0 : index
    %c0_105 = arith.constant 0 : index
    %170 = vector.load %arg18[%c0_103, %c0_104, %c0_105] : memref<4x1x32xf32, #tpu.memory_space<vmem>>, vector<1x1x32xf32>
    %171 = vector.shape_cast %170 : vector<1x1x32xf32> to vector<1x32xf32>
    %172 = vector.broadcast %171 : vector<1x32xf32> to vector<16x32xf32>
    %173 = arith.addf %169, %172 : vector<16x32xf32>
    %cst_106 = arith.constant dense<0.000000e+00> : vector<16x16xf32>
    %174 = tpu.matmul %173, %165, %cst_106 {dimension_numbers = #tpu.dot_dimension_numbers<[1], [1], [0], [0], [0, 0, 1, 0], [], []>} : vector<16x32xf32>, vector<16x32xf32>, vector<16x16xf32> -> vector<16x16xf32>
    %175 = arith.addf %174, %7 : vector<16x16xf32>
    %cst_107 = arith.constant dense<0xFF800000> : vector<16xf32>
    %176 = vector.multi_reduction <maximumf>, %175, %cst_107 [1] : vector<16x16xf32> to vector<16xf32>
    %177 = vector.shape_cast %176 : vector<16xf32> to vector<16x1xf32>
    %178 = vector.broadcast %177 : vector<16x1xf32> to vector<16x16xf32>
    %179 = arith.subf %175, %178 : vector<16x16xf32>
    %180 = math.exp %179 : vector<16x16xf32>
    %cst_108 = arith.constant dense<0.000000e+00> : vector<16xf32>
    %181 = vector.multi_reduction <add>, %180, %cst_108 [1] : vector<16x16xf32> to vector<16xf32>
    %182 = vector.shape_cast %181 : vector<16xf32> to vector<16x1xf32>
    %183 = vector.broadcast %182 : vector<16x1xf32> to vector<16x16xf32>
    %184 = arith.divf %180, %183 : vector<16x16xf32>
    %c0_109 = arith.constant 0 : index
    %c0_110 = arith.constant 0 : index
    %c0_111 = arith.constant 0 : index
    %185 = vector.load %arg19[%c0_109, %c0_110, %c0_111] : memref<4x32x32xf32, #tpu.memory_space<vmem>>, vector<1x32x32xf32>
    %186 = vector.shape_cast %185 : vector<1x32x32xf32> to vector<32x32xf32>
    %cst_112 = arith.constant dense<0.000000e+00> : vector<16x32xf32>
    %187 = tpu.matmul %165, %186, %cst_112 {dimension_numbers = #tpu.dot_dimension_numbers<[1], [0], [0], [1], [0, 0, 1, 1], [], []>} : vector<16x32xf32>, vector<32x32xf32>, vector<16x32xf32> -> vector<16x32xf32>
    %cst_113 = arith.constant dense<0.000000e+00> : vector<16x32xf32>
    %188 = tpu.matmul %184, %187, %cst_113 {dimension_numbers = #tpu.dot_dimension_numbers<[1], [0], [0], [1], [0, 0, 1, 1], [], []>} : vector<16x16xf32>, vector<16x32xf32>, vector<16x32xf32> -> vector<16x32xf32>
    %189 = arith.addf %166, %188 : vector<16x32xf32>
    %c1_114 = arith.constant 1 : index
    %c0_115 = arith.constant 0 : index
    %c0_116 = arith.constant 0 : index
    %190 = vector.load %arg17[%c1_114, %c0_115, %c0_116] : memref<4x32x32xf32, #tpu.memory_space<vmem>>, vector<1x32x32xf32>
    %191 = vector.shape_cast %190 : vector<1x32x32xf32> to vector<32x32xf32>
    %cst_117 = arith.constant dense<0.000000e+00> : vector<16x32xf32>
    %192 = tpu.matmul %165, %191, %cst_117 {dimension_numbers = #tpu.dot_dimension_numbers<[1], [0], [0], [1], [0, 0, 1, 1], [], []>} : vector<16x32xf32>, vector<32x32xf32>, vector<16x32xf32> -> vector<16x32xf32>
    %c1_118 = arith.constant 1 : index
    %c0_119 = arith.constant 0 : index
    %c0_120 = arith.constant 0 : index
    %193 = vector.load %arg18[%c1_118, %c0_119, %c0_120] : memref<4x1x32xf32, #tpu.memory_space<vmem>>, vector<1x1x32xf32>
    %194 = vector.shape_cast %193 : vector<1x1x32xf32> to vector<1x32xf32>
    %195 = vector.broadcast %194 : vector<1x32xf32> to vector<16x32xf32>
    %196 = arith.addf %192, %195 : vector<16x32xf32>
    %cst_121 = arith.constant dense<0.000000e+00> : vector<16x16xf32>
    %197 = tpu.matmul %196, %165, %cst_121 {dimension_numbers = #tpu.dot_dimension_numbers<[1], [1], [0], [0], [0, 0, 1, 0], [], []>} : vector<16x32xf32>, vector<16x32xf32>, vector<16x16xf32> -> vector<16x16xf32>
    %198 = arith.addf %197, %7 : vector<16x16xf32>
    %cst_122 = arith.constant dense<0xFF800000> : vector<16xf32>
    %199 = vector.multi_reduction <maximumf>, %198, %cst_122 [1] : vector<16x16xf32> to vector<16xf32>
    %200 = vector.shape_cast %199 : vector<16xf32> to vector<16x1xf32>
    %201 = vector.broadcast %200 : vector<16x1xf32> to vector<16x16xf32>
    %202 = arith.subf %198, %201 : vector<16x16xf32>
    %203 = math.exp %202 : vector<16x16xf32>
    %cst_123 = arith.constant dense<0.000000e+00> : vector<16xf32>
    %204 = vector.multi_reduction <add>, %203, %cst_123 [1] : vector<16x16xf32> to vector<16xf32>
    %205 = vector.shape_cast %204 : vector<16xf32> to vector<16x1xf32>
    %206 = vector.broadcast %205 : vector<16x1xf32> to vector<16x16xf32>
    %207 = arith.divf %203, %206 : vector<16x16xf32>
    %c1_124 = arith.constant 1 : index
    %c0_125 = arith.constant 0 : index
    %c0_126 = arith.constant 0 : index
    %208 = vector.load %arg19[%c1_124, %c0_125, %c0_126] : memref<4x32x32xf32, #tpu.memory_space<vmem>>, vector<1x32x32xf32>
    %209 = vector.shape_cast %208 : vector<1x32x32xf32> to vector<32x32xf32>
    %cst_127 = arith.constant dense<0.000000e+00> : vector<16x32xf32>
    %210 = tpu.matmul %165, %209, %cst_127 {dimension_numbers = #tpu.dot_dimension_numbers<[1], [0], [0], [1], [0, 0, 1, 1], [], []>} : vector<16x32xf32>, vector<32x32xf32>, vector<16x32xf32> -> vector<16x32xf32>
    %cst_128 = arith.constant dense<0.000000e+00> : vector<16x32xf32>
    %211 = tpu.matmul %207, %210, %cst_128 {dimension_numbers = #tpu.dot_dimension_numbers<[1], [0], [0], [1], [0, 0, 1, 1], [], []>} : vector<16x16xf32>, vector<16x32xf32>, vector<16x32xf32> -> vector<16x32xf32>
    %212 = arith.addf %189, %211 : vector<16x32xf32>
    %c2_129 = arith.constant 2 : index
    %c0_130 = arith.constant 0 : index
    %c0_131 = arith.constant 0 : index
    %213 = vector.load %arg17[%c2_129, %c0_130, %c0_131] : memref<4x32x32xf32, #tpu.memory_space<vmem>>, vector<1x32x32xf32>
    %214 = vector.shape_cast %213 : vector<1x32x32xf32> to vector<32x32xf32>
    %cst_132 = arith.constant dense<0.000000e+00> : vector<16x32xf32>
    %215 = tpu.matmul %165, %214, %cst_132 {dimension_numbers = #tpu.dot_dimension_numbers<[1], [0], [0], [1], [0, 0, 1, 1], [], []>} : vector<16x32xf32>, vector<32x32xf32>, vector<16x32xf32> -> vector<16x32xf32>
    %c2_133 = arith.constant 2 : index
    %c0_134 = arith.constant 0 : index
    %c0_135 = arith.constant 0 : index
    %216 = vector.load %arg18[%c2_133, %c0_134, %c0_135] : memref<4x1x32xf32, #tpu.memory_space<vmem>>, vector<1x1x32xf32>
    %217 = vector.shape_cast %216 : vector<1x1x32xf32> to vector<1x32xf32>
    %218 = vector.broadcast %217 : vector<1x32xf32> to vector<16x32xf32>
    %219 = arith.addf %215, %218 : vector<16x32xf32>
    %cst_136 = arith.constant dense<0.000000e+00> : vector<16x16xf32>
    %220 = tpu.matmul %219, %165, %cst_136 {dimension_numbers = #tpu.dot_dimension_numbers<[1], [1], [0], [0], [0, 0, 1, 0], [], []>} : vector<16x32xf32>, vector<16x32xf32>, vector<16x16xf32> -> vector<16x16xf32>
    %221 = arith.addf %220, %7 : vector<16x16xf32>
    %cst_137 = arith.constant dense<0xFF800000> : vector<16xf32>
    %222 = vector.multi_reduction <maximumf>, %221, %cst_137 [1] : vector<16x16xf32> to vector<16xf32>
    %223 = vector.shape_cast %222 : vector<16xf32> to vector<16x1xf32>
    %224 = vector.broadcast %223 : vector<16x1xf32> to vector<16x16xf32>
    %225 = arith.subf %221, %224 : vector<16x16xf32>
    %226 = math.exp %225 : vector<16x16xf32>
    %cst_138 = arith.constant dense<0.000000e+00> : vector<16xf32>
    %227 = vector.multi_reduction <add>, %226, %cst_138 [1] : vector<16x16xf32> to vector<16xf32>
    %228 = vector.shape_cast %227 : vector<16xf32> to vector<16x1xf32>
    %229 = vector.broadcast %228 : vector<16x1xf32> to vector<16x16xf32>
    %230 = arith.divf %226, %229 : vector<16x16xf32>
    %c2_139 = arith.constant 2 : index
    %c0_140 = arith.constant 0 : index
    %c0_141 = arith.constant 0 : index
    %231 = vector.load %arg19[%c2_139, %c0_140, %c0_141] : memref<4x32x32xf32, #tpu.memory_space<vmem>>, vector<1x32x32xf32>
    %232 = vector.shape_cast %231 : vector<1x32x32xf32> to vector<32x32xf32>
    %cst_142 = arith.constant dense<0.000000e+00> : vector<16x32xf32>
    %233 = tpu.matmul %165, %232, %cst_142 {dimension_numbers = #tpu.dot_dimension_numbers<[1], [0], [0], [1], [0, 0, 1, 1], [], []>} : vector<16x32xf32>, vector<32x32xf32>, vector<16x32xf32> -> vector<16x32xf32>
    %cst_143 = arith.constant dense<0.000000e+00> : vector<16x32xf32>
    %234 = tpu.matmul %230, %233, %cst_143 {dimension_numbers = #tpu.dot_dimension_numbers<[1], [0], [0], [1], [0, 0, 1, 1], [], []>} : vector<16x16xf32>, vector<16x32xf32>, vector<16x32xf32> -> vector<16x32xf32>
    %235 = arith.addf %212, %234 : vector<16x32xf32>
    %c3_144 = arith.constant 3 : index
    %c0_145 = arith.constant 0 : index
    %c0_146 = arith.constant 0 : index
    %236 = vector.load %arg17[%c3_144, %c0_145, %c0_146] : memref<4x32x32xf32, #tpu.memory_space<vmem>>, vector<1x32x32xf32>
    %237 = vector.shape_cast %236 : vector<1x32x32xf32> to vector<32x32xf32>
    %cst_147 = arith.constant dense<0.000000e+00> : vector<16x32xf32>
    %238 = tpu.matmul %165, %237, %cst_147 {dimension_numbers = #tpu.dot_dimension_numbers<[1], [0], [0], [1], [0, 0, 1, 1], [], []>} : vector<16x32xf32>, vector<32x32xf32>, vector<16x32xf32> -> vector<16x32xf32>
    %c3_148 = arith.constant 3 : index
    %c0_149 = arith.constant 0 : index
    %c0_150 = arith.constant 0 : index
    %239 = vector.load %arg18[%c3_148, %c0_149, %c0_150] : memref<4x1x32xf32, #tpu.memory_space<vmem>>, vector<1x1x32xf32>
    %240 = vector.shape_cast %239 : vector<1x1x32xf32> to vector<1x32xf32>
    %241 = vector.broadcast %240 : vector<1x32xf32> to vector<16x32xf32>
    %242 = arith.addf %238, %241 : vector<16x32xf32>
    %cst_151 = arith.constant dense<0.000000e+00> : vector<16x16xf32>
    %243 = tpu.matmul %242, %165, %cst_151 {dimension_numbers = #tpu.dot_dimension_numbers<[1], [1], [0], [0], [0, 0, 1, 0], [], []>} : vector<16x32xf32>, vector<16x32xf32>, vector<16x16xf32> -> vector<16x16xf32>
    %244 = arith.addf %243, %7 : vector<16x16xf32>
    %cst_152 = arith.constant dense<0xFF800000> : vector<16xf32>
    %245 = vector.multi_reduction <maximumf>, %244, %cst_152 [1] : vector<16x16xf32> to vector<16xf32>
    %246 = vector.shape_cast %245 : vector<16xf32> to vector<16x1xf32>
    %247 = vector.broadcast %246 : vector<16x1xf32> to vector<16x16xf32>
    %248 = arith.subf %244, %247 : vector<16x16xf32>
    %249 = math.exp %248 : vector<16x16xf32>
    %cst_153 = arith.constant dense<0.000000e+00> : vector<16xf32>
    %250 = vector.multi_reduction <add>, %249, %cst_153 [1] : vector<16x16xf32> to vector<16xf32>
    %251 = vector.shape_cast %250 : vector<16xf32> to vector<16x1xf32>
    %252 = vector.broadcast %251 : vector<16x1xf32> to vector<16x16xf32>
    %253 = arith.divf %249, %252 : vector<16x16xf32>
    %c3_154 = arith.constant 3 : index
    %c0_155 = arith.constant 0 : index
    %c0_156 = arith.constant 0 : index
    %254 = vector.load %arg19[%c3_154, %c0_155, %c0_156] : memref<4x32x32xf32, #tpu.memory_space<vmem>>, vector<1x32x32xf32>
    %255 = vector.shape_cast %254 : vector<1x32x32xf32> to vector<32x32xf32>
    %cst_157 = arith.constant dense<0.000000e+00> : vector<16x32xf32>
    %256 = tpu.matmul %165, %255, %cst_157 {dimension_numbers = #tpu.dot_dimension_numbers<[1], [0], [0], [1], [0, 0, 1, 1], [], []>} : vector<16x32xf32>, vector<32x32xf32>, vector<16x32xf32> -> vector<16x32xf32>
    %cst_158 = arith.constant dense<0.000000e+00> : vector<16x32xf32>
    %257 = tpu.matmul %253, %256, %cst_158 {dimension_numbers = #tpu.dot_dimension_numbers<[1], [0], [0], [1], [0, 0, 1, 1], [], []>} : vector<16x16xf32>, vector<16x32xf32>, vector<16x32xf32> -> vector<16x32xf32>
    %258 = arith.addf %235, %257 : vector<16x32xf32>
    %c0_159 = arith.constant 0 : index
    %c0_160 = arith.constant 0 : index
    %259 = vector.load %arg20[%c0_159, %c0_160] : memref<1x32xf32, #tpu.memory_space<vmem>>, vector<1x32xf32>
    %260 = vector.broadcast %259 : vector<1x32xf32> to vector<16x32xf32>
    %261 = arith.addf %258, %260 : vector<16x32xf32>
    %262 = arith.addf %165, %261 : vector<16x32xf32>
    %c0_161 = arith.constant 0 : index
    %c0_162 = arith.constant 0 : index
    %263 = vector.load %arg21[%c0_161, %c0_162] : memref<1x32xf32, #tpu.memory_space<vmem>>, vector<1x32xf32>
    %c0_163 = arith.constant 0 : index
    %c0_164 = arith.constant 0 : index
    %264 = vector.load %arg22[%c0_163, %c0_164] : memref<1x32xf32, #tpu.memory_space<vmem>>, vector<1x32xf32>
    %cst_165 = arith.constant dense<0.000000e+00> : vector<16xf32>
    %265 = vector.multi_reduction <add>, %262, %cst_165 [1] : vector<16x32xf32> to vector<16xf32>
    %266 = vector.shape_cast %265 : vector<16xf32> to vector<16x1xf32>
    %cst_166 = arith.constant 3.200000e+01 : f32
    %267 = vector.broadcast %cst_166 : f32 to vector<16x1xf32>
    %268 = arith.divf %266, %267 : vector<16x1xf32>
    %269 = arith.mulf %262, %262 : vector<16x32xf32>
    %cst_167 = arith.constant dense<0.000000e+00> : vector<16xf32>
    %270 = vector.multi_reduction <add>, %269, %cst_167 [1] : vector<16x32xf32> to vector<16xf32>
    %271 = vector.shape_cast %270 : vector<16xf32> to vector<16x1xf32>
    %cst_168 = arith.constant 3.200000e+01 : f32
    %272 = vector.broadcast %cst_168 : f32 to vector<16x1xf32>
    %273 = arith.divf %271, %272 : vector<16x1xf32>
    %274 = arith.mulf %268, %268 : vector<16x1xf32>
    %275 = arith.subf %273, %274 : vector<16x1xf32>
    %276 = vector.broadcast %268 : vector<16x1xf32> to vector<16x32xf32>
    %277 = arith.subf %262, %276 : vector<16x32xf32>
    %cst_169 = arith.constant 9.99999974E-6 : f32
    %278 = vector.broadcast %cst_169 : f32 to vector<16x1xf32>
    %279 = arith.addf %275, %278 : vector<16x1xf32>
    %280 = math.rsqrt %279 : vector<16x1xf32>
    %281 = vector.broadcast %280 : vector<16x1xf32> to vector<16x32xf32>
    %282 = arith.mulf %277, %281 : vector<16x32xf32>
    %283 = vector.broadcast %263 : vector<1x32xf32> to vector<16x32xf32>
    %284 = arith.mulf %282, %283 : vector<16x32xf32>
    %285 = vector.broadcast %264 : vector<1x32xf32> to vector<16x32xf32>
    %286 = arith.addf %284, %285 : vector<16x32xf32>
    %c0_170 = arith.constant 0 : index
    %c0_171 = arith.constant 0 : index
    %287 = vector.load %arg23[%c0_170, %c0_171] : memref<32x64xf32, #tpu.memory_space<vmem>>, vector<32x64xf32>
    %cst_172 = arith.constant dense<0.000000e+00> : vector<16x64xf32>
    %288 = tpu.matmul %286, %287, %cst_172 {dimension_numbers = #tpu.dot_dimension_numbers<[1], [0], [0], [1], [0, 0, 1, 1], [], []>} : vector<16x32xf32>, vector<32x64xf32>, vector<16x64xf32> -> vector<16x64xf32>
    %c0_173 = arith.constant 0 : index
    %c0_174 = arith.constant 0 : index
    %289 = vector.load %arg24[%c0_173, %c0_174] : memref<1x64xf32, #tpu.memory_space<vmem>>, vector<1x64xf32>
    %290 = vector.broadcast %289 : vector<1x64xf32> to vector<16x64xf32>
    %291 = arith.addf %288, %290 : vector<16x64xf32>
    %cst_175 = arith.constant 0.000000e+00 : f32
    %292 = vector.broadcast %cst_175 : f32 to vector<16x64xf32>
    %293 = arith.maximumf %291, %292 : vector<16x64xf32>
    %c0_176 = arith.constant 0 : index
    %c0_177 = arith.constant 0 : index
    %294 = vector.load %arg25[%c0_176, %c0_177] : memref<64x32xf32, #tpu.memory_space<vmem>>, vector<64x32xf32>
    %cst_178 = arith.constant dense<0.000000e+00> : vector<16x32xf32>
    %295 = tpu.matmul %293, %294, %cst_178 {dimension_numbers = #tpu.dot_dimension_numbers<[1], [0], [0], [1], [0, 0, 1, 1], [], []>} : vector<16x64xf32>, vector<64x32xf32>, vector<16x32xf32> -> vector<16x32xf32>
    %c0_179 = arith.constant 0 : index
    %c0_180 = arith.constant 0 : index
    %296 = vector.load %arg26[%c0_179, %c0_180] : memref<1x32xf32, #tpu.memory_space<vmem>>, vector<1x32xf32>
    %297 = vector.broadcast %296 : vector<1x32xf32> to vector<16x32xf32>
    %298 = arith.addf %295, %297 : vector<16x32xf32>
    %299 = arith.addf %286, %298 : vector<16x32xf32>
    %c0_181 = arith.constant 0 : index
    %c0_182 = arith.constant 0 : index
    %300 = vector.load %arg27[%c0_181, %c0_182] : memref<1x32xf32, #tpu.memory_space<vmem>>, vector<1x32xf32>
    %c0_183 = arith.constant 0 : index
    %c0_184 = arith.constant 0 : index
    %301 = vector.load %arg28[%c0_183, %c0_184] : memref<1x32xf32, #tpu.memory_space<vmem>>, vector<1x32xf32>
    %cst_185 = arith.constant dense<0.000000e+00> : vector<16xf32>
    %302 = vector.multi_reduction <add>, %299, %cst_185 [1] : vector<16x32xf32> to vector<16xf32>
    %303 = vector.shape_cast %302 : vector<16xf32> to vector<16x1xf32>
    %cst_186 = arith.constant 3.200000e+01 : f32
    %304 = vector.broadcast %cst_186 : f32 to vector<16x1xf32>
    %305 = arith.divf %303, %304 : vector<16x1xf32>
    %306 = arith.mulf %299, %299 : vector<16x32xf32>
    %cst_187 = arith.constant dense<0.000000e+00> : vector<16xf32>
    %307 = vector.multi_reduction <add>, %306, %cst_187 [1] : vector<16x32xf32> to vector<16xf32>
    %308 = vector.shape_cast %307 : vector<16xf32> to vector<16x1xf32>
    %cst_188 = arith.constant 3.200000e+01 : f32
    %309 = vector.broadcast %cst_188 : f32 to vector<16x1xf32>
    %310 = arith.divf %308, %309 : vector<16x1xf32>
    %311 = arith.mulf %305, %305 : vector<16x1xf32>
    %312 = arith.subf %310, %311 : vector<16x1xf32>
    %313 = vector.broadcast %305 : vector<16x1xf32> to vector<16x32xf32>
    %314 = arith.subf %299, %313 : vector<16x32xf32>
    %cst_189 = arith.constant 9.99999974E-6 : f32
    %315 = vector.broadcast %cst_189 : f32 to vector<16x1xf32>
    %316 = arith.addf %312, %315 : vector<16x1xf32>
    %317 = math.rsqrt %316 : vector<16x1xf32>
    %318 = vector.broadcast %317 : vector<16x1xf32> to vector<16x32xf32>
    %319 = arith.mulf %314, %318 : vector<16x32xf32>
    %320 = vector.broadcast %300 : vector<1x32xf32> to vector<16x32xf32>
    %321 = arith.mulf %319, %320 : vector<16x32xf32>
    %322 = vector.broadcast %301 : vector<1x32xf32> to vector<16x32xf32>
    %323 = arith.addf %321, %322 : vector<16x32xf32>
    %c0_190 = arith.constant 0 : index
    %c0_191 = arith.constant 0 : index
    %c0_192 = arith.constant 0 : index
    %324 = vector.load %arg29[%c0_190, %c0_191, %c0_192] : memref<1x16x32xf32, #tpu.memory_space<vmem>>, vector<1x16x32xf32>
    %325 = vector.shape_cast %324 : vector<1x16x32xf32> to vector<16x32xf32>
    %326 = vector.shape_cast %323 : vector<16x32xf32> to vector<1x16x32xf32>
    tpu.vector_store %arg29[%c0_190, %c0_191, %c0_192], %326 {strides = array<i32>} : memref<1x16x32xf32, #tpu.memory_space<vmem>>, vector<1x16x32xf32>,
    return
  }
  func.func @transform_0(%arg0: i32) -> (i32, i32, i32) {
    %c0_i32 = arith.constant 0 : i32
    %c0_i32_0 = arith.constant 0 : i32
    %c0_i32_1 = arith.constant 0 : i32
    return %arg0, %c0_i32, %c0_i32_0 : i32, i32, i32
  }
  func.func @transform_1(%arg0: i32) -> (i32, i32, i32) {
    %c0_i32 = arith.constant 0 : i32
    %c0_i32_0 = arith.constant 0 : i32
    %c0_i32_1 = arith.constant 0 : i32
    return %arg0, %c0_i32, %c0_i32_0 : i32, i32, i32
  }
  func.func @transform_2(%arg0: i32) -> (i32, i32) {
    %c0_i32 = arith.constant 0 : i32
    %c0_i32_0 = arith.constant 0 : i32
    %c0_i32_1 = arith.constant 0 : i32
    return %c0_i32, %c0_i32_0 : i32, i32
  }
  func.func @transform_3(%arg0: i32) -> (i32, i32) {
    %c0_i32 = arith.constant 0 : i32
    %c0_i32_0 = arith.constant 0 : i32
    %c0_i32_1 = arith.constant 0 : i32
    return %c0_i32, %c0_i32_0 : i32, i32
  }
  func.func @transform_4(%arg0: i32) -> (i32, i32, i32) {
    %c0_i32 = arith.constant 0 : i32
    %c0_i32_0 = arith.constant 0 : i32
    %c0_i32_1 = arith.constant 0 : i32
    %c0_i32_2 = arith.constant 0 : i32
    return %c0_i32, %c0_i32_0, %c0_i32_1 : i32, i32, i32
  }
  func.func @transform_5(%arg0: i32) -> (i32, i32, i32) {
    %c0_i32 = arith.constant 0 : i32
    %c0_i32_0 = arith.constant 0 : i32
    %c0_i32_1 = arith.constant 0 : i32
    %c0_i32_2 = arith.constant 0 : i32
    return %c0_i32, %c0_i32_0, %c0_i32_1 : i32, i32, i32
  }
  func.func @transform_6(%arg0: i32) -> (i32, i32, i32) {
    %c0_i32 = arith.constant 0 : i32
    %c0_i32_0 = arith.constant 0 : i32
    %c0_i32_1 = arith.constant 0 : i32
    %c0_i32_2 = arith.constant 0 : i32
    return %c0_i32, %c0_i32_0, %c0_i32_1 : i32, i32, i32
  }
  func.func @transform_7(%arg0: i32) -> (i32, i32) {
    %c0_i32 = arith.constant 0 : i32
    %c0_i32_0 = arith.constant 0 : i32
    %c0_i32_1 = arith.constant 0 : i32
    return %c0_i32, %c0_i32_0 : i32, i32
  }
  func.func @transform_8(%arg0: i32) -> (i32, i32) {
    %c0_i32 = arith.constant 0 : i32
    %c0_i32_0 = arith.constant 0 : i32
    %c0_i32_1 = arith.constant 0 : i32
    return %c0_i32, %c0_i32_0 : i32, i32
  }
  func.func @transform_9(%arg0: i32) -> (i32, i32) {
    %c0_i32 = arith.constant 0 : i32
    %c0_i32_0 = arith.constant 0 : i32
    %c0_i32_1 = arith.constant 0 : i32
    return %c0_i32, %c0_i32_0 : i32, i32
  }
  func.func @transform_10(%arg0: i32) -> (i32, i32) {
    %c0_i32 = arith.constant 0 : i32
    %c0_i32_0 = arith.constant 0 : i32
    %c0_i32_1 = arith.constant 0 : i32
    return %c0_i32, %c0_i32_0 : i32, i32
  }
  func.func @transform_11(%arg0: i32) -> (i32, i32) {
    %c0_i32 = arith.constant 0 : i32
    %c0_i32_0 = arith.constant 0 : i32
    %c0_i32_1 = arith.constant 0 : i32
    return %c0_i32, %c0_i32_0 : i32, i32
  }
  func.func @transform_12(%arg0: i32) -> (i32, i32) {
    %c0_i32 = arith.constant 0 : i32
    %c0_i32_0 = arith.constant 0 : i32
    %c0_i32_1 = arith.constant 0 : i32
    return %c0_i32, %c0_i32_0 : i32, i32
  }
  func.func @transform_13(%arg0: i32) -> (i32, i32) {
    %c0_i32 = arith.constant 0 : i32
    %c0_i32_0 = arith.constant 0 : i32
    %c0_i32_1 = arith.constant 0 : i32
    return %c0_i32, %c0_i32_0 : i32, i32
  }
  func.func @transform_14(%arg0: i32) -> (i32, i32) {
    %c0_i32 = arith.constant 0 : i32
    %c0_i32_0 = arith.constant 0 : i32
    %c0_i32_1 = arith.constant 0 : i32
    return %c0_i32, %c0_i32_0 : i32, i32
  }
  func.func @transform_15(%arg0: i32) -> (i32, i32) {
    %c0_i32 = arith.constant 0 : i32
    %c0_i32_0 = arith.constant 0 : i32
    %c0_i32_1 = arith.constant 0 : i32
    return %c0_i32, %c0_i32_0 : i32, i32
  }
  func.func @transform_16(%arg0: i32) -> (i32, i32, i32) {
    %c0_i32 = arith.constant 0 : i32
    %c0_i32_0 = arith.constant 0 : i32
    %c0_i32_1 = arith.constant 0 : i32
    %c0_i32_2 = arith.constant 0 : i32
    return %c0_i32, %c0_i32_0, %c0_i32_1 : i32, i32, i32
  }
  func.func @transform_17(%arg0: i32) -> (i32, i32, i32) {
    %c0_i32 = arith.constant 0 : i32
    %c0_i32_0 = arith.constant 0 : i32
    %c0_i32_1 = arith.constant 0 : i32
    %c0_i32_2 = arith.constant 0 : i32
    return %c0_i32, %c0_i32_0, %c0_i32_1 : i32, i32, i32
  }
  func.func @transform_18(%arg0: i32) -> (i32, i32, i32) {
    %c0_i32 = arith.constant 0 : i32
    %c0_i32_0 = arith.constant 0 : i32
    %c0_i32_1 = arith.constant 0 : i32
    %c0_i32_2 = arith.constant 0 : i32
    return %c0_i32, %c0_i32_0, %c0_i32_1 : i32, i32, i32
  }
  func.func @transform_19(%arg0: i32) -> (i32, i32) {
    %c0_i32 = arith.constant 0 : i32
    %c0_i32_0 = arith.constant 0 : i32
    %c0_i32_1 = arith.constant 0 : i32
    return %c0_i32, %c0_i32_0 : i32, i32
  }
  func.func @transform_20(%arg0: i32) -> (i32, i32) {
    %c0_i32 = arith.constant 0 : i32
    %c0_i32_0 = arith.constant 0 : i32
    %c0_i32_1 = arith.constant 0 : i32
    return %c0_i32, %c0_i32_0 : i32, i32
  }
  func.func @transform_21(%arg0: i32) -> (i32, i32) {
    %c0_i32 = arith.constant 0 : i32
    %c0_i32_0 = arith.constant 0 : i32
    %c0_i32_1 = arith.constant 0 : i32
    return %c0_i32, %c0_i32_0 : i32, i32
  }
  func.func @transform_22(%arg0: i32) -> (i32, i32) {
    %c0_i32 = arith.constant 0 : i32
    %c0_i32_0 = arith.constant 0 : i32
    %c0_i32_1 = arith.constant 0 : i32
    return %c0_i32, %c0_i32_0 : i32, i32
  }
  func.func @transform_23(%arg0: i32) -> (i32, i32) {
    %c0_i32 = arith.constant 0 : i32
    %c0_i32_0 = arith.constant 0 : i32
    %c0_i32_1 = arith.constant 0 : i32
    return %c0_i32, %c0_i32_0 : i32, i32
  }
  func.func @transform_24(%arg0: i32) -> (i32, i32) {
    %c0_i32 = arith.constant 0 : i32
    %c0_i32_0 = arith.constant 0 : i32
    %c0_i32_1 = arith.constant 0 : i32
    return %c0_i32, %c0_i32_0 : i32, i32
  }
  func.func @transform_25(%arg0: i32) -> (i32, i32) {
    %c0_i32 = arith.constant 0 : i32
    %c0_i32_0 = arith.constant 0 : i32
    %c0_i32_1 = arith.constant 0 : i32
    return %c0_i32, %c0_i32_0 : i32, i32
  }
  func.func @transform_26(%arg0: i32) -> (i32, i32) {
    %c0_i32 = arith.constant 0 : i32
    %c0_i32_0 = arith.constant 0 : i32
    %c0_i32_1 = arith.constant 0 : i32
    return %c0_i32, %c0_i32_0 : i32, i32
  }
  func.func @transform_27(%arg0: i32) -> (i32, i32) {
    %c0_i32 = arith.constant 0 : i32
    %c0_i32_0 = arith.constant 0 : i32
    %c0_i32_1 = arith.constant 0 : i32
    return %c0_i32, %c0_i32_0 : i32, i32
  }
  func.func @transform_28(%arg0: i32) -> (i32, i32, i32) {
    %c0_i32 = arith.constant 0 : i32
    %c0_i32_0 = arith.constant 0 : i32
    %c0_i32_1 = arith.constant 0 : i32
    return %arg0, %c0_i32, %c0_i32_0 : i32, i32, i32
  }
}

</mosaic_0001>

<llo_original>
// kernel: forward.1
$region0: #{forward.1}
  #allocation0 [shape = 'u32[]', space=smem, size = 0x4, offset = 0x4, fixed_abs, tag = 'smem constant byte address 0x4 - core index']
  #allocation1 [shape = 'u32[144,128]{1,0:T(1,128)}', space=vmem, size = 0x12000, scoped, tag = 'internal scratch']
  %s0 = inlined_call_operand.vmem [shape: f32[2,16,32], index: 0, kind: input, shape index: {}]
  %s1 = inlined_call_operand.vmem [shape: f32[2,16,32], index: 1, kind: input, shape index: {}]
  %s2 = inlined_call_operand.vmem [shape: f32[16,16], index: 2, kind: input, shape index: {}]
  %s3 = inlined_call_operand.vmem [shape: f32[32,32], index: 3, kind: input, shape index: {}]
  %s4 = inlined_call_operand.vmem [shape: f32[4,32,32], index: 4, kind: input, shape index: {}]
  %s5 = inlined_call_operand.vmem [shape: f32[4,1,32], index: 5, kind: input, shape index: {}]
  %s6 = inlined_call_operand.vmem [shape: f32[4,32,32], index: 6, kind: input, shape index: {}]
  %s7 = inlined_call_operand.vmem [shape: f32[1,32], index: 7, kind: input, shape index: {}]
  %s8 = inlined_call_operand.vmem [shape: f32[1,32], index: 8, kind: input, shape index: {}]
  %s9 = inlined_call_operand.vmem [shape: f32[1,32], index: 9, kind: input, shape index: {}]
  %s10 = inlined_call_operand.vmem [shape: f32[32,64], index: 10, kind: input, shape index: {}]
  %s11 = inlined_call_operand.vmem [shape: f32[1,64], index: 11, kind: input, shape index: {}]
  %s12 = inlined_call_operand.vmem [shape: f32[64,32], index: 12, kind: input, shape index: {}]
  %s13 = inlined_call_operand.vmem [shape: f32[1,32], index: 13, kind: input, shape index: {}]
  %s14 = inlined_call_operand.vmem [shape: f32[1,32], index: 14, kind: input, shape index: {}]
  %s15 = inlined_call_operand.vmem [shape: f32[1,32], index: 15, kind: input, shape index: {}]
  %s16 = inlined_call_operand.vmem [shape: f32[4,32,32], index: 16, kind: input, shape index: {}]
  %s17 = inlined_call_operand.vmem [shape: f32[4,1,32], index: 17, kind: input, shape index: {}]
  %s18 = inlined_call_operand.vmem [shape: f32[4,32,32], index: 18, kind: input, shape index: {}]
  %s19 = inlined_call_operand.vmem [shape: f32[1,32], index: 19, kind: input, shape index: {}]
  %s20 = inlined_call_operand.vmem [shape: f32[1,32], index: 20, kind: input, shape index: {}]
  %s21 = inlined_call_operand.vmem [shape: f32[1,32], index: 21, kind: input, shape index: {}]
  %s22 = inlined_call_operand.vmem [shape: f32[32,64], index: 22, kind: input, shape index: {}]
  %s23 = inlined_call_operand.vmem [shape: f32[1,64], index: 23, kind: input, shape index: {}]
  %s24 = inlined_call_operand.vmem [shape: f32[64,32], index: 24, kind: input, shape index: {}]
  %s25 = inlined_call_operand.vmem [shape: f32[1,32], index: 25, kind: input, shape index: {}]
  %s26 = inlined_call_operand.vmem [shape: f32[1,32], index: 26, kind: input, shape index: {}]
  %s27 = inlined_call_operand.vmem [shape: f32[1,32], index: 27, kind: input, shape index: {}]
  %s28 = inlined_call_operand.vmem [shape: f32[2,16,32], index: 28, kind: output, shape index: {}]
  %s29 = sld [smem:[#allocation0]]
  $region145: #{forward.1} parent=0
    _
  %s31 = ssub.s32 1, %s29
  %s32 = scalar_select 0, %s31, %s29
  loop: start=0, step=1, limit=4
  $region2: #{forward.1} parent=0 // loop_pre_header
    _
  $region3: #{forward.1} parent=0 // loop_header
    %s34 = sphi 0, %s38
    %p35 = scmp.ge.s32.totalorder %s34, 4
    %s44 = sphi 0, %s46
    %s47 = sphi 0, %s44
    %s48 = sphi 0, %s47
    %s64 = sphi 0, %s48
    %s70 = sphi 0, %s72
    %s73 = sphi 0, %s70
    %s74 = sphi 0, %s73
    %s90 = sphi 0, %s74
    %s94 = sphi 0, %s94
    %s96 = sphi 0, %s94
    %s97 = sphi 0, %s96
    %s111 = sphi 0, %s97
    %s115 = sphi 0, %s115
    %s117 = sphi 0, %s115
    %s118 = sphi 0, %s117
    %s132 = sphi 0, %s118
    %s136 = sphi 0, %s136
    %s138 = sphi 0, %s136
    %s139 = sphi 0, %s138
    %s153 = sphi 0, %s139
    %s157 = sphi 0, %s157
    %s159 = sphi 0, %s157
    %s160 = sphi 0, %s159
    %s174 = sphi 0, %s160
    %s178 = sphi 0, %s178
    %s180 = sphi 0, %s178
    %s181 = sphi 0, %s180
    %s195 = sphi 0, %s181
    %s199 = sphi 0, %s199
    %s201 = sphi 0, %s199
    %s202 = sphi 0, %s201
    %s216 = sphi 0, %s202
    %s220 = sphi 0, %s220
    %s222 = sphi 0, %s220
    %s223 = sphi 0, %s222
    %s237 = sphi 0, %s223
    %s241 = sphi 0, %s241
    %s243 = sphi 0, %s241
    %s244 = sphi 0, %s243
    %s258 = sphi 0, %s244
    %s262 = sphi 0, %s262
    %s264 = sphi 0, %s262
    %s265 = sphi 0, %s264
    %s279 = sphi 0, %s265
    %s283 = sphi 0, %s283
    %s285 = sphi 0, %s283
    %s286 = sphi 0, %s285
    %s300 = sphi 0, %s286
    %s304 = sphi 0, %s304
    %s306 = sphi 0, %s304
    %s307 = sphi 0, %s306
    %s321 = sphi 0, %s307
    %s325 = sphi 0, %s325
    %s327 = sphi 0, %s325
    %s328 = sphi 0, %s327
    %s342 = sphi 0, %s328
    %s346 = sphi 0, %s346
    %s348 = sphi 0, %s346
    %s349 = sphi 0, %s348
    %s363 = sphi 0, %s349
    %s367 = sphi 0, %s367
    %s369 = sphi 0, %s367
    %s370 = sphi 0, %s369
    %s384 = sphi 0, %s370
    %s388 = sphi 0, %s388
    %s390 = sphi 0, %s388
    %s391 = sphi 0, %s390
    %s405 = sphi 0, %s391
    %s409 = sphi 0, %s409
    %s411 = sphi 0, %s409
    %s412 = sphi 0, %s411
    %s426 = sphi 0, %s412
    %s430 = sphi 0, %s430
    %s432 = sphi 0, %s430
    %s433 = sphi 0, %s432
    %s447 = sphi 0, %s433
    %s451 = sphi 0, %s451
    %s453 = sphi 0, %s451
    %s454 = sphi 0, %s453
    %s468 = sphi 0, %s454
    %s472 = sphi 0, %s472
    %s474 = sphi 0, %s472
    %s475 = sphi 0, %s474
    %s489 = sphi 0, %s475
    %s493 = sphi 0, %s493
    %s495 = sphi 0, %s493
    %s496 = sphi 0, %s495
    %s510 = sphi 0, %s496
    %s514 = sphi 0, %s514
    %s516 = sphi 0, %s514
    %s517 = sphi 0, %s516
    %s531 = sphi 0, %s517
    %s535 = sphi 0, %s535
    %s537 = sphi 0, %s535
    %s538 = sphi 0, %s537
    %s552 = sphi 0, %s538
    %s556 = sphi 0, %s556
    %s558 = sphi 0, %s556
    %s559 = sphi 0, %s558
    %s573 = sphi 0, %s559
    %s577 = sphi 0, %s577
    %s579 = sphi 0, %s577
    %s580 = sphi 0, %s579
    %s594 = sphi 0, %s580
    %s598 = sphi 0, %s598
    %s600 = sphi 0, %s598
    %s601 = sphi 0, %s600
    %s615 = sphi 0, %s601
    %s619 = sphi 0, %s619
    %s621 = sphi 0, %s619
    %s622 = sphi 0, %s621
    %s636 = sphi 0, %s622
    %s642 = sphi 0, %s644
    %s645 = sphi 0, %s642
    %s646 = sphi 0, %s645
    %s662 = sphi 0, %s646
  $region4: #{forward.1} parent=0 // loop_header_branch
    %37 = sbr.rel (%p35) target = $region8
  $region5: #{forward.1} parent=0 // loop_body
    %s39 = ssub.s32 %s34, 1
    %s40 = ssub.s32 %s34, 2
    %s41 = sadd.s32 %s34, 1
    %s42 = ssub.s32 %s34, %s41
    %p43 = scmp.eq.s32.totalorder %s42, 0
    %s45 = sadd.s32 %s44, 1
    %s46 = scalar_select %p43, %s44, %s45
    %p49 = pneg %p43
    %p50 = scmp.eq.s32.totalorder %s34, 1
    %p51 = por %p49, %p50
    %p52 = scmp.ne.s32.totalorder %s44, %s47
    %p53 = scmp.eq.s32.totalorder %s34, 0
    %p54 = por %p52, %p53
    %p55 = scmp.ne.s32.totalorder %s44, %s47
    %p56 = scmp.eq.s32.totalorder %s39, 1
    %p57 = por %p55, %p56
    %p58 = scmp.ne.s32.totalorder %s47, %s48
    %p59 = scmp.eq.s32.totalorder %s39, 0
    %p60 = por %p58, %p59
    %p61 = scmp.ne.s32.totalorder %s47, %s48
    %p62 = scmp.eq.s32.totalorder %s40, 1
    %p63 = por %p61, %p62
    %p65 = scmp.ne.s32.totalorder %s48, %s64
    %p66 = scmp.eq.s32.totalorder %s40, 0
    %p67 = por %p65, %p66
    %s68 = ssub.s32 %s34, %s41
    %p69 = scmp.eq.s32.totalorder %s68, 0
    %s71 = sadd.s32 %s70, 1
    %s72 = scalar_select %p69, %s70, %s71
    %p75 = pneg %p69
    %p76 = scmp.eq.s32.totalorder %s34, 1
    %p77 = por %p75, %p76
    %p78 = scmp.ne.s32.totalorder %s70, %s73
    %p79 = scmp.eq.s32.totalorder %s34, 0
    %p80 = por %p78, %p79
    %p81 = scmp.ne.s32.totalorder %s70, %s73
    %p82 = scmp.eq.s32.totalorder %s39, 1
    %p83 = por %p81, %p82
    %p84 = scmp.ne.s32.totalorder %s73, %s74
    %p85 = scmp.eq.s32.totalorder %s39, 0
    %p86 = por %p84, %p85
    %p87 = scmp.ne.s32.totalorder %s73, %s74
    %p88 = scmp.eq.s32.totalorder %s40, 1
    %p89 = por %p87, %p88
    %p91 = scmp.ne.s32.totalorder %s74, %s90
    %p92 = scmp.eq.s32.totalorder %s40, 0
    %p93 = por %p91, %p92
    %s95 = sadd.s32 %s94, 1
    %p98 = scmp.eq.s32.totalorder %s34, 1
    %p99 = scmp.ne.s32.totalorder %s94, %s96
    %p100 = scmp.eq.s32.totalorder %s34, 0
    %p101 = por %p99, %p100
    %p102 = scmp.ne.s32.totalorder %s94, %s96
    %p103 = scmp.eq.s32.totalorder %s39, 1
    %p104 = por %p102, %p103
    %p105 = scmp.ne.s32.totalorder %s96, %s97
    %p106 = scmp.eq.s32.totalorder %s39, 0
    %p107 = por %p105, %p106
    %p108 = scmp.ne.s32.totalorder %s96, %s97
    %p109 = scmp.eq.s32.totalorder %s40, 1
    %p110 = por %p108, %p109
    %p112 = scmp.ne.s32.totalorder %s97, %s111
    %p113 = scmp.eq.s32.totalorder %s40, 0
    %p114 = por %p112, %p113
    %s116 = sadd.s32 %s115, 1
    %p119 = scmp.eq.s32.totalorder %s34, 1
    %p120 = scmp.ne.s32.totalorder %s115, %s117
    %p121 = scmp.eq.s32.totalorder %s34, 0
    %p122 = por %p120, %p121
    %p123 = scmp.ne.s32.totalorder %s115, %s117
    %p124 = scmp.eq.s32.totalorder %s39, 1
    %p125 = por %p123, %p124
    %p126 = scmp.ne.s32.totalorder %s117, %s118
    %p127 = scmp.eq.s32.totalorder %s39, 0
    %p128 = por %p126, %p127
    %p129 = scmp.ne.s32.totalorder %s117, %s118
    %p130 = scmp.eq.s32.totalorder %s40, 1
    %p131 = por %p129, %p130
    %p133 = scmp.ne.s32.totalorder %s118, %s132
    %p134 = scmp.eq.s32.totalorder %s40, 0
    %p135 = por %p133, %p134
    %s137 = sadd.s32 %s136, 1
    %p140 = scmp.eq.s32.totalorder %s34, 1
    %p141 = scmp.ne.s32.totalorder %s136, %s138
    %p142 = scmp.eq.s32.totalorder %s34, 0
    %p143 = por %p141, %p142
    %p144 = scmp.ne.s32.totalorder %s136, %s138
    %p145 = scmp.eq.s32.totalorder %s39, 1
    %p146 = por %p144, %p145
    %p147 = scmp.ne.s32.totalorder %s138, %s139
    %p148 = scmp.eq.s32.totalorder %s39, 0
    %p149 = por %p147, %p148
    %p150 = scmp.ne.s32.totalorder %s138, %s139
    %p151 = scmp.eq.s32.totalorder %s40, 1
    %p152 = por %p150, %p151
    %p154 = scmp.ne.s32.totalorder %s139, %s153
    %p155 = scmp.eq.s32.totalorder %s40, 0
    %p156 = por %p154, %p155
    %s158 = sadd.s32 %s157, 1
    %p161 = scmp.eq.s32.totalorder %s34, 1
    %p162 = scmp.ne.s32.totalorder %s157, %s159
    %p163 = scmp.eq.s32.totalorder %s34, 0
    %p164 = por %p162, %p163
    %p165 = scmp.ne.s32.totalorder %s157, %s159
    %p166 = scmp.eq.s32.totalorder %s39, 1
    %p167 = por %p165, %p166
    %p168 = scmp.ne.s32.totalorder %s159, %s160
    %p169 = scmp.eq.s32.totalorder %s39, 0
    %p170 = por %p168, %p169
    %p171 = scmp.ne.s32.totalorder %s159, %s160
    %p172 = scmp.eq.s32.totalorder %s40, 1
    %p173 = por %p171, %p172
    %p175 = scmp.ne.s32.totalorder %s160, %s174
    %p176 = scmp.eq.s32.totalorder %s40, 0
    %p177 = por %p175, %p176
    %s179 = sadd.s32 %s178, 1
    %p182 = scmp.eq.s32.totalorder %s34, 1
    %p183 = scmp.ne.s32.totalorder %s178, %s180
    %p184 = scmp.eq.s32.totalorder %s34, 0
    %p185 = por %p183, %p184
    %p186 = scmp.ne.s32.totalorder %s178, %s180
    %p187 = scmp.eq.s32.totalorder %s39, 1
    %p188 = por %p186, %p187
    %p189 = scmp.ne.s32.totalorder %s180, %s181
    %p190 = scmp.eq.s32.totalorder %s39, 0
    %p191 = por %p189, %p190
    %p192 = scmp.ne.s32.totalorder %s180, %s181
    %p193 = scmp.eq.s32.totalorder %s40, 1
    %p194 = por %p192, %p193
    %p196 = scmp.ne.s32.totalorder %s181, %s195
    %p197 = scmp.eq.s32.totalorder %s40, 0
    %p198 = por %p196, %p197
    %s200 = sadd.s32 %s199, 1
    %p203 = scmp.eq.s32.totalorder %s34, 1
    %p204 = scmp.ne.s32.totalorder %s199, %s201
    %p205 = scmp.eq.s32.totalorder %s34, 0
    %p206 = por %p204, %p205
    %p207 = scmp.ne.s32.totalorder %s199, %s201
    %p208 = scmp.eq.s32.totalorder %s39, 1
    %p209 = por %p207, %p208
    %p210 = scmp.ne.s32.totalorder %s201, %s202
    %p211 = scmp.eq.s32.totalorder %s39, 0
    %p212 = por %p210, %p211
    %p213 = scmp.ne.s32.totalorder %s201, %s202
    %p214 = scmp.eq.s32.totalorder %s40, 1
    %p215 = por %p213, %p214
    %p217 = scmp.ne.s32.totalorder %s202, %s216
    %p218 = scmp.eq.s32.totalorder %s40, 0
    %p219 = por %p217, %p218
    %s221 = sadd.s32 %s220, 1
    %p224 = scmp.eq.s32.totalorder %s34, 1
    %p225 = scmp.ne.s32.totalorder %s220, %s222
    %p226 = scmp.eq.s32.totalorder %s34, 0
    %p227 = por %p225, %p226
    %p228 = scmp.ne.s32.totalorder %s220, %s222
    %p229 = scmp.eq.s32.totalorder %s39, 1
    %p230 = por %p228, %p229
    %p231 = scmp.ne.s32.totalorder %s222, %s223
    %p232 = scmp.eq.s32.totalorder %s39, 0
    %p233 = por %p231, %p232
    %p234 = scmp.ne.s32.totalorder %s222, %s223
    %p235 = scmp.eq.s32.totalorder %s40, 1
    %p236 = por %p234, %p235
    %p238 = scmp.ne.s32.totalorder %s223, %s237
    %p239 = scmp.eq.s32.totalorder %s40, 0
    %p240 = por %p238, %p239
    %s242 = sadd.s32 %s241, 1
    %p245 = scmp.eq.s32.totalorder %s34, 1
    %p246 = scmp.ne.s32.totalorder %s241, %s243
    %p247 = scmp.eq.s32.totalorder %s34, 0
    %p248 = por %p246, %p247
    %p249 = scmp.ne.s32.totalorder %s241, %s243
    %p250 = scmp.eq.s32.totalorder %s39, 1
    %p251 = por %p249, %p250
    %p252 = scmp.ne.s32.totalorder %s243, %s244
    %p253 = scmp.eq.s32.totalorder %s39, 0
    %p254 = por %p252, %p253
    %p255 = scmp.ne.s32.totalorder %s243, %s244
    %p256 = scmp.eq.s32.totalorder %s40, 1
    %p257 = por %p255, %p256
    %p259 = scmp.ne.s32.totalorder %s244, %s258
    %p260 = scmp.eq.s32.totalorder %s40, 0
    %p261 = por %p259, %p260
    %s263 = sadd.s32 %s262, 1
    %p266 = scmp.eq.s32.totalorder %s34, 1
    %p267 = scmp.ne.s32.totalorder %s262, %s264
    %p268 = scmp.eq.s32.totalorder %s34, 0
    %p269 = por %p267, %p268
    %p270 = scmp.ne.s32.totalorder %s262, %s264
    %p271 = scmp.eq.s32.totalorder %s39, 1
    %p272 = por %p270, %p271
    %p273 = scmp.ne.s32.totalorder %s264, %s265
    %p274 = scmp.eq.s32.totalorder %s39, 0
    %p275 = por %p273, %p274
    %p276 = scmp.ne.s32.totalorder %s264, %s265
    %p277 = scmp.eq.s32.totalorder %s40, 1
    %p278 = por %p276, %p277
    %p280 = scmp.ne.s32.totalorder %s265, %s279
    %p281 = scmp.eq.s32.totalorder %s40, 0
    %p282 = por %p280, %p281
    %s284 = sadd.s32 %s283, 1
    %p287 = scmp.eq.s32.totalorder %s34, 1
    %p288 = scmp.ne.s32.totalorder %s283, %s285
    %p289 = scmp.eq.s32.totalorder %s34, 0
    %p290 = por %p288, %p289
    %p291 = scmp.ne.s32.totalorder %s283, %s285
    %p292 = scmp.eq.s32.totalorder %s39, 1
    %p293 = por %p291, %p292
    %p294 = scmp.ne.s32.totalorder %s285, %s286
    %p295 = scmp.eq.s32.totalorder %s39, 0
    %p296 = por %p294, %p295
    %p297 = scmp.ne.s32.totalorder %s285, %s286
    %p298 = scmp.eq.s32.totalorder %s40, 1
    %p299 = por %p297, %p298
    %p301 = scmp.ne.s32.totalorder %s286, %s300
    %p302 = scmp.eq.s32.totalorder %s40, 0
    %p303 = por %p301, %p302
    %s305 = sadd.s32 %s304, 1
    %p308 = scmp.eq.s32.totalorder %s34, 1
    %p309 = scmp.ne.s32.totalorder %s304, %s306
    %p310 = scmp.eq.s32.totalorder %s34, 0
    %p311 = por %p309, %p310
    %p312 = scmp.ne.s32.totalorder %s304, %s306
    %p313 = scmp.eq.s32.totalorder %s39, 1
    %p314 = por %p312, %p313
    %p315 = scmp.ne.s32.totalorder %s306, %s307
    %p316 = scmp.eq.s32.totalorder %s39, 0
    %p317 = por %p315, %p316
    %p318 = scmp.ne.s32.totalorder %s306, %s307
    %p319 = scmp.eq.s32.totalorder %s40, 1
    %p320 = por %p318, %p319
    %p322 = scmp.ne.s32.totalorder %s307, %s321
    %p323 = scmp.eq.s32.totalorder %s40, 0
    %p324 = por %p322, %p323
    %s326 = sadd.s32 %s325, 1
    %p329 = scmp.eq.s32.totalorder %s34, 1
    %p330 = scmp.ne.s32.totalorder %s325, %s327
    %p331 = scmp.eq.s32.totalorder %s34, 0
    %p332 = por %p330, %p331
    %p333 = scmp.ne.s32.totalorder %s325, %s327
    %p334 = scmp.eq.s32.totalorder %s39, 1
    %p335 = por %p333, %p334
    %p336 = scmp.ne.s32.totalorder %s327, %s328
    %p337 = scmp.eq.s32.totalorder %s39, 0
    %p338 = por %p336, %p337
    %p339 = scmp.ne.s32.totalorder %s327, %s328
    %p340 = scmp.eq.s32.totalorder %s40, 1
    %p341 = por %p339, %p340
    %p343 = scmp.ne.s32.totalorder %s328, %s342
    %p344 = scmp.eq.s32.totalorder %s40, 0
    %p345 = por %p343, %p344
    %s347 = sadd.s32 %s346, 1
    %p350 = scmp.eq.s32.totalorder %s34, 1
    %p351 = scmp.ne.s32.totalorder %s346, %s348
    %p352 = scmp.eq.s32.totalorder %s34, 0
    %p353 = por %p351, %p352
    %p354 = scmp.ne.s32.totalorder %s346, %s348
    %p355 = scmp.eq.s32.totalorder %s39, 1
    %p356 = por %p354, %p355
    %p357 = scmp.ne.s32.totalorder %s348, %s349
    %p358 = scmp.eq.s32.totalorder %s39, 0
    %p359 = por %p357, %p358
    %p360 = scmp.ne.s32.totalorder %s348, %s349
    %p361 = scmp.eq.s32.totalorder %s40, 1
    %p362 = por %p360, %p361
    %p364 = scmp.ne.s32.totalorder %s349, %s363
    %p365 = scmp.eq.s32.totalorder %s40, 0
    %p366 = por %p364, %p365
    %s368 = sadd.s32 %s367, 1
    %p371 = scmp.eq.s32.totalorder %s34, 1
    %p372 = scmp.ne.s32.totalorder %s367, %s369
    %p373 = scmp.eq.s32.totalorder %s34, 0
    %p374 = por %p372, %p373
    %p375 = scmp.ne.s32.totalorder %s367, %s369
    %p376 = scmp.eq.s32.totalorder %s39, 1
    %p377 = por %p375, %p376
    %p378 = scmp.ne.s32.totalorder %s369, %s370
    %p379 = scmp.eq.s32.totalorder %s39, 0
    %p380 = por %p378, %p379
    %p381 = scmp.ne.s32.totalorder %s369, %s370
    %p382 = scmp.eq.s32.totalorder %s40, 1
    %p383 = por %p381, %p382
    %p385 = scmp.ne.s32.totalorder %s370, %s384
    %p386 = scmp.eq.s32.totalorder %s40, 0
    %p387 = por %p385, %p386
    %s389 = sadd.s32 %s388, 1
    %p392 = scmp.eq.s32.totalorder %s34, 1
    %p393 = scmp.ne.s32.totalorder %s388, %s390
    %p394 = scmp.eq.s32.totalorder %s34, 0
    %p395 = por %p393, %p394
    %p396 = scmp.ne.s32.totalorder %s388, %s390
    %p397 = scmp.eq.s32.totalorder %s39, 1
    %p398 = por %p396, %p397
    %p399 = scmp.ne.s32.totalorder %s390, %s391
    %p400 = scmp.eq.s32.totalorder %s39, 0
    %p401 = por %p399, %p400
    %p402 = scmp.ne.s32.totalorder %s390, %s391
    %p403 = scmp.eq.s32.totalorder %s40, 1
    %p404 = por %p402, %p403
    %p406 = scmp.ne.s32.totalorder %s391, %s405
    %p407 = scmp.eq.s32.totalorder %s40, 0
    %p408 = por %p406, %p407
    %s410 = sadd.s32 %s409, 1
    %p413 = scmp.eq.s32.totalorder %s34, 1
    %p414 = scmp.ne.s32.totalorder %s409, %s411
    %p415 = scmp.eq.s32.totalorder %s34, 0
    %p416 = por %p414, %p415
    %p417 = scmp.ne.s32.totalorder %s409, %s411
    %p418 = scmp.eq.s32.totalorder %s39, 1
    %p419 = por %p417, %p418
    %p420 = scmp.ne.s32.totalorder %s411, %s412
    %p421 = scmp.eq.s32.totalorder %s39, 0
    %p422 = por %p420, %p421
    %p423 = scmp.ne.s32.totalorder %s411, %s412
    %p424 = scmp.eq.s32.totalorder %s40, 1
    %p425 = por %p423, %p424
    %p427 = scmp.ne.s32.totalorder %s412, %s426
    %p428 = scmp.eq.s32.totalorder %s40, 0
    %p429 = por %p427, %p428
    %s431 = sadd.s32 %s430, 1
    %p434 = scmp.eq.s32.totalorder %s34, 1
    %p435 = scmp.ne.s32.totalorder %s430, %s432
    %p436 = scmp.eq.s32.totalorder %s34, 0
    %p437 = por %p435, %p436
    %p438 = scmp.ne.s32.totalorder %s430, %s432
    %p439 = scmp.eq.s32.totalorder %s39, 1
    %p440 = por %p438, %p439
    %p441 = scmp.ne.s32.totalorder %s432, %s433
    %p442 = scmp.eq.s32.totalorder %s39, 0
    %p443 = por %p441, %p442
    %p444 = scmp.ne.s32.totalorder %s432, %s433
    %p445 = scmp.eq.s32.totalorder %s40, 1
    %p446 = por %p444, %p445
    %p448 = scmp.ne.s32.totalorder %s433, %s447
    %p449 = scmp.eq.s32.totalorder %s40, 0
    %p450 = por %p448, %p449
    %s452 = sadd.s32 %s451, 1
    %p455 = scmp.eq.s32.totalorder %s34, 1
    %p456 = scmp.ne.s32.totalorder %s451, %s453
    %p457 = scmp.eq.s32.totalorder %s34, 0
    %p458 = por %p456, %p457
    %p459 = scmp.ne.s32.totalorder %s451, %s453
    %p460 = scmp.eq.s32.totalorder %s39, 1
    %p461 = por %p459, %p460
    %p462 = scmp.ne.s32.totalorder %s453, %s454
    %p463 = scmp.eq.s32.totalorder %s39, 0
    %p464 = por %p462, %p463
    %p465 = scmp.ne.s32.totalorder %s453, %s454
    %p466 = scmp.eq.s32.totalorder %s40, 1
    %p467 = por %p465, %p466
    %p469 = scmp.ne.s32.totalorder %s454, %s468
    %p470 = scmp.eq.s32.totalorder %s40, 0
    %p471 = por %p469, %p470
    %s473 = sadd.s32 %s472, 1
    %p476 = scmp.eq.s32.totalorder %s34, 1
    %p477 = scmp.ne.s32.totalorder %s472, %s474
    %p478 = scmp.eq.s32.totalorder %s34, 0
    %p479 = por %p477, %p478
    %p480 = scmp.ne.s32.totalorder %s472, %s474
    %p481 = scmp.eq.s32.totalorder %s39, 1
    %p482 = por %p480, %p481
    %p483 = scmp.ne.s32.totalorder %s474, %s475
    %p484 = scmp.eq.s32.totalorder %s39, 0
    %p485 = por %p483, %p484
    %p486 = scmp.ne.s32.totalorder %s474, %s475
    %p487 = scmp.eq.s32.totalorder %s40, 1
    %p488 = por %p486, %p487
    %p490 = scmp.ne.s32.totalorder %s475, %s489
    %p491 = scmp.eq.s32.totalorder %s40, 0
    %p492 = por %p490, %p491
    %s494 = sadd.s32 %s493, 1
    %p497 = scmp.eq.s32.totalorder %s34, 1
    %p498 = scmp.ne.s32.totalorder %s493, %s495
    %p499 = scmp.eq.s32.totalorder %s34, 0
    %p500 = por %p498, %p499
    %p501 = scmp.ne.s32.totalorder %s493, %s495
    %p502 = scmp.eq.s32.totalorder %s39, 1
    %p503 = por %p501, %p502
    %p504 = scmp.ne.s32.totalorder %s495, %s496
    %p505 = scmp.eq.s32.totalorder %s39, 0
    %p506 = por %p504, %p505
    %p507 = scmp.ne.s32.totalorder %s495, %s496
    %p508 = scmp.eq.s32.totalorder %s40, 1
    %p509 = por %p507, %p508
    %p511 = scmp.ne.s32.totalorder %s496, %s510
    %p512 = scmp.eq.s32.totalorder %s40, 0
    %p513 = por %p511, %p512
    %s515 = sadd.s32 %s514, 1
    %p518 = scmp.eq.s32.totalorder %s34, 1
    %p519 = scmp.ne.s32.totalorder %s514, %s516
    %p520 = scmp.eq.s32.totalorder %s34, 0
    %p521 = por %p519, %p520
    %p522 = scmp.ne.s32.totalorder %s514, %s516
    %p523 = scmp.eq.s32.totalorder %s39, 1
    %p524 = por %p522, %p523
    %p525 = scmp.ne.s32.totalorder %s516, %s517
    %p526 = scmp.eq.s32.totalorder %s39, 0
    %p527 = por %p525, %p526
    %p528 = scmp.ne.s32.totalorder %s516, %s517
    %p529 = scmp.eq.s32.totalorder %s40, 1
    %p530 = por %p528, %p529
    %p532 = scmp.ne.s32.totalorder %s517, %s531
    %p533 = scmp.eq.s32.totalorder %s40, 0
    %p534 = por %p532, %p533
    %s536 = sadd.s32 %s535, 1
    %p539 = scmp.eq.s32.totalorder %s34, 1
    %p540 = scmp.ne.s32.totalorder %s535, %s537
    %p541 = scmp.eq.s32.totalorder %s34, 0
    %p542 = por %p540, %p541
    %p543 = scmp.ne.s32.totalorder %s535, %s537
    %p544 = scmp.eq.s32.totalorder %s39, 1
    %p545 = por %p543, %p544
    %p546 = scmp.ne.s32.totalorder %s537, %s538
    %p547 = scmp.eq.s32.totalorder %s39, 0
    %p548 = por %p546, %p547
    %p549 = scmp.ne.s32.totalorder %s537, %s538
    %p550 = scmp.eq.s32.totalorder %s40, 1
    %p551 = por %p549, %p550
    %p553 = scmp.ne.s32.totalorder %s538, %s552
    %p554 = scmp.eq.s32.totalorder %s40, 0
    %p555 = por %p553, %p554
    %s557 = sadd.s32 %s556, 1
    %p560 = scmp.eq.s32.totalorder %s34, 1
    %p561 = scmp.ne.s32.totalorder %s556, %s558
    %p562 = scmp.eq.s32.totalorder %s34, 0
    %p563 = por %p561, %p562
    %p564 = scmp.ne.s32.totalorder %s556, %s558
    %p565 = scmp.eq.s32.totalorder %s39, 1
    %p566 = por %p564, %p565
    %p567 = scmp.ne.s32.totalorder %s558, %s559
    %p568 = scmp.eq.s32.totalorder %s39, 0
    %p569 = por %p567, %p568
    %p570 = scmp.ne.s32.totalorder %s558, %s559
    %p571 = scmp.eq.s32.totalorder %s40, 1
    %p572 = por %p570, %p571
    %p574 = scmp.ne.s32.totalorder %s559, %s573
    %p575 = scmp.eq.s32.totalorder %s40, 0
    %p576 = por %p574, %p575
    %s578 = sadd.s32 %s577, 1
    %p581 = scmp.eq.s32.totalorder %s34, 1
    %p582 = scmp.ne.s32.totalorder %s577, %s579
    %p583 = scmp.eq.s32.totalorder %s34, 0
    %p584 = por %p582, %p583
    %p585 = scmp.ne.s32.totalorder %s577, %s579
    %p586 = scmp.eq.s32.totalorder %s39, 1
    %p587 = por %p585, %p586
    %p588 = scmp.ne.s32.totalorder %s579, %s580
    %p589 = scmp.eq.s32.totalorder %s39, 0
    %p590 = por %p588, %p589
    %p591 = scmp.ne.s32.totalorder %s579, %s580
    %p592 = scmp.eq.s32.totalorder %s40, 1
    %p593 = por %p591, %p592
    %p595 = scmp.ne.s32.totalorder %s580, %s594
    %p596 = scmp.eq.s32.totalorder %s40, 0
    %p597 = por %p595, %p596
    %s599 = sadd.s32 %s598, 1
    %p602 = scmp.eq.s32.totalorder %s34, 1
    %p603 = scmp.ne.s32.totalorder %s598, %s600
    %p604 = scmp.eq.s32.totalorder %s34, 0
    %p605 = por %p603, %p604
    %p606 = scmp.ne.s32.totalorder %s598, %s600
    %p607 = scmp.eq.s32.totalorder %s39, 1
    %p608 = por %p606, %p607
    %p609 = scmp.ne.s32.totalorder %s600, %s601
    %p610 = scmp.eq.s32.totalorder %s39, 0
    %p611 = por %p609, %p610
    %p612 = scmp.ne.s32.totalorder %s600, %s601
    %p613 = scmp.eq.s32.totalorder %s40, 1
    %p614 = por %p612, %p613
    %p616 = scmp.ne.s32.totalorder %s601, %s615
    %p617 = scmp.eq.s32.totalorder %s40, 0
    %p618 = por %p616, %p617
    %s620 = sadd.s32 %s619, 1
    %p623 = scmp.eq.s32.totalorder %s34, 1
    %p624 = scmp.ne.s32.totalorder %s619, %s621
    %p625 = scmp.eq.s32.totalorder %s34, 0
    %p626 = por %p624, %p625
    %p627 = scmp.ne.s32.totalorder %s619, %s621
    %p628 = scmp.eq.s32.totalorder %s39, 1
    %p629 = por %p627, %p628
    %p630 = scmp.ne.s32.totalorder %s621, %s622
    %p631 = scmp.eq.s32.totalorder %s39, 0
    %p632 = por %p630, %p631
    %p633 = scmp.ne.s32.totalorder %s621, %s622
    %p634 = scmp.eq.s32.totalorder %s40, 1
    %p635 = por %p633, %p634
    %p637 = scmp.ne.s32.totalorder %s622, %s636
    %p638 = scmp.eq.s32.totalorder %s40, 0
    %p639 = por %p637, %p638
    %s640 = ssub.s32 %s34, %s41
    %p641 = scmp.eq.s32.totalorder %s640, 0
    %s643 = sadd.s32 %s642, 1
    %s644 = scalar_select %p641, %s642, %s643
    %p647 = pneg %p641
    %p648 = scmp.eq.s32.totalorder %s34, 1
    %p649 = por %p647, %p648
    %p650 = scmp.ne.s32.totalorder %s642, %s645
    %p651 = scmp.eq.s32.totalorder %s34, 0
    %p652 = por %p650, %p651
    %p653 = scmp.ne.s32.totalorder %s642, %s645
    %p654 = scmp.eq.s32.totalorder %s39, 1
    %p655 = por %p653, %p654
    %p656 = scmp.ne.s32.totalorder %s645, %s646
    %p657 = scmp.eq.s32.totalorder %s39, 0
    %p658 = por %p656, %p657
    %p659 = scmp.ne.s32.totalorder %s645, %s646
    %p660 = scmp.eq.s32.totalorder %s40, 1
    %p661 = por %p659, %p660
    %p663 = scmp.ne.s32.totalorder %s646, %s662
    %p664 = scmp.eq.s32.totalorder %s40, 0
    %p665 = por %p663, %p664
    %p666 = scmp.le.s32.totalorder 1, %s34
    %p667 = scmp.lt.s32.totalorder %s34, 3
    %p668 = pnand %p666, %p667
    %p669 = pneg %p668
    // Predicated region
    $region9: #{forward.1} parent=5 // pred_check
      _
    $region10: #{forward.1} parent=5 // pred_check_branch
      %671 = sbr.rel (%p668) target = $region12
    $region11: #{forward.1} parent=5 // pred_region
      %s672 = ssub.s32 %s34, 1
      // Predicated region
      $region13: #{forward.1} parent=11 // pred_check
        %p673 = pneg %p107
      $region14: #{forward.1} parent=11 // pred_check_branch
        %675 = sbr.rel (%p673) target = $region16
      $region15: #{forward.1} parent=11 // pred_region
        _
      $region16: #{forward.1} parent=11 // pred_fallthru
        _
      // Predicated region
      $region17: #{forward.1} parent=11 // pred_check
        %p676 = pneg %p128
      $region18: #{forward.1} parent=11 // pred_check_branch
        %678 = sbr.rel (%p676) target = $region20
      $region19: #{forward.1} parent=11 // pred_region
        _
      $region20: #{forward.1} parent=11 // pred_fallthru
        _
      // Predicated region
      $region21: #{forward.1} parent=11 // pred_check
        %p679 = pneg %p149
      $region22: #{forward.1} parent=11 // pred_check_branch
        %681 = sbr.rel (%p679) target = $region24
      $region23: #{forward.1} parent=11 // pred_region
        _
      $region24: #{forward.1} parent=11 // pred_fallthru
        _
      // Predicated region
      $region25: #{forward.1} parent=11 // pred_check
        %p682 = pneg %p170
      $region26: #{forward.1} parent=11 // pred_check_branch
        %684 = sbr.rel (%p682) target = $region28
      $region27: #{forward.1} parent=11 // pred_region
        _
      $region28: #{forward.1} parent=11 // pred_fallthru
        _
      // Predicated region
      $region29: #{forward.1} parent=11 // pred_check
        %p685 = pneg %p191
      $region30: #{forward.1} parent=11 // pred_check_branch
        %687 = sbr.rel (%p685) target = $region32
      $region31: #{forward.1} parent=11 // pred_region
        _
      $region32: #{forward.1} parent=11 // pred_fallthru
        _
      // Predicated region
      $region33: #{forward.1} parent=11 // pred_check
        %p688 = pneg %p212
      $region34: #{forward.1} parent=11 // pred_check_branch
        %690 = sbr.rel (%p688) target = $region36
      $region35: #{forward.1} parent=11 // pred_region
        _
      $region36: #{forward.1} parent=11 // pred_fallthru
        _
      // Predicated region
      $region37: #{forward.1} parent=11 // pred_check
        %p691 = pneg %p233
      $region38: #{forward.1} parent=11 // pred_check_branch
        %693 = sbr.rel (%p691) target = $region40
      $region39: #{forward.1} parent=11 // pred_region
        _
      $region40: #{forward.1} parent=11 // pred_fallthru
        _
      // Predicated region
      $region41: #{forward.1} parent=11 // pred_check
        %p694 = pneg %p254
      $region42: #{forward.1} parent=11 // pred_check_branch
        %696 = sbr.rel (%p694) target = $region44
      $region43: #{forward.1} parent=11 // pred_region
        _
      $region44: #{forward.1} parent=11 // pred_fallthru
        _
      // Predicated region
      $region45: #{forward.1} parent=11 // pred_check
        %p697 = pneg %p275
      $region46: #{forward.1} parent=11 // pred_check_branch
        %699 = sbr.rel (%p697) target = $region48
      $region47: #{forward.1} parent=11 // pred_region
        _
      $region48: #{forward.1} parent=11 // pred_fallthru
        _
      // Predicated region
      $region49: #{forward.1} parent=11 // pred_check
        %p700 = pneg %p296
      $region50: #{forward.1} parent=11 // pred_check_branch
        %702 = sbr.rel (%p700) target = $region52
      $region51: #{forward.1} parent=11 // pred_region
        _
      $region52: #{forward.1} parent=11 // pred_fallthru
        _
      // Predicated region
      $region53: #{forward.1} parent=11 // pred_check
        %p703 = pneg %p317
      $region54: #{forward.1} parent=11 // pred_check_branch
        %705 = sbr.rel (%p703) target = $region56
      $region55: #{forward.1} parent=11 // pred_region
        _
      $region56: #{forward.1} parent=11 // pred_fallthru
        _
      // Predicated region
      $region57: #{forward.1} parent=11 // pred_check
        %p706 = pneg %p338
      $region58: #{forward.1} parent=11 // pred_check_branch
        %708 = sbr.rel (%p706) target = $region60
      $region59: #{forward.1} parent=11 // pred_region
        _
      $region60: #{forward.1} parent=11 // pred_fallthru
        _
      // Predicated region
      $region61: #{forward.1} parent=11 // pred_check
        %p709 = pneg %p359
      $region62: #{forward.1} parent=11 // pred_check_branch
        %711 = sbr.rel (%p709) target = $region64
      $region63: #{forward.1} parent=11 // pred_region
        _
      $region64: #{forward.1} parent=11 // pred_fallthru
        _
      // Predicated region
      $region65: #{forward.1} parent=11 // pred_check
        %p712 = pneg %p380
      $region66: #{forward.1} parent=11 // pred_check_branch
        %714 = sbr.rel (%p712) target = $region68
      $region67: #{forward.1} parent=11 // pred_region
        _
      $region68: #{forward.1} parent=11 // pred_fallthru
        _
      // Predicated region
      $region69: #{forward.1} parent=11 // pred_check
        %p715 = pneg %p401
      $region70: #{forward.1} parent=11 // pred_check_branch
        %717 = sbr.rel (%p715) target = $region72
      $region71: #{forward.1} parent=11 // pred_region
        _
      $region72: #{forward.1} parent=11 // pred_fallthru
        _
      // Predicated region
      $region73: #{forward.1} parent=11 // pred_check
        %p718 = pneg %p422
      $region74: #{forward.1} parent=11 // pred_check_branch
        %720 = sbr.rel (%p718) target = $region76
      $region75: #{forward.1} parent=11 // pred_region
        _
      $region76: #{forward.1} parent=11 // pred_fallthru
        _
      // Predicated region
      $region77: #{forward.1} parent=11 // pred_check
        %p721 = pneg %p443
      $region78: #{forward.1} parent=11 // pred_check_branch
        %723 = sbr.rel (%p721) target = $region80
      $region79: #{forward.1} parent=11 // pred_region
        _
      $region80: #{forward.1} parent=11 // pred_fallthru
        _
      // Predicated region
      $region81: #{forward.1} parent=11 // pred_check
        %p724 = pneg %p464
      $region82: #{forward.1} parent=11 // pred_check_branch
        %726 = sbr.rel (%p724) target = $region84
      $region83: #{forward.1} parent=11 // pred_region
        _
      $region84: #{forward.1} parent=11 // pred_fallthru
        _
      // Predicated region
      $region85: #{forward.1} parent=11 // pred_check
        %p727 = pneg %p485
      $region86: #{forward.1} parent=11 // pred_check_branch
        %729 = sbr.rel (%p727) target = $region88
      $region87: #{forward.1} parent=11 // pred_region
        _
      $region88: #{forward.1} parent=11 // pred_fallthru
        _
      // Predicated region
      $region89: #{forward.1} parent=11 // pred_check
        %p730 = pneg %p506
      $region90: #{forward.1} parent=11 // pred_check_branch
        %732 = sbr.rel (%p730) target = $region92
      $region91: #{forward.1} parent=11 // pred_region
        _
      $region92: #{forward.1} parent=11 // pred_fallthru
        _
      // Predicated region
      $region93: #{forward.1} parent=11 // pred_check
        %p733 = pneg %p527
      $region94: #{forward.1} parent=11 // pred_check_branch
        %735 = sbr.rel (%p733) target = $region96
      $region95: #{forward.1} parent=11 // pred_region
        _
      $region96: #{forward.1} parent=11 // pred_fallthru
        _
      // Predicated region
      $region97: #{forward.1} parent=11 // pred_check
        %p736 = pneg %p548
      $region98: #{forward.1} parent=11 // pred_check_branch
        %738 = sbr.rel (%p736) target = $region100
      $region99: #{forward.1} parent=11 // pred_region
        _
      $region100: #{forward.1} parent=11 // pred_fallthru
        _
      // Predicated region
      $region101: #{forward.1} parent=11 // pred_check
        %p739 = pneg %p569
      $region102: #{forward.1} parent=11 // pred_check_branch
        %741 = sbr.rel (%p739) target = $region104
      $region103: #{forward.1} parent=11 // pred_region
        _
      $region104: #{forward.1} parent=11 // pred_fallthru
        _
      // Predicated region
      $region105: #{forward.1} parent=11 // pred_check
        %p742 = pneg %p590
      $region106: #{forward.1} parent=11 // pred_check_branch
        %744 = sbr.rel (%p742) target = $region108
      $region107: #{forward.1} parent=11 // pred_region
        _
      $region108: #{forward.1} parent=11 // pred_fallthru
        _
      // Predicated region
      $region109: #{forward.1} parent=11 // pred_check
        %p745 = pneg %p611
      $region110: #{forward.1} parent=11 // pred_check_branch
        %747 = sbr.rel (%p745) target = $region112
      $region111: #{forward.1} parent=11 // pred_region
        _
      $region112: #{forward.1} parent=11 // pred_fallthru
        _
      // Predicated region
      $region113: #{forward.1} parent=11 // pred_check
        %p748 = pneg %p632
      $region114: #{forward.1} parent=11 // pred_check_branch
        %750 = sbr.rel (%p748) target = $region116
      $region115: #{forward.1} parent=11 // pred_region
        _
      $region116: #{forward.1} parent=11 // pred_fallthru
        _
    $region12: #{forward.1} parent=5 // pred_fallthru
      _
    %p751 = scmp.lt.s32.totalorder %s34, 2
    // Predicated region
    $region117: #{forward.1} parent=5 // pred_check
      %p752 = pneg %p751
    $region118: #{forward.1} parent=5 // pred_check_branch
      %754 = sbr.rel (%p752) target = $region120
    $region119: #{forward.1} parent=5 // pred_region
      // Predicated region
      $region121: #{forward.1} parent=119 // pred_check
        %p755 = pneg %p54
      $region122: #{forward.1} parent=119 // pred_check_branch
        %757 = sbr.rel (%p755) target = $region124
      $region123: #{forward.1} parent=119 // pred_region
        %p758 = scmp.lt.s32.totalorder %s34, 1
        %s759 = scalar_select %p758, %s34, 1
        %s760 = smul.addr %s759, 2
        %s761 = smul.addr %s760, 8
        %s762 = scalar_lea.vmem %s0, %s761
      $region124: #{forward.1} parent=119 // pred_fallthru
        _
      // Predicated region
      $region125: #{forward.1} parent=119 // pred_check
        %p763 = pneg %p80
      $region126: #{forward.1} parent=119 // pred_check_branch
        %765 = sbr.rel (%p763) target = $region128
      $region127: #{forward.1} parent=119 // pred_region
        %p766 = scmp.lt.s32.totalorder %s34, 1
        %s767 = scalar_select %p766, %s34, 1
        %s768 = smul.addr %s767, 2
        %s769 = smul.addr %s768, 8
        %s770 = scalar_lea.vmem %s1, %s769
      $region128: #{forward.1} parent=119 // pred_fallthru
        _
    $region120: #{forward.1} parent=5 // pred_fallthru
      _
    %p771 = scmp.le.s32.totalorder 1, %s34
    %p772 = scmp.lt.s32.totalorder %s34, 3
    %p773 = pnand %p771, %p772
    %p774 = pneg %p773
    // Predicated region
    $region129: #{forward.1} parent=5 // pred_check
      _
    $region130: #{forward.1} parent=5 // pred_check_branch
      %776 = sbr.rel (%p773) target = $region132
    $region131: #{forward.1} parent=5 // pred_region
      %s777 = ssub.s32 %s34, 1
      %p778 = scmp.lt.s32.totalorder %s39, 1
      %s779 = scalar_select %p778, %s39, 1
      %s780 = smul.addr %s779, 2
      %s781 = smul.addr %s780, 8
      %s782 = scalar_lea.vmem %s0, %s781
      %p783 = pneg %p60
      %p784 = pneg %p57
      %p785 = scmp.lt.s32.totalorder %s39, 1
      %s786 = scalar_select %p785, %s39, 1
      %s787 = smul.addr %s786, 2
      %s788 = smul.addr %s787, 8
      %s789 = scalar_lea.vmem %s1, %s788
      %p790 = pneg %p86
      %p791 = pneg %p83
      %p792 = pneg %p107
      %p793 = pneg %p104
      %p794 = pneg %p128
      %p795 = pneg %p125
      %p796 = pneg %p149
      %p797 = pneg %p146
      %p798 = pneg %p170
      %p799 = pneg %p167
      %p800 = pneg %p191
      %p801 = pneg %p188
      %p802 = pneg %p212
      %p803 = pneg %p209
      %p804 = pneg %p233
      %p805 = pneg %p230
      %p806 = pneg %p254
      %p807 = pneg %p251
      %p808 = pneg %p275
      %p809 = pneg %p272
      %p810 = pneg %p296
      %p811 = pneg %p293
      %p812 = pneg %p317
      %p813 = pneg %p314
      %p814 = pneg %p338
      %p815 = pneg %p335
      %p816 = pneg %p359
      %p817 = pneg %p356
      %p818 = pneg %p380
      %p819 = pneg %p377
      %p820 = pneg %p401
      %p821 = pneg %p398
      %p822 = pneg %p422
      %p823 = pneg %p419
      %p824 = pneg %p443
      %p825 = pneg %p440
      %p826 = pneg %p464
      %p827 = pneg %p461
      %p828 = pneg %p485
      %p829 = pneg %p482
      %p830 = pneg %p506
      %p831 = pneg %p503
      %p832 = pneg %p527
      %p833 = pneg %p524
      %p834 = pneg %p548
      %p835 = pneg %p545
      %p836 = pneg %p569
      %p837 = pneg %p566
      %p838 = pneg %p590
      %p839 = pneg %p587
      %p840 = pneg %p611
      %p841 = pneg %p608
      %p842 = pneg %p632
      %p843 = pneg %p629
      %p844 = pneg %p658
      %p845 = pneg %p655
      %p846 = scmp.lt.s32.totalorder %s39, 1
      %s847 = scalar_select %p846, %s39, 1
      %s848 = smul.addr %s847, 2
      %s849 = smul.addr %s848, 8
      %s850 = scalar_lea.vmem %s28, %s849
      %p851 = scmp.lt.s32.totalorder %s39, 1
      %s852 = scalar_select %p851, %s39, 1
      %s853 = smul.addr %s852, 2
      %s854 = smul.addr %s853, 8
      %s855 = scalar_lea.vmem %s0, %s854
      %p856 = scmp.lt.s32.totalorder %s39, 1
      %s857 = scalar_select %p856, %s39, 1
      %s858 = smul.addr %s857, 2
      %s859 = smul.addr %s858, 8
      %s860 = scalar_lea.vmem %s1, %s859
      %p861 = scmp.lt.s32.totalorder %s39, 1
      %s862 = scalar_select %p861, %s39, 1
      %s863 = smul.addr %s862, 2
      %s864 = smul.addr %s863, 8
      %s865 = scalar_lea.vmem %s28, %s864
      %v866 = vld [vmem:[%s855] sm:$0xff]
      %v867 = vld [vmem:[%s855 + $0x8] sm:$0xff]
      %v868 = vld [vmem:[%s3] sm:$0xff]
      %v869 = vld [vmem:[%s3 + $0x8] sm:$0xff]
      %v870 = vld [vmem:[%s3 + $0x10] sm:$0xff]
      %v871 = vld [vmem:[%s3 + $0x18] sm:$0xff]
      %v872 = vld [vmem:[%s860] sm:$0xff]
      %v873 = vld [vmem:[%s860 + $0x8] sm:$0xff]
      %vm874 = vcmask 261120
      %v876 = vsel %vm874, %v866, 0
      %v879 = vsel %vm874, %v867, 0
      %881 = vmatprep.subr.mxu0 0.0
      %882 = vmatpush1.msra.mxu0 %v868
      %883 = vmatprep.subr.mxu0 0.0
      %884 = vmatpush1.msra.mxu0 %v869
      %885 = vmatprep.subr.mxu0 0.0
      %886 = vmatpush1.msra.mxu0 %v870
      %887 = vmatprep.subr.mxu0 0.0
      %888 = vmatpush1.msra.mxu0 %v871
      %889 = vmatprep.subr.mxu0 0.0
      %890 = vmatpush1.msra.mxu0 0.0
      %891 = vmatprep.subr.mxu0 0.0
      %892 = vmatpush1.msra.mxu0 0.0
      %893 = vmatprep.subr.mxu0 0.0
      %894 = vmatpush1.msra.mxu0 0.0
      %895 = vmatprep.subr.mxu0 0.0
      %896 = vmatpush1.msra.mxu0 0.0
      %897 = vmatprep.subr.mxu0 0.0
      %898 = vmatpush1.msra.mxu0 0.0
      %899 = vmatprep.subr.mxu0 0.0
      %900 = vmatpush1.msra.mxu0 0.0
      %901 = vmatprep.subr.mxu0 0.0
      %902 = vmatpush1.msra.mxu0 0.0
      %903 = vmatprep.subr.mxu0 0.0
      %904 = vmatpush1.msra.mxu0 0.0
      %905 = vmatprep.subr.mxu0 0.0
      %906 = vmatpush1.msra.mxu0 0.0
      %907 = vmatprep.subr.mxu0 0.0
      %908 = vmatpush1.msra.mxu0 0.0
      %909 = vmatprep.subr.mxu0 0.0
      %910 = vmatpush1.msra.mxu0 0.0
      %911 = vmatprep.subr.mxu0 0.0
      %912 = vmatpush1.msra.mxu0 0.0
      %913 = vmatprep.subr.mxu0 0.0
      %914 = vmatpush1.msra.mxu0 0.0
      %915 = vmatprep.subr.mxu0 0.0
      %916 = vmatpush1.msra.mxu0 0.0
      %917 = vmatprep.subr.mxu0 0.0
      %918 = vmatpush1.msra.mxu0 0.0
      %919 = vmatprep.subr.mxu0 0.0
      %920 = vmatpush1.msra.mxu0 0.0
      %921 = vmatprep.subr.mxu0 0.0
      %922 = vmatpush1.msra.mxu0 0.0
      %923 = vmatprep.subr.mxu0 0.0
      %924 = vmatpush1.msra.mxu0 0.0
      %925 = vmatprep.subr.mxu0 0.0
      %926 = vmatpush1.msra.mxu0 0.0
      %927 = vmatprep.subr.mxu0 0.0
      %928 = vmatpush1.msra.mxu0 0.0
      %929 = vmatprep.subr.mxu0 0.0
      %930 = vmatpush1.msra.mxu0 0.0
      %931 = vmatprep.subr.mxu0 0.0
      %932 = vmatpush1.msra.mxu0 0.0
      %933 = vmatprep.subr.mxu0 0.0
      %934 = vmatpush1.msra.mxu0 0.0
      %935 = vmatprep.subr.mxu0 0.0
      %936 = vmatpush1.msra.mxu0 0.0
      %937 = vmatprep.subr.mxu0 0.0
      %938 = vmatpush1.msra.mxu0 0.0
      %939 = vmatprep.subr.mxu0 0.0
      %940 = vmatpush1.msra.mxu0 0.0
      %941 = vmatprep.subr.mxu0 0.0
      %942 = vmatpush1.msra.mxu0 0.0
      %943 = vmatprep.subr.mxu0 0.0
      %944 = vmatpush1.msra.mxu0 0.0
      %945 = vmatprep.mubr.f32.mxu0 0.0
      %946 = vmatmul.mubr.f32.gmra.mrb[0].mxu0 %v876
      %v947 = vpop.f32.mrb[0].mxu0
      %v948 = vadd.f32 %v872, %v947
      %v949 = vpop.f32.mrb[0].mxu0
      %950 = vmatprep.mubr.f32.mxu0 0.0
      %951 = vmatmul.mubr.f32.gmra.mrb[0].mxu0 %v879
      %v952 = vpop.f32.mrb[0].mxu0
      %v953 = vadd.f32 %v873, %v952
      %v954 = vpop.f32.mrb[0].mxu0
      %955 = vdwg.mxu0
      %v956 = vld [vmem:[%s2] sm:$0xff]
      %v957 = vld [vmem:[%s2 + $0x8] sm:$0xff]
      %v958 = vld [vmem:[%s4] sm:$0xff]
      %v959 = vld [vmem:[%s4 + $0x8] sm:$0xff]
      %v960 = vld [vmem:[%s4 + $0x10] sm:$0xff]
      %v961 = vld [vmem:[%s4 + $0x18] sm:$0xff]
      %v962 = vld [vmem:[%s5] sm:$0x1]
      %v964 = vlaneseq
      %v965 = vshrl.u32 %v964, 7
      %v966 = vsub.s32 0, %v965
      %v967 = vrot.slane %v962, %v966
      %v970 = vsel %vm874, %v948, 0
      %v973 = vsel %vm874, %v953, 0
      %975 = vmatprep.subr.mxu0 0.0
      %976 = vmatpush1.msra.mxu0 %v958
      %977 = vmatprep.subr.mxu0 0.0
      %978 = vmatpush1.msra.mxu0 %v959
      %979 = vmatprep.subr.mxu0 0.0
      %980 = vmatpush1.msra.mxu0 %v960
      %981 = vmatprep.subr.mxu0 0.0
      %982 = vmatpush1.msra.mxu0 %v961
      %983 = vmatprep.subr.mxu0 0.0
      %984 = vmatpush1.msra.mxu0 0.0
      %985 = vmatprep.subr.mxu0 0.0
      %986 = vmatpush1.msra.mxu0 0.0
      %987 = vmatprep.subr.mxu0 0.0
      %988 = vmatpush1.msra.mxu0 0.0
      %989 = vmatprep.subr.mxu0 0.0
      %990 = vmatpush1.msra.mxu0 0.0
      %991 = vmatprep.subr.mxu0 0.0
      %992 = vmatpush1.msra.mxu0 0.0
      %993 = vmatprep.subr.mxu0 0.0
      %994 = vmatpush1.msra.mxu0 0.0
      %995 = vmatprep.subr.mxu0 0.0
      %996 = vmatpush1.msra.mxu0 0.0
      %997 = vmatprep.subr.mxu0 0.0
      %998 = vmatpush1.msra.mxu0 0.0
      %999 = vmatprep.subr.mxu0 0.0
      %1000 = vmatpush1.msra.mxu0 0.0
      %1001 = vmatprep.subr.mxu0 0.0
      %1002 = vmatpush1.msra.mxu0 0.0
      %1003 = vmatprep.subr.mxu0 0.0
      %1004 = vmatpush1.msra.mxu0 0.0
      %1005 = vmatprep.subr.mxu0 0.0
      %1006 = vmatpush1.msra.mxu0 0.0
      %1007 = vmatprep.subr.mxu0 0.0
      %1008 = vmatpush1.msra.mxu0 0.0
      %1009 = vmatprep.subr.mxu0 0.0
      %1010 = vmatpush1.msra.mxu0 0.0
      %1011 = vmatprep.subr.mxu0 0.0
      %1012 = vmatpush1.msra.mxu0 0.0
      %1013 = vmatprep.subr.mxu0 0.0
      %1014 = vmatpush1.msra.mxu0 0.0
      %1015 = vmatprep.subr.mxu0 0.0
      %1016 = vmatpush1.msra.mxu0 0.0
      %1017 = vmatprep.subr.mxu0 0.0
      %1018 = vmatpush1.msra.mxu0 0.0
      %1019 = vmatprep.subr.mxu0 0.0
      %1020 = vmatpush1.msra.mxu0 0.0
      %1021 = vmatprep.subr.mxu0 0.0
      %1022 = vmatpush1.msra.mxu0 0.0
      %1023 = vmatprep.subr.mxu0 0.0
      %1024 = vmatpush1.msra.mxu0 0.0
      %1025 = vmatprep.subr.mxu0 0.0
      %1026 = vmatpush1.msra.mxu0 0.0
      %1027 = vmatprep.subr.mxu0 0.0
      %1028 = vmatpush1.msra.mxu0 0.0
      %1029 = vmatprep.subr.mxu0 0.0
      %1030 = vmatpush1.msra.mxu0 0.0
      %1031 = vmatprep.subr.mxu0 0.0
      %1032 = vmatpush1.msra.mxu0 0.0
      %1033 = vmatprep.subr.mxu0 0.0
      %1034 = vmatpush1.msra.mxu0 0.0
      %1035 = vmatprep.subr.mxu0 0.0
      %1036 = vmatpush1.msra.mxu0 0.0
      %1037 = vmatprep.subr.mxu0 0.0
      %1038 = vmatpush1.msra.mxu0 0.0
      %1039 = vmatprep.mubr.f32.mxu0 0.0
      %1040 = vmatmul.mubr.f32.gmra.mrb[0].mxu0 %v970
      %v1041 = vpop.f32.mrb[0].mxu0
      %v1042 = vadd.f32 %v967, %v1041
      %v1043 = vpop.f32.mrb[0].mxu0
      %1044 = vmatprep.mubr.f32.mxu0 0.0
      %1045 = vmatmul.mubr.f32.gmra.mrb[0].mxu0 %v973
      %v1046 = vpop.f32.mrb[0].mxu0
      %v1047 = vadd.f32 %v967, %v1046
      %v1048 = vpop.f32.mrb[0].mxu0
      %1049 = vdwg.mxu0
      %v1051 = vsel %vm874, %v1042, 0
      %v1054 = vsel %vm874, %v1047, 0
      %1056 = vmatprep.subr.mxu0 0.0
      %1057 = vmatpush1.xpose.msra.mxu0 %v970
      %1058 = vmatprep.subr.mxu0 0.0
      %1059 = vmatpush1.xpose.msra.mxu0 %v973
      %1060 = vmatprep.subr.mxu0 0.0
      %1061 = vmatpush1.xpose.msra.mxu0 0.0
      %1062 = vmatprep.subr.mxu0 0.0
      %1063 = vmatpush1.xpose.msra.mxu0 0.0
      %1064 = vmatprep.subr.mxu0 0.0
      %1065 = vmatpush1.xpose.msra.mxu0 0.0
      %1066 = vmatprep.subr.mxu0 0.0
      %1067 = vmatpush1.xpose.msra.mxu0 0.0
      %1068 = vmatprep.subr.mxu0 0.0
      %1069 = vmatpush1.xpose.msra.mxu0 0.0
      %1070 = vmatprep.subr.mxu0 0.0
      %1071 = vmatpush1.xpose.msra.mxu0 0.0
      %1072 = vmatprep.subr.mxu0 0.0
      %1073 = vmatpush1.xpose.msra.mxu0 0.0
      %1074 = vmatprep.subr.mxu0 0.0
      %1075 = vmatpush1.xpose.msra.mxu0 0.0
      %1076 = vmatprep.subr.mxu0 0.0
      %1077 = vmatpush1.xpose.msra.mxu0 0.0
      %1078 = vmatprep.subr.mxu0 0.0
      %1079 = vmatpush1.xpose.msra.mxu0 0.0
      %1080 = vmatprep.subr.mxu0 0.0
      %1081 = vmatpush1.xpose.msra.mxu0 0.0
      %1082 = vmatprep.subr.mxu0 0.0
      %1083 = vmatpush1.xpose.msra.mxu0 0.0
      %1084 = vmatprep.subr.mxu0 0.0
      %1085 = vmatpush1.xpose.msra.mxu0 0.0
      %1086 = vmatprep.subr.mxu0 0.0
      %1087 = vmatpush1.xpose.msra.mxu0 0.0
      %1088 = vmatprep.subr.mxu0 0.0
      %1089 = vmatpush1.xpose.msra.mxu0 0.0
      %1090 = vmatprep.subr.mxu0 0.0
      %1091 = vmatpush1.xpose.msra.mxu0 0.0
      %1092 = vmatprep.subr.mxu0 0.0
      %1093 = vmatpush1.xpose.msra.mxu0 0.0
      %1094 = vmatprep.subr.mxu0 0.0
      %1095 = vmatpush1.xpose.msra.mxu0 0.0
      %1096 = vmatprep.subr.mxu0 0.0
      %1097 = vmatpush1.xpose.msra.mxu0 0.0
      %1098 = vmatprep.subr.mxu0 0.0
      %1099 = vmatpush1.xpose.msra.mxu0 0.0
      %1100 = vmatprep.subr.mxu0 0.0
      %1101 = vmatpush1.xpose.msra.mxu0 0.0
      %1102 = vmatprep.subr.mxu0 0.0
      %1103 = vmatpush1.xpose.msra.mxu0 0.0
      %1104 = vmatprep.subr.mxu0 0.0
      %1105 = vmatpush1.xpose.msra.mxu0 0.0
      %1106 = vmatprep.subr.mxu0 0.0
      %1107 = vmatpush1.xpose.msra.mxu0 0.0
      %1108 = vmatprep.subr.mxu0 0.0
      %1109 = vmatpush1.xpose.msra.mxu0 0.0
      %1110 = vmatprep.subr.mxu0 0.0
      %1111 = vmatpush1.xpose.msra.mxu0 0.0
      %1112 = vmatprep.subr.mxu0 0.0
      %1113 = vmatpush1.xpose.msra.mxu0 0.0
      %1114 = vmatprep.subr.mxu0 0.0
      %1115 = vmatpush1.xpose.msra.mxu0 0.0
      %1116 = vmatprep.subr.mxu0 0.0
      %1117 = vmatpush1.xpose.msra.mxu0 0.0
      %1118 = vmatprep.subr.mxu0 0.0
      %1119 = vmatpush1.xpose.msra.mxu0 0.0
      %1120 = vmatprep.mubr.f32.mxu0 0.0
      %1121 = vmatmul.mubr.f32.gmra.mrb[0].mxu0 %v1051
      %v1122 = vpop.f32.mrb[0].mxu0
      %v1123 = vadd.f32 %v956, %v1122
      %v1124 = vpop.f32.mrb[0].mxu0
      %1125 = vmatprep.mubr.f32.mxu0 0.0
      %1126 = vmatmul.mubr.f32.gmra.mrb[0].mxu0 %v1054
      %v1127 = vpop.f32.mrb[0].mxu0
      %v1128 = vadd.f32 %v957, %v1127
      %v1129 = vpop.f32.mrb[0].mxu0
      %1130 = vdwg.mxu0
      %vm1131 = vcmask 130048
      %v1132 = vsel %vm1131, %v1123, -inf
      %1133 = vmax.xlane.f32.xlu0 %v1132
      %v1134 = vpop.xlane.xlu0 %1133
      %v1135 = vsel %vm1131, %v1128, -inf
      %1136 = vmax.xlane.f32.xlu0 %v1135
      %v1137 = vpop.xlane.xlu0 %1136
      %v1138 = vsub.f32 %v1123, %v1134
      %v1139 = vsub.f32 %v1128, %v1137
      %v1140 = vmul.f32 %v1138, 1.442695
      %v1141 = vpow.pop %v1140
      %v1142 = vmul.f32 %v1139, 1.442695
      %v1143 = vpow.pop %v1142
      %v1144 = vsel %vm1131, %v1141, 0.0
      %1145 = vadd.xlane.f32.xlu0 %v1144
      %v1146 = vpop.xlane.xlu0 %1145
      %v1147 = vsel %vm1131, %v1143, 0.0
      %1148 = vadd.xlane.f32.xlu0 %v1147
      %v1149 = vpop.xlane.xlu0 %1148
      %v1150 = vrcp.pop %v1146
      %v1151 = vmul.f32 %v1141, %v1150
      %v1152 = vrcp.pop %v1149
      %v1153 = vmul.f32 %v1143, %v1152
      %v1154 = vld [vmem:[%s6] sm:$0xff]
      %v1155 = vld [vmem:[%s6 + $0x8] sm:$0xff]
      %v1156 = vld [vmem:[%s6 + $0x10] sm:$0xff]
      %v1157 = vld [vmem:[%s6 + $0x18] sm:$0xff]
      %1158 = vmatprep.subr.mxu0 0.0
      %1159 = vmatpush1.msra.mxu0 %v1154
      %1160 = vmatprep.subr.mxu0 0.0
      %1161 = vmatpush1.msra.mxu0 %v1155
      %1162 = vmatprep.subr.mxu0 0.0
      %1163 = vmatpush1.msra.mxu0 %v1156
      %1164 = vmatprep.subr.mxu0 0.0
      %1165 = vmatpush1.msra.mxu0 %v1157
      %1166 = vmatprep.subr.mxu0 0.0
      %1167 = vmatpush1.msra.mxu0 0.0
      %1168 = vmatprep.subr.mxu0 0.0
      %1169 = vmatpush1.msra.mxu0 0.0
      %1170 = vmatprep.subr.mxu0 0.0
      %1171 = vmatpush1.msra.mxu0 0.0
      %1172 = vmatprep.subr.mxu0 0.0
      %1173 = vmatpush1.msra.mxu0 0.0
      %1174 = vmatprep.subr.mxu0 0.0
      %1175 = vmatpush1.msra.mxu0 0.0
      %1176 = vmatprep.subr.mxu0 0.0
      %1177 = vmatpush1.msra.mxu0 0.0
      %1178 = vmatprep.subr.mxu0 0.0
      %1179 = vmatpush1.msra.mxu0 0.0
      %1180 = vmatprep.subr.mxu0 0.0
      %1181 = vmatpush1.msra.mxu0 0.0
      %1182 = vmatprep.subr.mxu0 0.0
      %1183 = vmatpush1.msra.mxu0 0.0
      %1184 = vmatprep.subr.mxu0 0.0
      %1185 = vmatpush1.msra.mxu0 0.0
      %1186 = vmatprep.subr.mxu0 0.0
      %1187 = vmatpush1.msra.mxu0 0.0
      %1188 = vmatprep.subr.mxu0 0.0
      %1189 = vmatpush1.msra.mxu0 0.0
      %1190 = vmatprep.subr.mxu0 0.0
      %1191 = vmatpush1.msra.mxu0 0.0
      %1192 = vmatprep.subr.mxu0 0.0
      %1193 = vmatpush1.msra.mxu0 0.0
      %1194 = vmatprep.subr.mxu0 0.0
      %1195 = vmatpush1.msra.mxu0 0.0
      %1196 = vmatprep.subr.mxu0 0.0
      %1197 = vmatpush1.msra.mxu0 0.0
      %1198 = vmatprep.subr.mxu0 0.0
      %1199 = vmatpush1.msra.mxu0 0.0
      %1200 = vmatprep.subr.mxu0 0.0
      %1201 = vmatpush1.msra.mxu0 0.0
      %1202 = vmatprep.subr.mxu0 0.0
      %1203 = vmatpush1.msra.mxu0 0.0
      %1204 = vmatprep.subr.mxu0 0.0
      %1205 = vmatpush1.msra.mxu0 0.0
      %1206 = vmatprep.subr.mxu0 0.0
      %1207 = vmatpush1.msra.mxu0 0.0
      %1208 = vmatprep.subr.mxu0 0.0
      %1209 = vmatpush1.msra.mxu0 0.0
      %1210 = vmatprep.subr.mxu0 0.0
      %1211 = vmatpush1.msra.mxu0 0.0
      %1212 = vmatprep.subr.mxu0 0.0
      %1213 = vmatpush1.msra.mxu0 0.0
      %1214 = vmatprep.subr.mxu0 0.0
      %1215 = vmatpush1.msra.mxu0 0.0
      %1216 = vmatprep.subr.mxu0 0.0
      %1217 = vmatpush1.msra.mxu0 0.0
      %1218 = vmatprep.subr.mxu0 0.0
      %1219 = vmatpush1.msra.mxu0 0.0
      %1220 = vmatprep.subr.mxu0 0.0
      %1221 = vmatpush1.msra.mxu0 0.0
      %1222 = vmatprep.mubr.f32.mxu0 0.0
      %1223 = vmatmul.mubr.f32.gmra.mrb[0].mxu0 %v970
      %v1224 = vpop.f32.mrb[0].mxu0
      %v1225 = vadd.f32 0.0, %v1224
      %v1226 = vpop.f32.mrb[0].mxu0
      %1227 = vmatprep.mubr.f32.mxu0 0.0
      %1228 = vmatmul.mubr.f32.gmra.mrb[0].mxu0 %v973
      %v1229 = vpop.f32.mrb[0].mxu0
      %v1230 = vadd.f32 0.0, %v1229
      %v1231 = vpop.f32.mrb[0].mxu0
      %1232 = vdwg.mxu0
      %s1233 = scalar_lea.vmem %s4, 32
      %v1234 = vld [vmem:[%s1233] sm:$0xff]
      %v1235 = vld [vmem:[%s1233 + $0x8] sm:$0xff]
      %v1236 = vld [vmem:[%s1233 + $0x10] sm:$0xff]
      %v1237 = vld [vmem:[%s1233 + $0x18] sm:$0xff]
      %s1238 = scalar_lea.vmem %s5, 1
      %v1239 = vld [vmem:[%s1238] sm:$0x1]
      %v1241 = vlaneseq
      %v1242 = vshrl.u32 %v1241, 7
      %v1243 = vsub.s32 0, %v1242
      %v1244 = vrot.slane %v1239, %v1243
      %1246 = vmatprep.subr.mxu0 0.0
      %1247 = vmatpush1.msra.mxu0 %v1234
      %1248 = vmatprep.subr.mxu0 0.0
      %1249 = vmatpush1.msra.mxu0 %v1235
      %1250 = vmatprep.subr.mxu0 0.0
      %1251 = vmatpush1.msra.mxu0 %v1236
      %1252 = vmatprep.subr.mxu0 0.0
      %1253 = vmatpush1.msra.mxu0 %v1237
      %1254 = vmatprep.subr.mxu0 0.0
      %1255 = vmatpush1.msra.mxu0 0.0
      %1256 = vmatprep.subr.mxu0 0.0
      %1257 = vmatpush1.msra.mxu0 0.0
      %1258 = vmatprep.subr.mxu0 0.0
      %1259 = vmatpush1.msra.mxu0 0.0
      %1260 = vmatprep.subr.mxu0 0.0
      %1261 = vmatpush1.msra.mxu0 0.0
      %1262 = vmatprep.subr.mxu0 0.0
      %1263 = vmatpush1.msra.mxu0 0.0
      %1264 = vmatprep.subr.mxu0 0.0
      %1265 = vmatpush1.msra.mxu0 0.0
      %1266 = vmatprep.subr.mxu0 0.0
      %1267 = vmatpush1.msra.mxu0 0.0
      %1268 = vmatprep.subr.mxu0 0.0
      %1269 = vmatpush1.msra.mxu0 0.0
      %1270 = vmatprep.subr.mxu0 0.0
      %1271 = vmatpush1.msra.mxu0 0.0
      %1272 = vmatprep.subr.mxu0 0.0
      %1273 = vmatpush1.msra.mxu0 0.0
      %1274 = vmatprep.subr.mxu0 0.0
      %1275 = vmatpush1.msra.mxu0 0.0
      %1276 = vmatprep.subr.mxu0 0.0
      %1277 = vmatpush1.msra.mxu0 0.0
      %1278 = vmatprep.subr.mxu0 0.0
      %1279 = vmatpush1.msra.mxu0 0.0
      %1280 = vmatprep.subr.mxu0 0.0
      %1281 = vmatpush1.msra.mxu0 0.0
      %1282 = vmatprep.subr.mxu0 0.0
      %1283 = vmatpush1.msra.mxu0 0.0
      %1284 = vmatprep.subr.mxu0 0.0
      %1285 = vmatpush1.msra.mxu0 0.0
      %1286 = vmatprep.subr.mxu0 0.0
      %1287 = vmatpush1.msra.mxu0 0.0
      %1288 = vmatprep.subr.mxu0 0.0
      %1289 = vmatpush1.msra.mxu0 0.0
      %1290 = vmatprep.subr.mxu0 0.0
      %1291 = vmatpush1.msra.mxu0 0.0
      %1292 = vmatprep.subr.mxu0 0.0
      %1293 = vmatpush1.msra.mxu0 0.0
      %1294 = vmatprep.subr.mxu0 0.0
      %1295 = vmatpush1.msra.mxu0 0.0
      %1296 = vmatprep.subr.mxu0 0.0
      %1297 = vmatpush1.msra.mxu0 0.0
      %1298 = vmatprep.subr.mxu0 0.0
      %1299 = vmatpush1.msra.mxu0 0.0
      %1300 = vmatprep.subr.mxu0 0.0
      %1301 = vmatpush1.msra.mxu0 0.0
      %1302 = vmatprep.subr.mxu0 0.0
      %1303 = vmatpush1.msra.mxu0 0.0
      %1304 = vmatprep.subr.mxu0 0.0
      %1305 = vmatpush1.msra.mxu0 0.0
      %1306 = vmatprep.subr.mxu0 0.0
      %1307 = vmatpush1.msra.mxu0 0.0
      %1308 = vmatprep.subr.mxu0 0.0
      %1309 = vmatpush1.msra.mxu0 0.0
      %1310 = vmatprep.mubr.f32.mxu0 0.0
      %1311 = vmatmul.mubr.f32.gmra.mrb[0].mxu0 %v970
      %v1312 = vpop.f32.mrb[0].mxu0
      %v1313 = vadd.f32 %v1244, %v1312
      %v1314 = vpop.f32.mrb[0].mxu0
      %1315 = vmatprep.mubr.f32.mxu0 0.0
      %1316 = vmatmul.mubr.f32.gmra.mrb[0].mxu0 %v973
      %v1317 = vpop.f32.mrb[0].mxu0
      %v1318 = vadd.f32 %v1244, %v1317
      %v1319 = vpop.f32.mrb[0].mxu0
      %1320 = vdwg.mxu0
      %v1322 = vsel %vm874, %v1313, 0
      %v1325 = vsel %vm874, %v1318, 0
      %1327 = vmatprep.subr.mxu0 0.0
      %1328 = vmatpush1.xpose.msra.mxu0 %v970
      %1329 = vmatprep.subr.mxu0 0.0
      %1330 = vmatpush1.xpose.msra.mxu0 %v973
      %1331 = vmatprep.subr.mxu0 0.0
      %1332 = vmatpush1.xpose.msra.mxu0 0.0
      %1333 = vmatprep.subr.mxu0 0.0
      %1334 = vmatpush1.xpose.msra.mxu0 0.0
      %1335 = vmatprep.subr.mxu0 0.0
      %1336 = vmatpush1.xpose.msra.mxu0 0.0
      %1337 = vmatprep.subr.mxu0 0.0
      %1338 = vmatpush1.xpose.msra.mxu0 0.0
      %1339 = vmatprep.subr.mxu0 0.0
      %1340 = vmatpush1.xpose.msra.mxu0 0.0
      %1341 = vmatprep.subr.mxu0 0.0
      %1342 = vmatpush1.xpose.msra.mxu0 0.0
      %1343 = vmatprep.subr.mxu0 0.0
      %1344 = vmatpush1.xpose.msra.mxu0 0.0
      %1345 = vmatprep.subr.mxu0 0.0
      %1346 = vmatpush1.xpose.msra.mxu0 0.0
      %1347 = vmatprep.subr.mxu0 0.0
      %1348 = vmatpush1.xpose.msra.mxu0 0.0
      %1349 = vmatprep.subr.mxu0 0.0
      %1350 = vmatpush1.xpose.msra.mxu0 0.0
      %1351 = vmatprep.subr.mxu0 0.0
      %1352 = vmatpush1.xpose.msra.mxu0 0.0
      %1353 = vmatprep.subr.mxu0 0.0
      %1354 = vmatpush1.xpose.msra.mxu0 0.0
      %1355 = vmatprep.subr.mxu0 0.0
      %1356 = vmatpush1.xpose.msra.mxu0 0.0
      %1357 = vmatprep.subr.mxu0 0.0
      %1358 = vmatpush1.xpose.msra.mxu0 0.0
      %1359 = vmatprep.subr.mxu0 0.0
      %1360 = vmatpush1.xpose.msra.mxu0 0.0
      %1361 = vmatprep.subr.mxu0 0.0
      %1362 = vmatpush1.xpose.msra.mxu0 0.0
      %1363 = vmatprep.subr.mxu0 0.0
      %1364 = vmatpush1.xpose.msra.mxu0 0.0
      %1365 = vmatprep.subr.mxu0 0.0
      %1366 = vmatpush1.xpose.msra.mxu0 0.0
      %1367 = vmatprep.subr.mxu0 0.0
      %1368 = vmatpush1.xpose.msra.mxu0 0.0
      %1369 = vmatprep.subr.mxu0 0.0
      %1370 = vmatpush1.xpose.msra.mxu0 0.0
      %1371 = vmatprep.subr.mxu0 0.0
      %1372 = vmatpush1.xpose.msra.mxu0 0.0
      %1373 = vmatprep.subr.mxu0 0.0
      %1374 = vmatpush1.xpose.msra.mxu0 0.0
      %1375 = vmatprep.subr.mxu0 0.0
      %1376 = vmatpush1.xpose.msra.mxu0 0.0
      %1377 = vmatprep.subr.mxu0 0.0
      %1378 = vmatpush1.xpose.msra.mxu0 0.0
      %1379 = vmatprep.subr.mxu0 0.0
      %1380 = vmatpush1.xpose.msra.mxu0 0.0
      %1381 = vmatprep.subr.mxu0 0.0
      %1382 = vmatpush1.xpose.msra.mxu0 0.0
      %1383 = vmatprep.subr.mxu0 0.0
      %1384 = vmatpush1.xpose.msra.mxu0 0.0
      %1385 = vmatprep.subr.mxu0 0.0
      %1386 = vmatpush1.xpose.msra.mxu0 0.0
      %1387 = vmatprep.subr.mxu0 0.0
      %1388 = vmatpush1.xpose.msra.mxu0 0.0
      %1389 = vmatprep.subr.mxu0 0.0
      %1390 = vmatpush1.xpose.msra.mxu0 0.0
      %1391 = vmatprep.mubr.f32.mxu0 0.0
      %1392 = vmatmul.mubr.f32.gmra.mrb[0].mxu0 %v1322
      %v1393 = vpop.f32.mrb[0].mxu0
      %v1394 = vadd.f32 %v956, %v1393
      %v1395 = vpop.f32.mrb[0].mxu0
      %1396 = vmatprep.mubr.f32.mxu0 0.0
      %1397 = vmatmul.mubr.f32.gmra.mrb[0].mxu0 %v1325
      %v1398 = vpop.f32.mrb[0].mxu0
      %v1399 = vadd.f32 %v957, %v1398
      %v1400 = vpop.f32.mrb[0].mxu0
      %1401 = vdwg.mxu0
      %v1402 = vsel %vm1131, %v1394, -inf
      %1403 = vmax.xlane.f32.xlu0 %v1402
      %v1404 = vpop.xlane.xlu0 %1403
      %v1405 = vsel %vm1131, %v1399, -inf
      %1406 = vmax.xlane.f32.xlu0 %v1405
      %v1407 = vpop.xlane.xlu0 %1406
      %v1408 = vsub.f32 %v1394, %v1404
      %v1409 = vsub.f32 %v1399, %v1407
      %v1410 = vmul.f32 %v1408, 1.442695
      %v1411 = vpow.pop %v1410
      %v1412 = vmul.f32 %v1409, 1.442695
      %v1413 = vpow.pop %v1412
      %v1414 = vsel %vm1131, %v1411, 0.0
      %1415 = vadd.xlane.f32.xlu0 %v1414
      %v1416 = vpop.xlane.xlu0 %1415
      %v1417 = vsel %vm1131, %v1413, 0.0
      %1418 = vadd.xlane.f32.xlu0 %v1417
      %v1419 = vpop.xlane.xlu0 %1418
      %v1420 = vrcp.pop %v1416
      %v1421 = vmul.f32 %v1411, %v1420
      %v1422 = vrcp.pop %v1419
      %v1423 = vmul.f32 %v1413, %v1422
      %s1424 = scalar_lea.vmem %s6, 32
      %v1425 = vld [vmem:[%s1424] sm:$0xff]
      %v1426 = vld [vmem:[%s1424 + $0x8] sm:$0xff]
      %v1427 = vld [vmem:[%s1424 + $0x10] sm:$0xff]
      %v1428 = vld [vmem:[%s1424 + $0x18] sm:$0xff]
      %1429 = vmatprep.subr.mxu0 0.0
      %1430 = vmatpush1.msra.mxu0 %v1425
      %1431 = vmatprep.subr.mxu0 0.0
      %1432 = vmatpush1.msra.mxu0 %v1426
      %1433 = vmatprep.subr.mxu0 0.0
      %1434 = vmatpush1.msra.mxu0 %v1427
      %1435 = vmatprep.subr.mxu0 0.0
      %1436 = vmatpush1.msra.mxu0 %v1428
      %1437 = vmatprep.subr.mxu0 0.0
      %1438 = vmatpush1.msra.mxu0 0.0
      %1439 = vmatprep.subr.mxu0 0.0
      %1440 = vmatpush1.msra.mxu0 0.0
      %1441 = vmatprep.subr.mxu0 0.0
      %1442 = vmatpush1.msra.mxu0 0.0
      %1443 = vmatprep.subr.mxu0 0.0
      %1444 = vmatpush1.msra.mxu0 0.0
      %1445 = vmatprep.subr.mxu0 0.0
      %1446 = vmatpush1.msra.mxu0 0.0
      %1447 = vmatprep.subr.mxu0 0.0
      %1448 = vmatpush1.msra.mxu0 0.0
      %1449 = vmatprep.subr.mxu0 0.0
      %1450 = vmatpush1.msra.mxu0 0.0
      %1451 = vmatprep.subr.mxu0 0.0
      %1452 = vmatpush1.msra.mxu0 0.0
      %1453 = vmatprep.subr.mxu0 0.0
      %1454 = vmatpush1.msra.mxu0 0.0
      %1455 = vmatprep.subr.mxu0 0.0
      %1456 = vmatpush1.msra.mxu0 0.0
      %1457 = vmatprep.subr.mxu0 0.0
      %1458 = vmatpush1.msra.mxu0 0.0
      %1459 = vmatprep.subr.mxu0 0.0
      %1460 = vmatpush1.msra.mxu0 0.0
      %1461 = vmatprep.subr.mxu0 0.0
      %1462 = vmatpush1.msra.mxu0 0.0
      %1463 = vmatprep.subr.mxu0 0.0
      %1464 = vmatpush1.msra.mxu0 0.0
      %1465 = vmatprep.subr.mxu0 0.0
      %1466 = vmatpush1.msra.mxu0 0.0
      %1467 = vmatprep.subr.mxu0 0.0
      %1468 = vmatpush1.msra.mxu0 0.0
      %1469 = vmatprep.subr.mxu0 0.0
      %1470 = vmatpush1.msra.mxu0 0.0
      %1471 = vmatprep.subr.mxu0 0.0
      %1472 = vmatpush1.msra.mxu0 0.0
      %1473 = vmatprep.subr.mxu0 0.0
      %1474 = vmatpush1.msra.mxu0 0.0
      %1475 = vmatprep.subr.mxu0 0.0
      %1476 = vmatpush1.msra.mxu0 0.0
      %1477 = vmatprep.subr.mxu0 0.0
      %1478 = vmatpush1.msra.mxu0 0.0
      %1479 = vmatprep.subr.mxu0 0.0
      %1480 = vmatpush1.msra.mxu0 0.0
      %1481 = vmatprep.subr.mxu0 0.0
      %1482 = vmatpush1.msra.mxu0 0.0
      %1483 = vmatprep.subr.mxu0 0.0
      %1484 = vmatpush1.msra.mxu0 0.0
      %1485 = vmatprep.subr.mxu0 0.0
      %1486 = vmatpush1.msra.mxu0 0.0
      %1487 = vmatprep.subr.mxu0 0.0
      %1488 = vmatpush1.msra.mxu0 0.0
      %1489 = vmatprep.subr.mxu0 0.0
      %1490 = vmatpush1.msra.mxu0 0.0
      %1491 = vmatprep.subr.mxu0 0.0
      %1492 = vmatpush1.msra.mxu0 0.0
      %1493 = vmatprep.mubr.f32.mxu0 0.0
      %1494 = vmatmul.mubr.f32.gmra.mrb[0].mxu0 %v970
      %v1495 = vpop.f32.mrb[0].mxu0
      %v1496 = vadd.f32 0.0, %v1495
      %v1497 = vpop.f32.mrb[0].mxu0
      %1498 = vmatprep.mubr.f32.mxu0 0.0
      %1499 = vmatmul.mubr.f32.gmra.mrb[0].mxu0 %v973
      %v1500 = vpop.f32.mrb[0].mxu0
      %v1501 = vadd.f32 0.0, %v1500
      %v1502 = vpop.f32.mrb[0].mxu0
      %1503 = vdwg.mxu0
      %v1505 = vsel %vm1131, %v1421, 0
      %v1508 = vsel %vm1131, %v1423, 0
      %1510 = vmatprep.subr.mxu0 0.0
      %1511 = vmatpush1.msra.mxu0 %v1496
      %1512 = vmatprep.subr.mxu0 0.0
      %1513 = vmatpush1.msra.mxu0 %v1501
      %1514 = vmatprep.subr.mxu0 0.0
      %1515 = vmatpush1.msra.mxu0 0.0
      %1516 = vmatprep.subr.mxu0 0.0
      %1517 = vmatpush1.msra.mxu0 0.0
      %1518 = vmatprep.subr.mxu0 0.0
      %1519 = vmatpush1.msra.mxu0 0.0
      %1520 = vmatprep.subr.mxu0 0.0
      %1521 = vmatpush1.msra.mxu0 0.0
      %1522 = vmatprep.subr.mxu0 0.0
      %1523 = vmatpush1.msra.mxu0 0.0
      %1524 = vmatprep.subr.mxu0 0.0
      %1525 = vmatpush1.msra.mxu0 0.0
      %1526 = vmatprep.subr.mxu0 0.0
      %1527 = vmatpush1.msra.mxu0 0.0
      %1528 = vmatprep.subr.mxu0 0.0
      %1529 = vmatpush1.msra.mxu0 0.0
      %1530 = vmatprep.subr.mxu0 0.0
      %1531 = vmatpush1.msra.mxu0 0.0
      %1532 = vmatprep.subr.mxu0 0.0
      %1533 = vmatpush1.msra.mxu0 0.0
      %1534 = vmatprep.subr.mxu0 0.0
      %1535 = vmatpush1.msra.mxu0 0.0
      %1536 = vmatprep.subr.mxu0 0.0
      %1537 = vmatpush1.msra.mxu0 0.0
      %1538 = vmatprep.subr.mxu0 0.0
      %1539 = vmatpush1.msra.mxu0 0.0
      %1540 = vmatprep.subr.mxu0 0.0
      %1541 = vmatpush1.msra.mxu0 0.0
      %1542 = vmatprep.subr.mxu0 0.0
      %1543 = vmatpush1.msra.mxu0 0.0
      %1544 = vmatprep.subr.mxu0 0.0
      %1545 = vmatpush1.msra.mxu0 0.0
      %1546 = vmatprep.subr.mxu0 0.0
      %1547 = vmatpush1.msra.mxu0 0.0
      %1548 = vmatprep.subr.mxu0 0.0
      %1549 = vmatpush1.msra.mxu0 0.0
      %1550 = vmatprep.subr.mxu0 0.0
      %1551 = vmatpush1.msra.mxu0 0.0
      %1552 = vmatprep.subr.mxu0 0.0
      %1553 = vmatpush1.msra.mxu0 0.0
      %1554 = vmatprep.subr.mxu0 0.0
      %1555 = vmatpush1.msra.mxu0 0.0
      %1556 = vmatprep.subr.mxu0 0.0
      %1557 = vmatpush1.msra.mxu0 0.0
      %1558 = vmatprep.subr.mxu0 0.0
      %1559 = vmatpush1.msra.mxu0 0.0
      %1560 = vmatprep.subr.mxu0 0.0
      %1561 = vmatpush1.msra.mxu0 0.0
      %1562 = vmatprep.subr.mxu0 0.0
      %1563 = vmatpush1.msra.mxu0 0.0
      %1564 = vmatprep.subr.mxu0 0.0
      %1565 = vmatpush1.msra.mxu0 0.0
      %1566 = vmatprep.subr.mxu0 0.0
      %1567 = vmatpush1.msra.mxu0 0.0
      %1568 = vmatprep.subr.mxu0 0.0
      %1569 = vmatpush1.msra.mxu0 0.0
      %1570 = vmatprep.subr.mxu0 0.0
      %1571 = vmatpush1.msra.mxu0 0.0
      %1572 = vmatprep.subr.mxu0 0.0
      %1573 = vmatpush1.msra.mxu0 0.0
      %1574 = vmatprep.mubr.f32.mxu0 0.0
      %1575 = vmatmul.mubr.f32.gmra.mrb[0].mxu0 %v1505
      %v1576 = vpop.f32.mrb[0].mxu0
      %v1577 = vadd.f32 0.0, %v1576
      %v1578 = vpop.f32.mrb[0].mxu0
      %1579 = vmatprep.mubr.f32.mxu0 0.0
      %1580 = vmatmul.mubr.f32.gmra.mrb[0].mxu0 %v1508
      %v1581 = vpop.f32.mrb[0].mxu0
      %v1582 = vadd.f32 0.0, %v1581
      %v1583 = vpop.f32.mrb[0].mxu0
      %1584 = vdwg.mxu0
      %v1586 = vsel %vm1131, %v1151, 0
      %v1589 = vsel %vm1131, %v1153, 0
      %1591 = vmatprep.subr.mxu0 0.0
      %1592 = vmatpush1.msra.mxu0 %v1225
      %1593 = vmatprep.subr.mxu0 0.0
      %1594 = vmatpush1.msra.mxu0 %v1230
      %1595 = vmatprep.subr.mxu0 0.0
      %1596 = vmatpush1.msra.mxu0 0.0
      %1597 = vmatprep.subr.mxu0 0.0
      %1598 = vmatpush1.msra.mxu0 0.0
      %1599 = vmatprep.subr.mxu0 0.0
      %1600 = vmatpush1.msra.mxu0 0.0
      %1601 = vmatprep.subr.mxu0 0.0
      %1602 = vmatpush1.msra.mxu0 0.0
      %1603 = vmatprep.subr.mxu0 0.0
      %1604 = vmatpush1.msra.mxu0 0.0
      %1605 = vmatprep.subr.mxu0 0.0
      %1606 = vmatpush1.msra.mxu0 0.0
      %1607 = vmatprep.subr.mxu0 0.0
      %1608 = vmatpush1.msra.mxu0 0.0
      %1609 = vmatprep.subr.mxu0 0.0
      %1610 = vmatpush1.msra.mxu0 0.0
      %1611 = vmatprep.subr.mxu0 0.0
      %1612 = vmatpush1.msra.mxu0 0.0
      %1613 = vmatprep.subr.mxu0 0.0
      %1614 = vmatpush1.msra.mxu0 0.0
      %1615 = vmatprep.subr.mxu0 0.0
      %1616 = vmatpush1.msra.mxu0 0.0
      %1617 = vmatprep.subr.mxu0 0.0
      %1618 = vmatpush1.msra.mxu0 0.0
      %1619 = vmatprep.subr.mxu0 0.0
      %1620 = vmatpush1.msra.mxu0 0.0
      %1621 = vmatprep.subr.mxu0 0.0
      %1622 = vmatpush1.msra.mxu0 0.0
      %1623 = vmatprep.subr.mxu0 0.0
      %1624 = vmatpush1.msra.mxu0 0.0
      %1625 = vmatprep.subr.mxu0 0.0
      %1626 = vmatpush1.msra.mxu0 0.0
      %1627 = vmatprep.subr.mxu0 0.0
      %1628 = vmatpush1.msra.mxu0 0.0
      %1629 = vmatprep.subr.mxu0 0.0
      %1630 = vmatpush1.msra.mxu0 0.0
      %1631 = vmatprep.subr.mxu0 0.0
      %1632 = vmatpush1.msra.mxu0 0.0
      %1633 = vmatprep.subr.mxu0 0.0
      %1634 = vmatpush1.msra.mxu0 0.0
      %1635 = vmatprep.subr.mxu0 0.0
      %1636 = vmatpush1.msra.mxu0 0.0
      %1637 = vmatprep.subr.mxu0 0.0
      %1638 = vmatpush1.msra.mxu0 0.0
      %1639 = vmatprep.subr.mxu0 0.0
      %1640 = vmatpush1.msra.mxu0 0.0
      %1641 = vmatprep.subr.mxu0 0.0
      %1642 = vmatpush1.msra.mxu0 0.0
      %1643 = vmatprep.subr.mxu0 0.0
      %1644 = vmatpush1.msra.mxu0 0.0
      %1645 = vmatprep.subr.mxu0 0.0
      %1646 = vmatpush1.msra.mxu0 0.0
      %1647 = vmatprep.subr.mxu0 0.0
      %1648 = vmatpush1.msra.mxu0 0.0
      %1649 = vmatprep.subr.mxu0 0.0
      %1650 = vmatpush1.msra.mxu0 0.0
      %1651 = vmatprep.subr.mxu0 0.0
      %1652 = vmatpush1.msra.mxu0 0.0
      %1653 = vmatprep.subr.mxu0 0.0
      %1654 = vmatpush1.msra.mxu0 0.0
      %1655 = vmatprep.mubr.f32.mxu0 0.0
      %1656 = vmatmul.mubr.f32.gmra.mrb[0].mxu0 %v1586
      %v1657 = vpop.f32.mrb[0].mxu0
      %v1658 = vadd.f32 %v1577, %v1657
      %v1659 = vpop.f32.mrb[0].mxu0
      %1660 = vmatprep.mubr.f32.mxu0 0.0
      %1661 = vmatmul.mubr.f32.gmra.mrb[0].mxu0 %v1589
      %v1662 = vpop.f32.mrb[0].mxu0
      %v1663 = vadd.f32 %v1582, %v1662
      %v1664 = vpop.f32.mrb[0].mxu0
      %1665 = vdwg.mxu0
      %s1666 = scalar_lea.vmem %s4, 64
      %v1667 = vld [vmem:[%s1666] sm:$0xff]
      %v1668 = vld [vmem:[%s1666 + $0x8] sm:$0xff]
      %v1669 = vld [vmem:[%s1666 + $0x10] sm:$0xff]
      %v1670 = vld [vmem:[%s1666 + $0x18] sm:$0xff]
      %s1671 = scalar_lea.vmem %s5, 2
      %v1672 = vld [vmem:[%s1671] sm:$0x1]
      %v1674 = vlaneseq
      %v1675 = vshrl.u32 %v1674, 7
      %v1676 = vsub.s32 0, %v1675
      %v1677 = vrot.slane %v1672, %v1676
      %1679 = vmatprep.subr.mxu0 0.0
      %1680 = vmatpush1.msra.mxu0 %v1667
      %1681 = vmatprep.subr.mxu0 0.0
      %1682 = vmatpush1.msra.mxu0 %v1668
      %1683 = vmatprep.subr.mxu0 0.0
      %1684 = vmatpush1.msra.mxu0 %v1669
      %1685 = vmatprep.subr.mxu0 0.0
      %1686 = vmatpush1.msra.mxu0 %v1670
      %1687 = vmatprep.subr.mxu0 0.0
      %1688 = vmatpush1.msra.mxu0 0.0
      %1689 = vmatprep.subr.mxu0 0.0
      %1690 = vmatpush1.msra.mxu0 0.0
      %1691 = vmatprep.subr.mxu0 0.0
      %1692 = vmatpush1.msra.mxu0 0.0
      %1693 = vmatprep.subr.mxu0 0.0
      %1694 = vmatpush1.msra.mxu0 0.0
      %1695 = vmatprep.subr.mxu0 0.0
      %1696 = vmatpush1.msra.mxu0 0.0
      %1697 = vmatprep.subr.mxu0 0.0
      %1698 = vmatpush1.msra.mxu0 0.0
      %1699 = vmatprep.subr.mxu0 0.0
      %1700 = vmatpush1.msra.mxu0 0.0
      %1701 = vmatprep.subr.mxu0 0.0
      %1702 = vmatpush1.msra.mxu0 0.0
      %1703 = vmatprep.subr.mxu0 0.0
      %1704 = vmatpush1.msra.mxu0 0.0
      %1705 = vmatprep.subr.mxu0 0.0
      %1706 = vmatpush1.msra.mxu0 0.0
      %1707 = vmatprep.subr.mxu0 0.0
      %1708 = vmatpush1.msra.mxu0 0.0
      %1709 = vmatprep.subr.mxu0 0.0
      %1710 = vmatpush1.msra.mxu0 0.0
      %1711 = vmatprep.subr.mxu0 0.0
      %1712 = vmatpush1.msra.mxu0 0.0
      %1713 = vmatprep.subr.mxu0 0.0
      %1714 = vmatpush1.msra.mxu0 0.0
      %1715 = vmatprep.subr.mxu0 0.0
      %1716 = vmatpush1.msra.mxu0 0.0
      %1717 = vmatprep.subr.mxu0 0.0
      %1718 = vmatpush1.msra.mxu0 0.0
      %1719 = vmatprep.subr.mxu0 0.0
      %1720 = vmatpush1.msra.mxu0 0.0
      %1721 = vmatprep.subr.mxu0 0.0
      %1722 = vmatpush1.msra.mxu0 0.0
      %1723 = vmatprep.subr.mxu0 0.0
      %1724 = vmatpush1.msra.mxu0 0.0
      %1725 = vmatprep.subr.mxu0 0.0
      %1726 = vmatpush1.msra.mxu0 0.0
      %1727 = vmatprep.subr.mxu0 0.0
      %1728 = vmatpush1.msra.mxu0 0.0
      %1729 = vmatprep.subr.mxu0 0.0
      %1730 = vmatpush1.msra.mxu0 0.0
      %1731 = vmatprep.subr.mxu0 0.0
      %1732 = vmatpush1.msra.mxu0 0.0
      %1733 = vmatprep.subr.mxu0 0.0
      %1734 = vmatpush1.msra.mxu0 0.0
      %1735 = vmatprep.subr.mxu0 0.0
      %1736 = vmatpush1.msra.mxu0 0.0
      %1737 = vmatprep.subr.mxu0 0.0
      %1738 = vmatpush1.msra.mxu0 0.0
      %1739 = vmatprep.subr.mxu0 0.0
      %1740 = vmatpush1.msra.mxu0 0.0
      %1741 = vmatprep.subr.mxu0 0.0
      %1742 = vmatpush1.msra.mxu0 0.0
      %1743 = vmatprep.mubr.f32.mxu0 0.0
      %1744 = vmatmul.mubr.f32.gmra.mrb[0].mxu0 %v970
      %v1745 = vpop.f32.mrb[0].mxu0
      %v1746 = vadd.f32 %v1677, %v1745
      %v1747 = vpop.f32.mrb[0].mxu0
      %1748 = vmatprep.mubr.f32.mxu0 0.0
      %1749 = vmatmul.mubr.f32.gmra.mrb[0].mxu0 %v973
      %v1750 = vpop.f32.mrb[0].mxu0
      %v1751 = vadd.f32 %v1677, %v1750
      %v1752 = vpop.f32.mrb[0].mxu0
      %1753 = vdwg.mxu0
      %v1755 = vsel %vm874, %v1746, 0
      %v1758 = vsel %vm874, %v1751, 0
      %1760 = vmatprep.subr.mxu0 0.0
      %1761 = vmatpush1.xpose.msra.mxu0 %v970
      %1762 = vmatprep.subr.mxu0 0.0
      %1763 = vmatpush1.xpose.msra.mxu0 %v973
      %1764 = vmatprep.subr.mxu0 0.0
      %1765 = vmatpush1.xpose.msra.mxu0 0.0
      %1766 = vmatprep.subr.mxu0 0.0
      %1767 = vmatpush1.xpose.msra.mxu0 0.0
      %1768 = vmatprep.subr.mxu0 0.0
      %1769 = vmatpush1.xpose.msra.mxu0 0.0
      %1770 = vmatprep.subr.mxu0 0.0
      %1771 = vmatpush1.xpose.msra.mxu0 0.0
      %1772 = vmatprep.subr.mxu0 0.0
      %1773 = vmatpush1.xpose.msra.mxu0 0.0
      %1774 = vmatprep.subr.mxu0 0.0
      %1775 = vmatpush1.xpose.msra.mxu0 0.0
      %1776 = vmatprep.subr.mxu0 0.0
      %1777 = vmatpush1.xpose.msra.mxu0 0.0
      %1778 = vmatprep.subr.mxu0 0.0
      %1779 = vmatpush1.xpose.msra.mxu0 0.0
      %1780 = vmatprep.subr.mxu0 0.0
      %1781 = vmatpush1.xpose.msra.mxu0 0.0
      %1782 = vmatprep.subr.mxu0 0.0
      %1783 = vmatpush1.xpose.msra.mxu0 0.0
      %1784 = vmatprep.subr.mxu0 0.0
      %1785 = vmatpush1.xpose.msra.mxu0 0.0
      %1786 = vmatprep.subr.mxu0 0.0
      %1787 = vmatpush1.xpose.msra.mxu0 0.0
      %1788 = vmatprep.subr.mxu0 0.0
      %1789 = vmatpush1.xpose.msra.mxu0 0.0
      %1790 = vmatprep.subr.mxu0 0.0
      %1791 = vmatpush1.xpose.msra.mxu0 0.0
      %1792 = vmatprep.subr.mxu0 0.0
      %1793 = vmatpush1.xpose.msra.mxu0 0.0
      %1794 = vmatprep.subr.mxu0 0.0
      %1795 = vmatpush1.xpose.msra.mxu0 0.0
      %1796 = vmatprep.subr.mxu0 0.0
      %1797 = vmatpush1.xpose.msra.mxu0 0.0
      %1798 = vmatprep.subr.mxu0 0.0
      %1799 = vmatpush1.xpose.msra.mxu0 0.0
      %1800 = vmatprep.subr.mxu0 0.0
      %1801 = vmatpush1.xpose.msra.mxu0 0.0
      %1802 = vmatprep.subr.mxu0 0.0
      %1803 = vmatpush1.xpose.msra.mxu0 0.0
      %1804 = vmatprep.subr.mxu0 0.0
      %1805 = vmatpush1.xpose.msra.mxu0 0.0
      %1806 = vmatprep.subr.mxu0 0.0
      %1807 = vmatpush1.xpose.msra.mxu0 0.0
      %1808 = vmatprep.subr.mxu0 0.0
      %1809 = vmatpush1.xpose.msra.mxu0 0.0
      %1810 = vmatprep.subr.mxu0 0.0
      %1811 = vmatpush1.xpose.msra.mxu0 0.0
      %1812 = vmatprep.subr.mxu0 0.0
      %1813 = vmatpush1.xpose.msra.mxu0 0.0
      %1814 = vmatprep.subr.mxu0 0.0
      %1815 = vmatpush1.xpose.msra.mxu0 0.0
      %1816 = vmatprep.subr.mxu0 0.0
      %1817 = vmatpush1.xpose.msra.mxu0 0.0
      %1818 = vmatprep.subr.mxu0 0.0
      %1819 = vmatpush1.xpose.msra.mxu0 0.0
      %1820 = vmatprep.subr.mxu0 0.0
      %1821 = vmatpush1.xpose.msra.mxu0 0.0
      %1822 = vmatprep.subr.mxu0 0.0
      %1823 = vmatpush1.xpose.msra.mxu0 0.0
      %1824 = vmatprep.mubr.f32.mxu0 0.0
      %1825 = vmatmul.mubr.f32.gmra.mrb[0].mxu0 %v1755
      %v1826 = vpop.f32.mrb[0].mxu0
      %v1827 = vadd.f32 %v956, %v1826
      %v1828 = vpop.f32.mrb[0].mxu0
      %1829 = vmatprep.mubr.f32.mxu0 0.0
      %1830 = vmatmul.mubr.f32.gmra.mrb[0].mxu0 %v1758
      %v1831 = vpop.f32.mrb[0].mxu0
      %v1832 = vadd.f32 %v957, %v1831
      %v1833 = vpop.f32.mrb[0].mxu0
      %1834 = vdwg.mxu0
      %v1835 = vsel %vm1131, %v1827, -inf
      %1836 = vmax.xlane.f32.xlu0 %v1835
      %v1837 = vpop.xlane.xlu0 %1836
      %v1838 = vsel %vm1131, %v1832, -inf
      %1839 = vmax.xlane.f32.xlu0 %v1838
      %v1840 = vpop.xlane.xlu0 %1839
      %v1841 = vsub.f32 %v1827, %v1837
      %v1842 = vsub.f32 %v1832, %v1840
      %v1843 = vmul.f32 %v1841, 1.442695
      %v1844 = vpow.pop %v1843
      %v1845 = vmul.f32 %v1842, 1.442695
      %v1846 = vpow.pop %v1845
      %v1847 = vsel %vm1131, %v1844, 0.0
      %1848 = vadd.xlane.f32.xlu0 %v1847
      %v1849 = vpop.xlane.xlu0 %1848
      %v1850 = vsel %vm1131, %v1846, 0.0
      %1851 = vadd.xlane.f32.xlu0 %v1850
      %v1852 = vpop.xlane.xlu0 %1851
      %v1853 = vrcp.pop %v1849
      %v1854 = vmul.f32 %v1844, %v1853
      %v1855 = vrcp.pop %v1852
      %v1856 = vmul.f32 %v1846, %v1855
      %s1857 = scalar_lea.vmem %s6, 64
      %v1858 = vld [vmem:[%s1857] sm:$0xff]
      %v1859 = vld [vmem:[%s1857 + $0x8] sm:$0xff]
      %v1860 = vld [vmem:[%s1857 + $0x10] sm:$0xff]
      %v1861 = vld [vmem:[%s1857 + $0x18] sm:$0xff]
      %1862 = vmatprep.subr.mxu0 0.0
      %1863 = vmatpush1.msra.mxu0 %v1858
      %1864 = vmatprep.subr.mxu0 0.0
      %1865 = vmatpush1.msra.mxu0 %v1859
      %1866 = vmatprep.subr.mxu0 0.0
      %1867 = vmatpush1.msra.mxu0 %v1860
      %1868 = vmatprep.subr.mxu0 0.0
      %1869 = vmatpush1.msra.mxu0 %v1861
      %1870 = vmatprep.subr.mxu0 0.0
      %1871 = vmatpush1.msra.mxu0 0.0
      %1872 = vmatprep.subr.mxu0 0.0
      %1873 = vmatpush1.msra.mxu0 0.0
      %1874 = vmatprep.subr.mxu0 0.0
      %1875 = vmatpush1.msra.mxu0 0.0
      %1876 = vmatprep.subr.mxu0 0.0
      %1877 = vmatpush1.msra.mxu0 0.0
      %1878 = vmatprep.subr.mxu0 0.0
      %1879 = vmatpush1.msra.mxu0 0.0
      %1880 = vmatprep.subr.mxu0 0.0
      %1881 = vmatpush1.msra.mxu0 0.0
      %1882 = vmatprep.subr.mxu0 0.0
      %1883 = vmatpush1.msra.mxu0 0.0
      %1884 = vmatprep.subr.mxu0 0.0
      %1885 = vmatpush1.msra.mxu0 0.0
      %1886 = vmatprep.subr.mxu0 0.0
      %1887 = vmatpush1.msra.mxu0 0.0
      %1888 = vmatprep.subr.mxu0 0.0
      %1889 = vmatpush1.msra.mxu0 0.0
      %1890 = vmatprep.subr.mxu0 0.0
      %1891 = vmatpush1.msra.mxu0 0.0
      %1892 = vmatprep.subr.mxu0 0.0
      %1893 = vmatpush1.msra.mxu0 0.0
      %1894 = vmatprep.subr.mxu0 0.0
      %1895 = vmatpush1.msra.mxu0 0.0
      %1896 = vmatprep.subr.mxu0 0.0
      %1897 = vmatpush1.msra.mxu0 0.0
      %1898 = vmatprep.subr.mxu0 0.0
      %1899 = vmatpush1.msra.mxu0 0.0
      %1900 = vmatprep.subr.mxu0 0.0
      %1901 = vmatpush1.msra.mxu0 0.0
      %1902 = vmatprep.subr.mxu0 0.0
      %1903 = vmatpush1.msra.mxu0 0.0
      %1904 = vmatprep.subr.mxu0 0.0
      %1905 = vmatpush1.msra.mxu0 0.0
      %1906 = vmatprep.subr.mxu0 0.0
      %1907 = vmatpush1.msra.mxu0 0.0
      %1908 = vmatprep.subr.mxu0 0.0
      %1909 = vmatpush1.msra.mxu0 0.0
      %1910 = vmatprep.subr.mxu0 0.0
      %1911 = vmatpush1.msra.mxu0 0.0
      %1912 = vmatprep.subr.mxu0 0.0
      %1913 = vmatpush1.msra.mxu0 0.0
      %1914 = vmatprep.subr.mxu0 0.0
      %1915 = vmatpush1.msra.mxu0 0.0
      %1916 = vmatprep.subr.mxu0 0.0
      %1917 = vmatpush1.msra.mxu0 0.0
      %1918 = vmatprep.subr.mxu0 0.0
      %1919 = vmatpush1.msra.mxu0 0.0
      %1920 = vmatprep.subr.mxu0 0.0
      %1921 = vmatpush1.msra.mxu0 0.0
      %1922 = vmatprep.subr.mxu0 0.0
      %1923 = vmatpush1.msra.mxu0 0.0
      %1924 = vmatprep.subr.mxu0 0.0
      %1925 = vmatpush1.msra.mxu0 0.0
      %1926 = vmatprep.mubr.f32.mxu0 0.0
      %1927 = vmatmul.mubr.f32.gmra.mrb[0].mxu0 %v970
      %v1928 = vpop.f32.mrb[0].mxu0
      %v1929 = vadd.f32 0.0, %v1928
      %v1930 = vpop.f32.mrb[0].mxu0
      %1931 = vmatprep.mubr.f32.mxu0 0.0
      %1932 = vmatmul.mubr.f32.gmra.mrb[0].mxu0 %v973
      %v1933 = vpop.f32.mrb[0].mxu0
      %v1934 = vadd.f32 0.0, %v1933
      %v1935 = vpop.f32.mrb[0].mxu0
      %1936 = vdwg.mxu0
      %v1938 = vsel %vm1131, %v1854, 0
      %v1941 = vsel %vm1131, %v1856, 0
      %1943 = vmatprep.subr.mxu0 0.0
      %1944 = vmatpush1.msra.mxu0 %v1929
      %1945 = vmatprep.subr.mxu0 0.0
      %1946 = vmatpush1.msra.mxu0 %v1934
      %1947 = vmatprep.subr.mxu0 0.0
      %1948 = vmatpush1.msra.mxu0 0.0
      %1949 = vmatprep.subr.mxu0 0.0
      %1950 = vmatpush1.msra.mxu0 0.0
      %1951 = vmatprep.subr.mxu0 0.0
      %1952 = vmatpush1.msra.mxu0 0.0
      %1953 = vmatprep.subr.mxu0 0.0
      %1954 = vmatpush1.msra.mxu0 0.0
      %1955 = vmatprep.subr.mxu0 0.0
      %1956 = vmatpush1.msra.mxu0 0.0
      %1957 = vmatprep.subr.mxu0 0.0
      %1958 = vmatpush1.msra.mxu0 0.0
      %1959 = vmatprep.subr.mxu0 0.0
      %1960 = vmatpush1.msra.mxu0 0.0
      %1961 = vmatprep.subr.mxu0 0.0
      %1962 = vmatpush1.msra.mxu0 0.0
      %1963 = vmatprep.subr.mxu0 0.0
      %1964 = vmatpush1.msra.mxu0 0.0
      %1965 = vmatprep.subr.mxu0 0.0
      %1966 = vmatpush1.msra.mxu0 0.0
      %1967 = vmatprep.subr.mxu0 0.0
      %1968 = vmatpush1.msra.mxu0 0.0
      %1969 = vmatprep.subr.mxu0 0.0
      %1970 = vmatpush1.msra.mxu0 0.0
      %1971 = vmatprep.subr.mxu0 0.0
      %1972 = vmatpush1.msra.mxu0 0.0
      %1973 = vmatprep.subr.mxu0 0.0
      %1974 = vmatpush1.msra.mxu0 0.0
      %1975 = vmatprep.subr.mxu0 0.0
      %1976 = vmatpush1.msra.mxu0 0.0
      %1977 = vmatprep.subr.mxu0 0.0
      %1978 = vmatpush1.msra.mxu0 0.0
      %1979 = vmatprep.subr.mxu0 0.0
      %1980 = vmatpush1.msra.mxu0 0.0
      %1981 = vmatprep.subr.mxu0 0.0
      %1982 = vmatpush1.msra.mxu0 0.0
      %1983 = vmatprep.subr.mxu0 0.0
      %1984 = vmatpush1.msra.mxu0 0.0
      %1985 = vmatprep.subr.mxu0 0.0
      %1986 = vmatpush1.msra.mxu0 0.0
      %1987 = vmatprep.subr.mxu0 0.0
      %1988 = vmatpush1.msra.mxu0 0.0
      %1989 = vmatprep.subr.mxu0 0.0
      %1990 = vmatpush1.msra.mxu0 0.0
      %1991 = vmatprep.subr.mxu0 0.0
      %1992 = vmatpush1.msra.mxu0 0.0
      %1993 = vmatprep.subr.mxu0 0.0
      %1994 = vmatpush1.msra.mxu0 0.0
      %1995 = vmatprep.subr.mxu0 0.0
      %1996 = vmatpush1.msra.mxu0 0.0
      %1997 = vmatprep.subr.mxu0 0.0
      %1998 = vmatpush1.msra.mxu0 0.0
      %1999 = vmatprep.subr.mxu0 0.0
      %2000 = vmatpush1.msra.mxu0 0.0
      %2001 = vmatprep.subr.mxu0 0.0
      %2002 = vmatpush1.msra.mxu0 0.0
      %2003 = vmatprep.subr.mxu0 0.0
      %2004 = vmatpush1.msra.mxu0 0.0
      %2005 = vmatprep.subr.mxu0 0.0
      %2006 = vmatpush1.msra.mxu0 0.0
      %2007 = vmatprep.mubr.f32.mxu0 0.0
      %2008 = vmatmul.mubr.f32.gmra.mrb[0].mxu0 %v1938
      %v2009 = vpop.f32.mrb[0].mxu0
      %v2010 = vadd.f32 0.0, %v2009
      %v2011 = vpop.f32.mrb[0].mxu0
      %2012 = vmatprep.mubr.f32.mxu0 0.0
      %2013 = vmatmul.mubr.f32.gmra.mrb[0].mxu0 %v1941
      %v2014 = vpop.f32.mrb[0].mxu0
      %v2015 = vadd.f32 0.0, %v2014
      %v2016 = vpop.f32.mrb[0].mxu0
      %2017 = vdwg.mxu0
      %v2018 = vadd.f32 %v1658, %v2010
      %v2019 = vadd.f32 %v1663, %v2015
      %s2020 = scalar_lea.vmem %s4, 96
      %v2021 = vld [vmem:[%s2020] sm:$0xff]
      %v2022 = vld [vmem:[%s2020 + $0x8] sm:$0xff]
      %v2023 = vld [vmem:[%s2020 + $0x10] sm:$0xff]
      %v2024 = vld [vmem:[%s2020 + $0x18] sm:$0xff]
      %s2025 = scalar_lea.vmem %s5, 3
      %v2026 = vld [vmem:[%s2025] sm:$0x1]
      %v2028 = vlaneseq
      %v2029 = vshrl.u32 %v2028, 7
      %v2030 = vsub.s32 0, %v2029
      %v2031 = vrot.slane %v2026, %v2030
      %2033 = vmatprep.subr.mxu0 0.0
      %2034 = vmatpush1.msra.mxu0 %v2021
      %2035 = vmatprep.subr.mxu0 0.0
      %2036 = vmatpush1.msra.mxu0 %v2022
      %2037 = vmatprep.subr.mxu0 0.0
      %2038 = vmatpush1.msra.mxu0 %v2023
      %2039 = vmatprep.subr.mxu0 0.0
      %2040 = vmatpush1.msra.mxu0 %v2024
      %2041 = vmatprep.subr.mxu0 0.0
      %2042 = vmatpush1.msra.mxu0 0.0
      %2043 = vmatprep.subr.mxu0 0.0
      %2044 = vmatpush1.msra.mxu0 0.0
      %2045 = vmatprep.subr.mxu0 0.0
      %2046 = vmatpush1.msra.mxu0 0.0
      %2047 = vmatprep.subr.mxu0 0.0
      %2048 = vmatpush1.msra.mxu0 0.0
      %2049 = vmatprep.subr.mxu0 0.0
      %2050 = vmatpush1.msra.mxu0 0.0
      %2051 = vmatprep.subr.mxu0 0.0
      %2052 = vmatpush1.msra.mxu0 0.0
      %2053 = vmatprep.subr.mxu0 0.0
      %2054 = vmatpush1.msra.mxu0 0.0
      %2055 = vmatprep.subr.mxu0 0.0
      %2056 = vmatpush1.msra.mxu0 0.0
      %2057 = vmatprep.subr.mxu0 0.0
      %2058 = vmatpush1.msra.mxu0 0.0
      %2059 = vmatprep.subr.mxu0 0.0
      %2060 = vmatpush1.msra.mxu0 0.0
      %2061 = vmatprep.subr.mxu0 0.0
      %2062 = vmatpush1.msra.mxu0 0.0
      %2063 = vmatprep.subr.mxu0 0.0
      %2064 = vmatpush1.msra.mxu0 0.0
      %2065 = vmatprep.subr.mxu0 0.0
      %2066 = vmatpush1.msra.mxu0 0.0
      %2067 = vmatprep.subr.mxu0 0.0
      %2068 = vmatpush1.msra.mxu0 0.0
      %2069 = vmatprep.subr.mxu0 0.0
      %2070 = vmatpush1.msra.mxu0 0.0
      %2071 = vmatprep.subr.mxu0 0.0
      %2072 = vmatpush1.msra.mxu0 0.0
      %2073 = vmatprep.subr.mxu0 0.0
      %2074 = vmatpush1.msra.mxu0 0.0
      %2075 = vmatprep.subr.mxu0 0.0
      %2076 = vmatpush1.msra.mxu0 0.0
      %2077 = vmatprep.subr.mxu0 0.0
      %2078 = vmatpush1.msra.mxu0 0.0
      %2079 = vmatprep.subr.mxu0 0.0
      %2080 = vmatpush1.msra.mxu0 0.0
      %2081 = vmatprep.subr.mxu0 0.0
      %2082 = vmatpush1.msra.mxu0 0.0
      %2083 = vmatprep.subr.mxu0 0.0
      %2084 = vmatpush1.msra.mxu0 0.0
      %2085 = vmatprep.subr.mxu0 0.0
      %2086 = vmatpush1.msra.mxu0 0.0
      %2087 = vmatprep.subr.mxu0 0.0
      %2088 = vmatpush1.msra.mxu0 0.0
      %2089 = vmatprep.subr.mxu0 0.0
      %2090 = vmatpush1.msra.mxu0 0.0
      %2091 = vmatprep.subr.mxu0 0.0
      %2092 = vmatpush1.msra.mxu0 0.0
      %2093 = vmatprep.subr.mxu0 0.0
      %2094 = vmatpush1.msra.mxu0 0.0
      %2095 = vmatprep.subr.mxu0 0.0
      %2096 = vmatpush1.msra.mxu0 0.0
      %2097 = vmatprep.mubr.f32.mxu0 0.0
      %2098 = vmatmul.mubr.f32.gmra.mrb[0].mxu0 %v970
      %v2099 = vpop.f32.mrb[0].mxu0
      %v2100 = vadd.f32 %v2031, %v2099
      %v2101 = vpop.f32.mrb[0].mxu0
      %2102 = vmatprep.mubr.f32.mxu0 0.0
      %2103 = vmatmul.mubr.f32.gmra.mrb[0].mxu0 %v973
      %v2104 = vpop.f32.mrb[0].mxu0
      %v2105 = vadd.f32 %v2031, %v2104
      %v2106 = vpop.f32.mrb[0].mxu0
      %2107 = vdwg.mxu0
      %v2109 = vsel %vm874, %v2100, 0
      %v2112 = vsel %vm874, %v2105, 0
      %2114 = vmatprep.subr.mxu0 0.0
      %2115 = vmatpush1.xpose.msra.mxu0 %v970
      %2116 = vmatprep.subr.mxu0 0.0
      %2117 = vmatpush1.xpose.msra.mxu0 %v973
      %2118 = vmatprep.subr.mxu0 0.0
      %2119 = vmatpush1.xpose.msra.mxu0 0.0
      %2120 = vmatprep.subr.mxu0 0.0
      %2121 = vmatpush1.xpose.msra.mxu0 0.0
      %2122 = vmatprep.subr.mxu0 0.0
      %2123 = vmatpush1.xpose.msra.mxu0 0.0
      %2124 = vmatprep.subr.mxu0 0.0
      %2125 = vmatpush1.xpose.msra.mxu0 0.0
      %2126 = vmatprep.subr.mxu0 0.0
      %2127 = vmatpush1.xpose.msra.mxu0 0.0
      %2128 = vmatprep.subr.mxu0 0.0
      %2129 = vmatpush1.xpose.msra.mxu0 0.0
      %2130 = vmatprep.subr.mxu0 0.0
      %2131 = vmatpush1.xpose.msra.mxu0 0.0
      %2132 = vmatprep.subr.mxu0 0.0
      %2133 = vmatpush1.xpose.msra.mxu0 0.0
      %2134 = vmatprep.subr.mxu0 0.0
      %2135 = vmatpush1.xpose.msra.mxu0 0.0
      %2136 = vmatprep.subr.mxu0 0.0
      %2137 = vmatpush1.xpose.msra.mxu0 0.0
      %2138 = vmatprep.subr.mxu0 0.0
      %2139 = vmatpush1.xpose.msra.mxu0 0.0
      %2140 = vmatprep.subr.mxu0 0.0
      %2141 = vmatpush1.xpose.msra.mxu0 0.0
      %2142 = vmatprep.subr.mxu0 0.0
      %2143 = vmatpush1.xpose.msra.mxu0 0.0
      %2144 = vmatprep.subr.mxu0 0.0
      %2145 = vmatpush1.xpose.msra.mxu0 0.0
      %2146 = vmatprep.subr.mxu0 0.0
      %2147 = vmatpush1.xpose.msra.mxu0 0.0
      %2148 = vmatprep.subr.mxu0 0.0
      %2149 = vmatpush1.xpose.msra.mxu0 0.0
      %2150 = vmatprep.subr.mxu0 0.0
      %2151 = vmatpush1.xpose.msra.mxu0 0.0
      %2152 = vmatprep.subr.mxu0 0.0
      %2153 = vmatpush1.xpose.msra.mxu0 0.0
      %2154 = vmatprep.subr.mxu0 0.0
      %2155 = vmatpush1.xpose.msra.mxu0 0.0
      %2156 = vmatprep.subr.mxu0 0.0
      %2157 = vmatpush1.xpose.msra.mxu0 0.0
      %2158 = vmatprep.subr.mxu0 0.0
      %2159 = vmatpush1.xpose.msra.mxu0 0.0
      %2160 = vmatprep.subr.mxu0 0.0
      %2161 = vmatpush1.xpose.msra.mxu0 0.0
      %2162 = vmatprep.subr.mxu0 0.0
      %2163 = vmatpush1.xpose.msra.mxu0 0.0
      %2164 = vmatprep.subr.mxu0 0.0
      %2165 = vmatpush1.xpose.msra.mxu0 0.0
      %2166 = vmatprep.subr.mxu0 0.0
      %2167 = vmatpush1.xpose.msra.mxu0 0.0
      %2168 = vmatprep.subr.mxu0 0.0
      %2169 = vmatpush1.xpose.msra.mxu0 0.0
      %2170 = vmatprep.subr.mxu0 0.0
      %2171 = vmatpush1.xpose.msra.mxu0 0.0
      %2172 = vmatprep.subr.mxu0 0.0
      %2173 = vmatpush1.xpose.msra.mxu0 0.0
      %2174 = vmatprep.subr.mxu0 0.0
      %2175 = vmatpush1.xpose.msra.mxu0 0.0
      %2176 = vmatprep.subr.mxu0 0.0
      %2177 = vmatpush1.xpose.msra.mxu0 0.0
      %2178 = vmatprep.mubr.f32.mxu0 0.0
      %2179 = vmatmul.mubr.f32.gmra.mrb[0].mxu0 %v2109
      %v2180 = vpop.f32.mrb[0].mxu0
      %v2181 = vadd.f32 %v956, %v2180
      %v2182 = vpop.f32.mrb[0].mxu0
      %2183 = vmatprep.mubr.f32.mxu0 0.0
      %2184 = vmatmul.mubr.f32.gmra.mrb[0].mxu0 %v2112
      %v2185 = vpop.f32.mrb[0].mxu0
      %v2186 = vadd.f32 %v957, %v2185
      %v2187 = vpop.f32.mrb[0].mxu0
      %2188 = vdwg.mxu0
      %v2189 = vsel %vm1131, %v2181, -inf
      %2190 = vmax.xlane.f32.xlu0 %v2189
      %v2191 = vpop.xlane.xlu0 %2190
      %v2192 = vsel %vm1131, %v2186, -inf
      %2193 = vmax.xlane.f32.xlu0 %v2192
      %v2194 = vpop.xlane.xlu0 %2193
      %v2195 = vsub.f32 %v2181, %v2191
      %v2196 = vsub.f32 %v2186, %v2194
      %v2197 = vmul.f32 %v2195, 1.442695
      %v2198 = vpow.pop %v2197
      %v2199 = vmul.f32 %v2196, 1.442695
      %v2200 = vpow.pop %v2199
      %v2201 = vsel %vm1131, %v2198, 0.0
      %2202 = vadd.xlane.f32.xlu0 %v2201
      %v2203 = vpop.xlane.xlu0 %2202
      %v2204 = vsel %vm1131, %v2200, 0.0
      %2205 = vadd.xlane.f32.xlu0 %v2204
      %v2206 = vpop.xlane.xlu0 %2205
      %v2207 = vrcp.pop %v2203
      %v2208 = vmul.f32 %v2198, %v2207
      %v2209 = vrcp.pop %v2206
      %v2210 = vmul.f32 %v2200, %v2209
      %s2211 = scalar_lea.vmem %s6, 96
      %v2212 = vld [vmem:[%s2211] sm:$0xff]
      %v2213 = vld [vmem:[%s2211 + $0x8] sm:$0xff]
      %v2214 = vld [vmem:[%s2211 + $0x10] sm:$0xff]
      %v2215 = vld [vmem:[%s2211 + $0x18] sm:$0xff]
      %2216 = vmatprep.subr.mxu0 0.0
      %2217 = vmatpush1.msra.mxu0 %v2212
      %2218 = vmatprep.subr.mxu0 0.0
      %2219 = vmatpush1.msra.mxu0 %v2213
      %2220 = vmatprep.subr.mxu0 0.0
      %2221 = vmatpush1.msra.mxu0 %v2214
      %2222 = vmatprep.subr.mxu0 0.0
      %2223 = vmatpush1.msra.mxu0 %v2215
      %2224 = vmatprep.subr.mxu0 0.0
      %2225 = vmatpush1.msra.mxu0 0.0
      %2226 = vmatprep.subr.mxu0 0.0
      %2227 = vmatpush1.msra.mxu0 0.0
      %2228 = vmatprep.subr.mxu0 0.0
      %2229 = vmatpush1.msra.mxu0 0.0
      %2230 = vmatprep.subr.mxu0 0.0
      %2231 = vmatpush1.msra.mxu0 0.0
      %2232 = vmatprep.subr.mxu0 0.0
      %2233 = vmatpush1.msra.mxu0 0.0
      %2234 = vmatprep.subr.mxu0 0.0
      %2235 = vmatpush1.msra.mxu0 0.0
      %2236 = vmatprep.subr.mxu0 0.0
      %2237 = vmatpush1.msra.mxu0 0.0
      %2238 = vmatprep.subr.mxu0 0.0
      %2239 = vmatpush1.msra.mxu0 0.0
      %2240 = vmatprep.subr.mxu0 0.0
      %2241 = vmatpush1.msra.mxu0 0.0
      %2242 = vmatprep.subr.mxu0 0.0
      %2243 = vmatpush1.msra.mxu0 0.0
      %2244 = vmatprep.subr.mxu0 0.0
      %2245 = vmatpush1.msra.mxu0 0.0
      %2246 = vmatprep.subr.mxu0 0.0
      %2247 = vmatpush1.msra.mxu0 0.0
      %2248 = vmatprep.subr.mxu0 0.0
      %2249 = vmatpush1.msra.mxu0 0.0
      %2250 = vmatprep.subr.mxu0 0.0
      %2251 = vmatpush1.msra.mxu0 0.0
      %2252 = vmatprep.subr.mxu0 0.0
      %2253 = vmatpush1.msra.mxu0 0.0
      %2254 = vmatprep.subr.mxu0 0.0
      %2255 = vmatpush1.msra.mxu0 0.0
      %2256 = vmatprep.subr.mxu0 0.0
      %2257 = vmatpush1.msra.mxu0 0.0
      %2258 = vmatprep.subr.mxu0 0.0
      %2259 = vmatpush1.msra.mxu0 0.0
      %2260 = vmatprep.subr.mxu0 0.0
      %2261 = vmatpush1.msra.mxu0 0.0
      %2262 = vmatprep.subr.mxu0 0.0
      %2263 = vmatpush1.msra.mxu0 0.0
      %2264 = vmatprep.subr.mxu0 0.0
      %2265 = vmatpush1.msra.mxu0 0.0
      %2266 = vmatprep.subr.mxu0 0.0
      %2267 = vmatpush1.msra.mxu0 0.0
      %2268 = vmatprep.subr.mxu0 0.0
      %2269 = vmatpush1.msra.mxu0 0.0
      %2270 = vmatprep.subr.mxu0 0.0
      %2271 = vmatpush1.msra.mxu0 0.0
      %2272 = vmatprep.subr.mxu0 0.0
      %2273 = vmatpush1.msra.mxu0 0.0
      %2274 = vmatprep.subr.mxu0 0.0
      %2275 = vmatpush1.msra.mxu0 0.0
      %2276 = vmatprep.subr.mxu0 0.0
      %2277 = vmatpush1.msra.mxu0 0.0
      %2278 = vmatprep.subr.mxu0 0.0
      %2279 = vmatpush1.msra.mxu0 0.0
      %2280 = vmatprep.mubr.f32.mxu0 0.0
      %2281 = vmatmul.mubr.f32.gmra.mrb[0].mxu0 %v970
      %v2282 = vpop.f32.mrb[0].mxu0
      %v2283 = vadd.f32 0.0, %v2282
      %v2284 = vpop.f32.mrb[0].mxu0
      %2285 = vmatprep.mubr.f32.mxu0 0.0
      %2286 = vmatmul.mubr.f32.gmra.mrb[0].mxu0 %v973
      %v2287 = vpop.f32.mrb[0].mxu0
      %v2288 = vadd.f32 0.0, %v2287
      %v2289 = vpop.f32.mrb[0].mxu0
      %2290 = vdwg.mxu0
      %v2292 = vsel %vm1131, %v2208, 0
      %v2295 = vsel %vm1131, %v2210, 0
      %2297 = vmatprep.subr.mxu0 0.0
      %2298 = vmatpush1.msra.mxu0 %v2283
      %2299 = vmatprep.subr.mxu0 0.0
      %2300 = vmatpush1.msra.mxu0 %v2288
      %2301 = vmatprep.subr.mxu0 0.0
      %2302 = vmatpush1.msra.mxu0 0.0
      %2303 = vmatprep.subr.mxu0 0.0
      %2304 = vmatpush1.msra.mxu0 0.0
      %2305 = vmatprep.subr.mxu0 0.0
      %2306 = vmatpush1.msra.mxu0 0.0
      %2307 = vmatprep.subr.mxu0 0.0
      %2308 = vmatpush1.msra.mxu0 0.0
      %2309 = vmatprep.subr.mxu0 0.0
      %2310 = vmatpush1.msra.mxu0 0.0
      %2311 = vmatprep.subr.mxu0 0.0
      %2312 = vmatpush1.msra.mxu0 0.0
      %2313 = vmatprep.subr.mxu0 0.0
      %2314 = vmatpush1.msra.mxu0 0.0
      %2315 = vmatprep.subr.mxu0 0.0
      %2316 = vmatpush1.msra.mxu0 0.0
      %2317 = vmatprep.subr.mxu0 0.0
      %2318 = vmatpush1.msra.mxu0 0.0
      %2319 = vmatprep.subr.mxu0 0.0
      %2320 = vmatpush1.msra.mxu0 0.0
      %2321 = vmatprep.subr.mxu0 0.0
      %2322 = vmatpush1.msra.mxu0 0.0
      %2323 = vmatprep.subr.mxu0 0.0
      %2324 = vmatpush1.msra.mxu0 0.0
      %2325 = vmatprep.subr.mxu0 0.0
      %2326 = vmatpush1.msra.mxu0 0.0
      %2327 = vmatprep.subr.mxu0 0.0
      %2328 = vmatpush1.msra.mxu0 0.0
      %2329 = vmatprep.subr.mxu0 0.0
      %2330 = vmatpush1.msra.mxu0 0.0
      %2331 = vmatprep.subr.mxu0 0.0
      %2332 = vmatpush1.msra.mxu0 0.0
      %2333 = vmatprep.subr.mxu0 0.0
      %2334 = vmatpush1.msra.mxu0 0.0
      %2335 = vmatprep.subr.mxu0 0.0
      %2336 = vmatpush1.msra.mxu0 0.0
      %2337 = vmatprep.subr.mxu0 0.0
      %2338 = vmatpush1.msra.mxu0 0.0
      %2339 = vmatprep.subr.mxu0 0.0
      %2340 = vmatpush1.msra.mxu0 0.0
      %2341 = vmatprep.subr.mxu0 0.0
      %2342 = vmatpush1.msra.mxu0 0.0
      %2343 = vmatprep.subr.mxu0 0.0
      %2344 = vmatpush1.msra.mxu0 0.0
      %2345 = vmatprep.subr.mxu0 0.0
      %2346 = vmatpush1.msra.mxu0 0.0
      %2347 = vmatprep.subr.mxu0 0.0
      %2348 = vmatpush1.msra.mxu0 0.0
      %2349 = vmatprep.subr.mxu0 0.0
      %2350 = vmatpush1.msra.mxu0 0.0
      %2351 = vmatprep.subr.mxu0 0.0
      %2352 = vmatpush1.msra.mxu0 0.0
      %2353 = vmatprep.subr.mxu0 0.0
      %2354 = vmatpush1.msra.mxu0 0.0
      %2355 = vmatprep.subr.mxu0 0.0
      %2356 = vmatpush1.msra.mxu0 0.0
      %2357 = vmatprep.subr.mxu0 0.0
      %2358 = vmatpush1.msra.mxu0 0.0
      %2359 = vmatprep.subr.mxu0 0.0
      %2360 = vmatpush1.msra.mxu0 0.0
      %2361 = vmatprep.mubr.f32.mxu0 0.0
      %2362 = vmatmul.mubr.f32.gmra.mrb[0].mxu0 %v2292
      %v2363 = vpop.f32.mrb[0].mxu0
      %v2364 = vadd.f32 0.0, %v2363
      %v2365 = vpop.f32.mrb[0].mxu0
      %2366 = vmatprep.mubr.f32.mxu0 0.0
      %2367 = vmatmul.mubr.f32.gmra.mrb[0].mxu0 %v2295
      %v2368 = vpop.f32.mrb[0].mxu0
      %v2369 = vadd.f32 0.0, %v2368
      %v2370 = vpop.f32.mrb[0].mxu0
      %2371 = vdwg.mxu0
      %v2372 = vadd.f32 %v2018, %v2364
      %v2373 = vadd.f32 %v2019, %v2369
      %v2374 = vld [vmem:[%s7] sm:$0x1]
      %v2376 = vlaneseq
      %v2377 = vshrl.u32 %v2376, 7
      %v2378 = vsub.s32 0, %v2377
      %v2379 = vrot.slane %v2374, %v2378
      %v2381 = vadd.f32 %v2372, %v2379
      %v2382 = vadd.f32 %v2373, %v2379
      %v2383 = vadd.f32 %v948, %v2381
      %v2384 = vadd.f32 %v953, %v2382
      %v2385 = vld [vmem:[%s8] sm:$0x1]
      %v2386 = vld [vmem:[%s9] sm:$0x1]
      %v2387 = vsel %vm874, %v2383, 0.0
      %2388 = vadd.xlane.f32.xlu0 %v2387
      %v2389 = vpop.xlane.xlu0 %2388
      %v2390 = vsel %vm874, %v2384, 0.0
      %2391 = vadd.xlane.f32.xlu0 %v2390
      %v2392 = vpop.xlane.xlu0 %2391
      %v2393 = vrcp.pop 32.0
      %v2394 = vmul.f32 %v2389, %v2393
      %v2395 = vmul.f32 %v2392, %v2393
      %v2396 = vmul.f32 %v2383, %v2383
      %v2397 = vmul.f32 %v2384, %v2384
      %v2398 = vsel %vm874, %v2396, 0.0
      %2399 = vadd.xlane.f32.xlu0 %v2398
      %v2400 = vpop.xlane.xlu0 %2399
      %v2401 = vsel %vm874, %v2397, 0.0
      %2402 = vadd.xlane.f32.xlu0 %v2401
      %v2403 = vpop.xlane.xlu0 %2402
      %v2404 = vmul.f32 %v2400, %v2393
      %v2405 = vmul.f32 %v2403, %v2393
      %v2406 = vmul.f32 %v2394, %v2394
      %v2407 = vmul.f32 %v2395, %v2395
      %v2408 = vsub.f32 %v2404, %v2406
      %v2409 = vsub.f32 %v2405, %v2407
      %v2410 = vsub.f32 %v2383, %v2394
      %v2411 = vsub.f32 %v2384, %v2395
      %v2412 = vadd.f32 %v2408, 1e-05
      %v2413 = vadd.f32 %v2409, 1e-05
      %v2414 = vrsqrt.pop %v2412
      %v2415 = vrsqrt.pop %v2413
      %v2416 = vmul.f32 %v2410, %v2414
      %v2417 = vmul.f32 %v2411, %v2415
      %v2419 = vlaneseq
      %v2420 = vshrl.u32 %v2419, 7
      %v2421 = vsub.s32 0, %v2420
      %v2422 = vrot.slane %v2385, %v2421
      %v2424 = vmul.f32 %v2416, %v2422
      %v2425 = vmul.f32 %v2417, %v2422
      %v2427 = vlaneseq
      %v2428 = vshrl.u32 %v2427, 7
      %v2429 = vsub.s32 0, %v2428
      %v2430 = vrot.slane %v2386, %v2429
      %v2432 = vadd.f32 %v2424, %v2430
      %v2433 = vadd.f32 %v2425, %v2430
      %v2434 = vld [vmem:[%s10] sm:$0xff]
      %v2435 = vld [vmem:[%s10 + $0x8] sm:$0xff]
      %v2436 = vld [vmem:[%s10 + $0x10] sm:$0xff]
      %v2437 = vld [vmem:[%s10 + $0x18] sm:$0xff]
      %v2438 = vld [vmem:[%s11] sm:$0x1]
      %v2440 = vlaneseq
      %v2441 = vshrl.u32 %v2440, 7
      %v2442 = vsub.s32 0, %v2441
      %v2443 = vrot.slane %v2438, %v2442
      %v2446 = vsel %vm874, %v2432, 0
      %v2449 = vsel %vm874, %v2433, 0
      %2451 = vmatprep.subr.mxu0 0.0
      %2452 = vmatpush1.msra.mxu0 %v2434
      %2453 = vmatprep.subr.mxu0 0.0
      %2454 = vmatpush1.msra.mxu0 %v2435
      %2455 = vmatprep.subr.mxu0 0.0
      %2456 = vmatpush1.msra.mxu0 %v2436
      %2457 = vmatprep.subr.mxu0 0.0
      %2458 = vmatpush1.msra.mxu0 %v2437
      %2459 = vmatprep.subr.mxu0 0.0
      %2460 = vmatpush1.msra.mxu0 0.0
      %2461 = vmatprep.subr.mxu0 0.0
      %2462 = vmatpush1.msra.mxu0 0.0
      %2463 = vmatprep.subr.mxu0 0.0
      %2464 = vmatpush1.msra.mxu0 0.0
      %2465 = vmatprep.subr.mxu0 0.0
      %2466 = vmatpush1.msra.mxu0 0.0
      %2467 = vmatprep.subr.mxu0 0.0
      %2468 = vmatpush1.msra.mxu0 0.0
      %2469 = vmatprep.subr.mxu0 0.0
      %2470 = vmatpush1.msra.mxu0 0.0
      %2471 = vmatprep.subr.mxu0 0.0
      %2472 = vmatpush1.msra.mxu0 0.0
      %2473 = vmatprep.subr.mxu0 0.0
      %2474 = vmatpush1.msra.mxu0 0.0
      %2475 = vmatprep.subr.mxu0 0.0
      %2476 = vmatpush1.msra.mxu0 0.0
      %2477 = vmatprep.subr.mxu0 0.0
      %2478 = vmatpush1.msra.mxu0 0.0
      %2479 = vmatprep.subr.mxu0 0.0
      %2480 = vmatpush1.msra.mxu0 0.0
      %2481 = vmatprep.subr.mxu0 0.0
      %2482 = vmatpush1.msra.mxu0 0.0
      %2483 = vmatprep.subr.mxu0 0.0
      %2484 = vmatpush1.msra.mxu0 0.0
      %2485 = vmatprep.subr.mxu0 0.0
      %2486 = vmatpush1.msra.mxu0 0.0
      %2487 = vmatprep.subr.mxu0 0.0
      %2488 = vmatpush1.msra.mxu0 0.0
      %2489 = vmatprep.subr.mxu0 0.0
      %2490 = vmatpush1.msra.mxu0 0.0
      %2491 = vmatprep.subr.mxu0 0.0
      %2492 = vmatpush1.msra.mxu0 0.0
      %2493 = vmatprep.subr.mxu0 0.0
      %2494 = vmatpush1.msra.mxu0 0.0
      %2495 = vmatprep.subr.mxu0 0.0
      %2496 = vmatpush1.msra.mxu0 0.0
      %2497 = vmatprep.subr.mxu0 0.0
      %2498 = vmatpush1.msra.mxu0 0.0
      %2499 = vmatprep.subr.mxu0 0.0
      %2500 = vmatpush1.msra.mxu0 0.0
      %2501 = vmatprep.subr.mxu0 0.0
      %2502 = vmatpush1.msra.mxu0 0.0
      %2503 = vmatprep.subr.mxu0 0.0
      %2504 = vmatpush1.msra.mxu0 0.0
      %2505 = vmatprep.subr.mxu0 0.0
      %2506 = vmatpush1.msra.mxu0 0.0
      %2507 = vmatprep.subr.mxu0 0.0
      %2508 = vmatpush1.msra.mxu0 0.0
      %2509 = vmatprep.subr.mxu0 0.0
      %2510 = vmatpush1.msra.mxu0 0.0
      %2511 = vmatprep.subr.mxu0 0.0
      %2512 = vmatpush1.msra.mxu0 0.0
      %2513 = vmatprep.subr.mxu0 0.0
      %2514 = vmatpush1.msra.mxu0 0.0
      %2515 = vmatprep.mubr.f32.mxu0 0.0
      %2516 = vmatmul.mubr.f32.gmra.mrb[0].mxu0 %v2446
      %v2517 = vpop.f32.mrb[0].mxu0
      %v2518 = vadd.f32 %v2443, %v2517
      %v2519 = vpop.f32.mrb[0].mxu0
      %2520 = vmatprep.mubr.f32.mxu0 0.0
      %2521 = vmatmul.mubr.f32.gmra.mrb[0].mxu0 %v2449
      %v2522 = vpop.f32.mrb[0].mxu0
      %v2523 = vadd.f32 %v2443, %v2522
      %v2524 = vpop.f32.mrb[0].mxu0
      %2525 = vdwg.mxu0
      %v2526 = vmax.f32 %v2518, 0.0
      %v2527 = vmax.f32 %v2523, 0.0
      %v2528 = vld [vmem:[%s12] sm:$0xff]
      %v2529 = vld [vmem:[%s12 + $0x8] sm:$0xff]
      %v2530 = vld [vmem:[%s12 + $0x10] sm:$0xff]
      %v2531 = vld [vmem:[%s12 + $0x18] sm:$0xff]
      %v2532 = vld [vmem:[%s12 + $0x20] sm:$0xff]
      %v2533 = vld [vmem:[%s12 + $0x28] sm:$0xff]
      %v2534 = vld [vmem:[%s12 + $0x30] sm:$0xff]
      %v2535 = vld [vmem:[%s12 + $0x38] sm:$0xff]
      %v2536 = vld [vmem:[%s13] sm:$0x1]
      %v2538 = vlaneseq
      %v2539 = vshrl.u32 %v2538, 7
      %v2540 = vsub.s32 0, %v2539
      %v2541 = vrot.slane %v2536, %v2540
      %vm2543 = vcmask 523264
      %v2545 = vsel %vm2543, %v2526, 0
      %v2548 = vsel %vm2543, %v2527, 0
      %2550 = vmatprep.subr.mxu0 0.0
      %2551 = vmatpush1.msra.mxu0 %v2528
      %2552 = vmatprep.subr.mxu0 0.0
      %2553 = vmatpush1.msra.mxu0 %v2529
      %2554 = vmatprep.subr.mxu0 0.0
      %2555 = vmatpush1.msra.mxu0 %v2530
      %2556 = vmatprep.subr.mxu0 0.0
      %2557 = vmatpush1.msra.mxu0 %v2531
      %2558 = vmatprep.subr.mxu0 0.0
      %2559 = vmatpush1.msra.mxu0 %v2532
      %2560 = vmatprep.subr.mxu0 0.0
      %2561 = vmatpush1.msra.mxu0 %v2533
      %2562 = vmatprep.subr.mxu0 0.0
      %2563 = vmatpush1.msra.mxu0 %v2534
      %2564 = vmatprep.subr.mxu0 0.0
      %2565 = vmatpush1.msra.mxu0 %v2535
      %2566 = vmatprep.subr.mxu0 0.0
      %2567 = vmatpush1.msra.mxu0 0.0
      %2568 = vmatprep.subr.mxu0 0.0
      %2569 = vmatpush1.msra.mxu0 0.0
      %2570 = vmatprep.subr.mxu0 0.0
      %2571 = vmatpush1.msra.mxu0 0.0
      %2572 = vmatprep.subr.mxu0 0.0
      %2573 = vmatpush1.msra.mxu0 0.0
      %2574 = vmatprep.subr.mxu0 0.0
      %2575 = vmatpush1.msra.mxu0 0.0
      %2576 = vmatprep.subr.mxu0 0.0
      %2577 = vmatpush1.msra.mxu0 0.0
      %2578 = vmatprep.subr.mxu0 0.0
      %2579 = vmatpush1.msra.mxu0 0.0
      %2580 = vmatprep.subr.mxu0 0.0
      %2581 = vmatpush1.msra.mxu0 0.0
      %2582 = vmatprep.subr.mxu0 0.0
      %2583 = vmatpush1.msra.mxu0 0.0
      %2584 = vmatprep.subr.mxu0 0.0
      %2585 = vmatpush1.msra.mxu0 0.0
      %2586 = vmatprep.subr.mxu0 0.0
      %2587 = vmatpush1.msra.mxu0 0.0
      %2588 = vmatprep.subr.mxu0 0.0
      %2589 = vmatpush1.msra.mxu0 0.0
      %2590 = vmatprep.subr.mxu0 0.0
      %2591 = vmatpush1.msra.mxu0 0.0
      %2592 = vmatprep.subr.mxu0 0.0
      %2593 = vmatpush1.msra.mxu0 0.0
      %2594 = vmatprep.subr.mxu0 0.0
      %2595 = vmatpush1.msra.mxu0 0.0
      %2596 = vmatprep.subr.mxu0 0.0
      %2597 = vmatpush1.msra.mxu0 0.0
      %2598 = vmatprep.subr.mxu0 0.0
      %2599 = vmatpush1.msra.mxu0 0.0
      %2600 = vmatprep.subr.mxu0 0.0
      %2601 = vmatpush1.msra.mxu0 0.0
      %2602 = vmatprep.subr.mxu0 0.0
      %2603 = vmatpush1.msra.mxu0 0.0
      %2604 = vmatprep.subr.mxu0 0.0
      %2605 = vmatpush1.msra.mxu0 0.0
      %2606 = vmatprep.subr.mxu0 0.0
      %2607 = vmatpush1.msra.mxu0 0.0
      %2608 = vmatprep.subr.mxu0 0.0
      %2609 = vmatpush1.msra.mxu0 0.0
      %2610 = vmatprep.subr.mxu0 0.0
      %2611 = vmatpush1.msra.mxu0 0.0
      %2612 = vmatprep.subr.mxu0 0.0
      %2613 = vmatpush1.msra.mxu0 0.0
      %2614 = vmatprep.mubr.f32.mxu0 0.0
      %2615 = vmatmul.mubr.f32.gmra.mrb[0].mxu0 %v2545
      %v2616 = vpop.f32.mrb[0].mxu0
      %v2617 = vadd.f32 %v2541, %v2616
      %v2618 = vpop.f32.mrb[0].mxu0
      %2619 = vmatprep.mubr.f32.mxu0 0.0
      %2620 = vmatmul.mubr.f32.gmra.mrb[0].mxu0 %v2548
      %v2621 = vpop.f32.mrb[0].mxu0
      %v2622 = vadd.f32 %v2541, %v2621
      %v2623 = vpop.f32.mrb[0].mxu0
      %2624 = vdwg.mxu0
      %v2625 = vadd.f32 %v2432, %v2617
      %v2626 = vadd.f32 %v2433, %v2622
      %v2627 = vld [vmem:[%s14] sm:$0x1]
      %v2628 = vld [vmem:[%s15] sm:$0x1]
      %v2629 = vsel %vm874, %v2625, 0.0
      %2630 = vadd.xlane.f32.xlu0 %v2629
      %v2631 = vpop.xlane.xlu0 %2630
      %v2632 = vsel %vm874, %v2626, 0.0
      %2633 = vadd.xlane.f32.xlu0 %v2632
      %v2634 = vpop.xlane.xlu0 %2633
      %v2635 = vmul.f32 %v2631, %v2393
      %v2636 = vmul.f32 %v2634, %v2393
      %v2637 = vmul.f32 %v2625, %v2625
      %v2638 = vmul.f32 %v2626, %v2626
      %v2639 = vsel %vm874, %v2637, 0.0
      %2640 = vadd.xlane.f32.xlu0 %v2639
      %v2641 = vpop.xlane.xlu0 %2640
      %v2642 = vsel %vm874, %v2638, 0.0
      %2643 = vadd.xlane.f32.xlu0 %v2642
      %v2644 = vpop.xlane.xlu0 %2643
      %v2645 = vmul.f32 %v2641, %v2393
      %v2646 = vmul.f32 %v2644, %v2393
      %v2647 = vmul.f32 %v2635, %v2635
      %v2648 = vmul.f32 %v2636, %v2636
      %v2649 = vsub.f32 %v2645, %v2647
      %v2650 = vsub.f32 %v2646, %v2648
      %v2651 = vsub.f32 %v2625, %v2635
      %v2652 = vsub.f32 %v2626, %v2636
      %v2653 = vadd.f32 %v2649, 1e-05
      %v2654 = vadd.f32 %v2650, 1e-05
      %v2655 = vrsqrt.pop %v2653
      %v2656 = vrsqrt.pop %v2654
      %v2657 = vmul.f32 %v2651, %v2655
      %v2658 = vmul.f32 %v2652, %v2656
      %v2660 = vlaneseq
      %v2661 = vshrl.u32 %v2660, 7
      %v2662 = vsub.s32 0, %v2661
      %v2663 = vrot.slane %v2627, %v2662
      %v2665 = vmul.f32 %v2657, %v2663
      %v2666 = vmul.f32 %v2658, %v2663
      %v2668 = vlaneseq
      %v2669 = vshrl.u32 %v2668, 7
      %v2670 = vsub.s32 0, %v2669
      %v2671 = vrot.slane %v2628, %v2670
      %v2673 = vadd.f32 %v2665, %v2671
      %v2674 = vadd.f32 %v2666, %v2671
      %v2675 = vld [vmem:[%s16] sm:$0xff]
      %v2676 = vld [vmem:[%s16 + $0x8] sm:$0xff]
      %v2677 = vld [vmem:[%s16 + $0x10] sm:$0xff]
      %v2678 = vld [vmem:[%s16 + $0x18] sm:$0xff]
      %v2679 = vld [vmem:[%s17] sm:$0x1]
      %v2681 = vlaneseq
      %v2682 = vshrl.u32 %v2681, 7
      %v2683 = vsub.s32 0, %v2682
      %v2684 = vrot.slane %v2679, %v2683
      %v2687 = vsel %vm874, %v2673, 0
      %v2690 = vsel %vm874, %v2674, 0
      %2692 = vmatprep.subr.mxu0 0.0
      %2693 = vmatpush1.msra.mxu0 %v2675
      %2694 = vmatprep.subr.mxu0 0.0
      %2695 = vmatpush1.msra.mxu0 %v2676
      %2696 = vmatprep.subr.mxu0 0.0
      %2697 = vmatpush1.msra.mxu0 %v2677
      %2698 = vmatprep.subr.mxu0 0.0
      %2699 = vmatpush1.msra.mxu0 %v2678
      %2700 = vmatprep.subr.mxu0 0.0
      %2701 = vmatpush1.msra.mxu0 0.0
      %2702 = vmatprep.subr.mxu0 0.0
      %2703 = vmatpush1.msra.mxu0 0.0
      %2704 = vmatprep.subr.mxu0 0.0
      %2705 = vmatpush1.msra.mxu0 0.0
      %2706 = vmatprep.subr.mxu0 0.0
      %2707 = vmatpush1.msra.mxu0 0.0
      %2708 = vmatprep.subr.mxu0 0.0
      %2709 = vmatpush1.msra.mxu0 0.0
      %2710 = vmatprep.subr.mxu0 0.0
      %2711 = vmatpush1.msra.mxu0 0.0
      %2712 = vmatprep.subr.mxu0 0.0
      %2713 = vmatpush1.msra.mxu0 0.0
      %2714 = vmatprep.subr.mxu0 0.0
      %2715 = vmatpush1.msra.mxu0 0.0
      %2716 = vmatprep.subr.mxu0 0.0
      %2717 = vmatpush1.msra.mxu0 0.0
      %2718 = vmatprep.subr.mxu0 0.0
      %2719 = vmatpush1.msra.mxu0 0.0
      %2720 = vmatprep.subr.mxu0 0.0
      %2721 = vmatpush1.msra.mxu0 0.0
      %2722 = vmatprep.subr.mxu0 0.0
      %2723 = vmatpush1.msra.mxu0 0.0
      %2724 = vmatprep.subr.mxu0 0.0
      %2725 = vmatpush1.msra.mxu0 0.0
      %2726 = vmatprep.subr.mxu0 0.0
      %2727 = vmatpush1.msra.mxu0 0.0
      %2728 = vmatprep.subr.mxu0 0.0
      %2729 = vmatpush1.msra.mxu0 0.0
      %2730 = vmatprep.subr.mxu0 0.0
      %2731 = vmatpush1.msra.mxu0 0.0
      %2732 = vmatprep.subr.mxu0 0.0
      %2733 = vmatpush1.msra.mxu0 0.0
      %2734 = vmatprep.subr.mxu0 0.0
      %2735 = vmatpush1.msra.mxu0 0.0
      %2736 = vmatprep.subr.mxu0 0.0
      %2737 = vmatpush1.msra.mxu0 0.0
      %2738 = vmatprep.subr.mxu0 0.0
      %2739 = vmatpush1.msra.mxu0 0.0
      %2740 = vmatprep.subr.mxu0 0.0
      %2741 = vmatpush1.msra.mxu0 0.0
      %2742 = vmatprep.subr.mxu0 0.0
      %2743 = vmatpush1.msra.mxu0 0.0
      %2744 = vmatprep.subr.mxu0 0.0
      %2745 = vmatpush1.msra.mxu0 0.0
      %2746 = vmatprep.subr.mxu0 0.0
      %2747 = vmatpush1.msra.mxu0 0.0
      %2748 = vmatprep.subr.mxu0 0.0
      %2749 = vmatpush1.msra.mxu0 0.0
      %2750 = vmatprep.subr.mxu0 0.0
      %2751 = vmatpush1.msra.mxu0 0.0
      %2752 = vmatprep.subr.mxu0 0.0
      %2753 = vmatpush1.msra.mxu0 0.0
      %2754 = vmatprep.subr.mxu0 0.0
      %2755 = vmatpush1.msra.mxu0 0.0
      %2756 = vmatprep.mubr.f32.mxu0 0.0
      %2757 = vmatmul.mubr.f32.gmra.mrb[0].mxu0 %v2687
      %v2758 = vpop.f32.mrb[0].mxu0
      %v2759 = vadd.f32 %v2684, %v2758
      %v2760 = vpop.f32.mrb[0].mxu0
      %2761 = vmatprep.mubr.f32.mxu0 0.0
      %2762 = vmatmul.mubr.f32.gmra.mrb[0].mxu0 %v2690
      %v2763 = vpop.f32.mrb[0].mxu0
      %v2764 = vadd.f32 %v2684, %v2763
      %v2765 = vpop.f32.mrb[0].mxu0
      %2766 = vdwg.mxu0
      %v2768 = vsel %vm874, %v2759, 0
      %v2771 = vsel %vm874, %v2764, 0
      %2773 = vmatprep.subr.mxu0 0.0
      %2774 = vmatpush1.xpose.msra.mxu0 %v2687
      %2775 = vmatprep.subr.mxu0 0.0
      %2776 = vmatpush1.xpose.msra.mxu0 %v2690
      %2777 = vmatprep.subr.mxu0 0.0
      %2778 = vmatpush1.xpose.msra.mxu0 0.0
      %2779 = vmatprep.subr.mxu0 0.0
      %2780 = vmatpush1.xpose.msra.mxu0 0.0
      %2781 = vmatprep.subr.mxu0 0.0
      %2782 = vmatpush1.xpose.msra.mxu0 0.0
      %2783 = vmatprep.subr.mxu0 0.0
      %2784 = vmatpush1.xpose.msra.mxu0 0.0
      %2785 = vmatprep.subr.mxu0 0.0
      %2786 = vmatpush1.xpose.msra.mxu0 0.0
      %2787 = vmatprep.subr.mxu0 0.0
      %2788 = vmatpush1.xpose.msra.mxu0 0.0
      %2789 = vmatprep.subr.mxu0 0.0
      %2790 = vmatpush1.xpose.msra.mxu0 0.0
      %2791 = vmatprep.subr.mxu0 0.0
      %2792 = vmatpush1.xpose.msra.mxu0 0.0
      %2793 = vmatprep.subr.mxu0 0.0
      %2794 = vmatpush1.xpose.msra.mxu0 0.0
      %2795 = vmatprep.subr.mxu0 0.0
      %2796 = vmatpush1.xpose.msra.mxu0 0.0
      %2797 = vmatprep.subr.mxu0 0.0
      %2798 = vmatpush1.xpose.msra.mxu0 0.0
      %2799 = vmatprep.subr.mxu0 0.0
      %2800 = vmatpush1.xpose.msra.mxu0 0.0
      %2801 = vmatprep.subr.mxu0 0.0
      %2802 = vmatpush1.xpose.msra.mxu0 0.0
      %2803 = vmatprep.subr.mxu0 0.0
      %2804 = vmatpush1.xpose.msra.mxu0 0.0
      %2805 = vmatprep.subr.mxu0 0.0
      %2806 = vmatpush1.xpose.msra.mxu0 0.0
      %2807 = vmatprep.subr.mxu0 0.0
      %2808 = vmatpush1.xpose.msra.mxu0 0.0
      %2809 = vmatprep.subr.mxu0 0.0
      %2810 = vmatpush1.xpose.msra.mxu0 0.0
      %2811 = vmatprep.subr.mxu0 0.0
      %2812 = vmatpush1.xpose.msra.mxu0 0.0
      %2813 = vmatprep.subr.mxu0 0.0
      %2814 = vmatpush1.xpose.msra.mxu0 0.0
      %2815 = vmatprep.subr.mxu0 0.0
      %2816 = vmatpush1.xpose.msra.mxu0 0.0
      %2817 = vmatprep.subr.mxu0 0.0
      %2818 = vmatpush1.xpose.msra.mxu0 0.0
      %2819 = vmatprep.subr.mxu0 0.0
      %2820 = vmatpush1.xpose.msra.mxu0 0.0
      %2821 = vmatprep.subr.mxu0 0.0
      %2822 = vmatpush1.xpose.msra.mxu0 0.0
      %2823 = vmatprep.subr.mxu0 0.0
      %2824 = vmatpush1.xpose.msra.mxu0 0.0
      %2825 = vmatprep.subr.mxu0 0.0
      %2826 = vmatpush1.xpose.msra.mxu0 0.0
      %2827 = vmatprep.subr.mxu0 0.0
      %2828 = vmatpush1.xpose.msra.mxu0 0.0
      %2829 = vmatprep.subr.mxu0 0.0
      %2830 = vmatpush1.xpose.msra.mxu0 0.0
      %2831 = vmatprep.subr.mxu0 0.0
      %2832 = vmatpush1.xpose.msra.mxu0 0.0
      %2833 = vmatprep.subr.mxu0 0.0
      %2834 = vmatpush1.xpose.msra.mxu0 0.0
      %2835 = vmatprep.subr.mxu0 0.0
      %2836 = vmatpush1.xpose.msra.mxu0 0.0
      %2837 = vmatprep.mubr.f32.mxu0 0.0
      %2838 = vmatmul.mubr.f32.gmra.mrb[0].mxu0 %v2768
      %v2839 = vpop.f32.mrb[0].mxu0
      %v2840 = vadd.f32 %v956, %v2839
      %v2841 = vpop.f32.mrb[0].mxu0
      %2842 = vmatprep.mubr.f32.mxu0 0.0
      %2843 = vmatmul.mubr.f32.gmra.mrb[0].mxu0 %v2771
      %v2844 = vpop.f32.mrb[0].mxu0
      %v2845 = vadd.f32 %v957, %v2844
      %v2846 = vpop.f32.mrb[0].mxu0
      %2847 = vdwg.mxu0
      %v2848 = vsel %vm1131, %v2840, -inf
      %2849 = vmax.xlane.f32.xlu0 %v2848
      %v2850 = vpop.xlane.xlu0 %2849
      %v2851 = vsel %vm1131, %v2845, -inf
      %2852 = vmax.xlane.f32.xlu0 %v2851
      %v2853 = vpop.xlane.xlu0 %2852
      %v2854 = vsub.f32 %v2840, %v2850
      %v2855 = vsub.f32 %v2845, %v2853
      %v2856 = vmul.f32 %v2854, 1.442695
      %v2857 = vpow.pop %v2856
      %v2858 = vmul.f32 %v2855, 1.442695
      %v2859 = vpow.pop %v2858
      %v2860 = vsel %vm1131, %v2857, 0.0
      %2861 = vadd.xlane.f32.xlu0 %v2860
      %v2862 = vpop.xlane.xlu0 %2861
      %v2863 = vsel %vm1131, %v2859, 0.0
      %2864 = vadd.xlane.f32.xlu0 %v2863
      %v2865 = vpop.xlane.xlu0 %2864
      %v2866 = vrcp.pop %v2862
      %v2867 = vmul.f32 %v2857, %v2866
      %v2868 = vrcp.pop %v2865
      %v2869 = vmul.f32 %v2859, %v2868
      %v2870 = vld [vmem:[%s18] sm:$0xff]
      %v2871 = vld [vmem:[%s18 + $0x8] sm:$0xff]
      %v2872 = vld [vmem:[%s18 + $0x10] sm:$0xff]
      %v2873 = vld [vmem:[%s18 + $0x18] sm:$0xff]
      %2874 = vmatprep.subr.mxu0 0.0
      %2875 = vmatpush1.msra.mxu0 %v2870
      %2876 = vmatprep.subr.mxu0 0.0
      %2877 = vmatpush1.msra.mxu0 %v2871
      %2878 = vmatprep.subr.mxu0 0.0
      %2879 = vmatpush1.msra.mxu0 %v2872
      %2880 = vmatprep.subr.mxu0 0.0
      %2881 = vmatpush1.msra.mxu0 %v2873
      %2882 = vmatprep.subr.mxu0 0.0
      %2883 = vmatpush1.msra.mxu0 0.0
      %2884 = vmatprep.subr.mxu0 0.0
      %2885 = vmatpush1.msra.mxu0 0.0
      %2886 = vmatprep.subr.mxu0 0.0
      %2887 = vmatpush1.msra.mxu0 0.0
      %2888 = vmatprep.subr.mxu0 0.0
      %2889 = vmatpush1.msra.mxu0 0.0
      %2890 = vmatprep.subr.mxu0 0.0
      %2891 = vmatpush1.msra.mxu0 0.0
      %2892 = vmatprep.subr.mxu0 0.0
      %2893 = vmatpush1.msra.mxu0 0.0
      %2894 = vmatprep.subr.mxu0 0.0
      %2895 = vmatpush1.msra.mxu0 0.0
      %2896 = vmatprep.subr.mxu0 0.0
      %2897 = vmatpush1.msra.mxu0 0.0
      %2898 = vmatprep.subr.mxu0 0.0
      %2899 = vmatpush1.msra.mxu0 0.0
      %2900 = vmatprep.subr.mxu0 0.0
      %2901 = vmatpush1.msra.mxu0 0.0
      %2902 = vmatprep.subr.mxu0 0.0
      %2903 = vmatpush1.msra.mxu0 0.0
      %2904 = vmatprep.subr.mxu0 0.0
      %2905 = vmatpush1.msra.mxu0 0.0
      %2906 = vmatprep.subr.mxu0 0.0
      %2907 = vmatpush1.msra.mxu0 0.0
      %2908 = vmatprep.subr.mxu0 0.0
      %2909 = vmatpush1.msra.mxu0 0.0
      %2910 = vmatprep.subr.mxu0 0.0
      %2911 = vmatpush1.msra.mxu0 0.0
      %2912 = vmatprep.subr.mxu0 0.0
      %2913 = vmatpush1.msra.mxu0 0.0
      %2914 = vmatprep.subr.mxu0 0.0
      %2915 = vmatpush1.msra.mxu0 0.0
      %2916 = vmatprep.subr.mxu0 0.0
      %2917 = vmatpush1.msra.mxu0 0.0
      %2918 = vmatprep.subr.mxu0 0.0
      %2919 = vmatpush1.msra.mxu0 0.0
      %2920 = vmatprep.subr.mxu0 0.0
      %2921 = vmatpush1.msra.mxu0 0.0
      %2922 = vmatprep.subr.mxu0 0.0
      %2923 = vmatpush1.msra.mxu0 0.0
      %2924 = vmatprep.subr.mxu0 0.0
      %2925 = vmatpush1.msra.mxu0 0.0
      %2926 = vmatprep.subr.mxu0 0.0
      %2927 = vmatpush1.msra.mxu0 0.0
      %2928 = vmatprep.subr.mxu0 0.0
      %2929 = vmatpush1.msra.mxu0 0.0
      %2930 = vmatprep.subr.mxu0 0.0
      %2931 = vmatpush1.msra.mxu0 0.0
      %2932 = vmatprep.subr.mxu0 0.0
      %2933 = vmatpush1.msra.mxu0 0.0
      %2934 = vmatprep.subr.mxu0 0.0
      %2935 = vmatpush1.msra.mxu0 0.0
      %2936 = vmatprep.subr.mxu0 0.0
      %2937 = vmatpush1.msra.mxu0 0.0
      %2938 = vmatprep.mubr.f32.mxu0 0.0
      %2939 = vmatmul.mubr.f32.gmra.mrb[0].mxu0 %v2687
      %v2940 = vpop.f32.mrb[0].mxu0
      %v2941 = vadd.f32 0.0, %v2940
      %v2942 = vpop.f32.mrb[0].mxu0
      %2943 = vmatprep.mubr.f32.mxu0 0.0
      %2944 = vmatmul.mubr.f32.gmra.mrb[0].mxu0 %v2690
      %v2945 = vpop.f32.mrb[0].mxu0
      %v2946 = vadd.f32 0.0, %v2945
      %v2947 = vpop.f32.mrb[0].mxu0
      %2948 = vdwg.mxu0
      %s2949 = scalar_lea.vmem %s16, 32
      %v2950 = vld [vmem:[%s2949] sm:$0xff]
      %v2951 = vld [vmem:[%s2949 + $0x8] sm:$0xff]
      %v2952 = vld [vmem:[%s2949 + $0x10] sm:$0xff]
      %v2953 = vld [vmem:[%s2949 + $0x18] sm:$0xff]
      %s2954 = scalar_lea.vmem %s17, 1
      %v2955 = vld [vmem:[%s2954] sm:$0x1]
      %v2957 = vlaneseq
      %v2958 = vshrl.u32 %v2957, 7
      %v2959 = vsub.s32 0, %v2958
      %v2960 = vrot.slane %v2955, %v2959
      %2962 = vmatprep.subr.mxu0 0.0
      %2963 = vmatpush1.msra.mxu0 %v2950
      %2964 = vmatprep.subr.mxu0 0.0
      %2965 = vmatpush1.msra.mxu0 %v2951
      %2966 = vmatprep.subr.mxu0 0.0
      %2967 = vmatpush1.msra.mxu0 %v2952
      %2968 = vmatprep.subr.mxu0 0.0
      %2969 = vmatpush1.msra.mxu0 %v2953
      %2970 = vmatprep.subr.mxu0 0.0
      %2971 = vmatpush1.msra.mxu0 0.0
      %2972 = vmatprep.subr.mxu0 0.0
      %2973 = vmatpush1.msra.mxu0 0.0
      %2974 = vmatprep.subr.mxu0 0.0
      %2975 = vmatpush1.msra.mxu0 0.0
      %2976 = vmatprep.subr.mxu0 0.0
      %2977 = vmatpush1.msra.mxu0 0.0
      %2978 = vmatprep.subr.mxu0 0.0
      %2979 = vmatpush1.msra.mxu0 0.0
      %2980 = vmatprep.subr.mxu0 0.0
      %2981 = vmatpush1.msra.mxu0 0.0
      %2982 = vmatprep.subr.mxu0 0.0
      %2983 = vmatpush1.msra.mxu0 0.0
      %2984 = vmatprep.subr.mxu0 0.0
      %2985 = vmatpush1.msra.mxu0 0.0
      %2986 = vmatprep.subr.mxu0 0.0
      %2987 = vmatpush1.msra.mxu0 0.0
      %2988 = vmatprep.subr.mxu0 0.0
      %2989 = vmatpush1.msra.mxu0 0.0
      %2990 = vmatprep.subr.mxu0 0.0
      %2991 = vmatpush1.msra.mxu0 0.0
      %2992 = vmatprep.subr.mxu0 0.0
      %2993 = vmatpush1.msra.mxu0 0.0
      %2994 = vmatprep.subr.mxu0 0.0
      %2995 = vmatpush1.msra.mxu0 0.0
      %2996 = vmatprep.subr.mxu0 0.0
      %2997 = vmatpush1.msra.mxu0 0.0
      %2998 = vmatprep.subr.mxu0 0.0
      %2999 = vmatpush1.msra.mxu0 0.0
      %3000 = vmatprep.subr.mxu0 0.0
      %3001 = vmatpush1.msra.mxu0 0.0
      %3002 = vmatprep.subr.mxu0 0.0
      %3003 = vmatpush1.msra.mxu0 0.0
      %3004 = vmatprep.subr.mxu0 0.0
      %3005 = vmatpush1.msra.mxu0 0.0
      %3006 = vmatprep.subr.mxu0 0.0
      %3007 = vmatpush1.msra.mxu0 0.0
      %3008 = vmatprep.subr.mxu0 0.0
      %3009 = vmatpush1.msra.mxu0 0.0
      %3010 = vmatprep.subr.mxu0 0.0
      %3011 = vmatpush1.msra.mxu0 0.0
      %3012 = vmatprep.subr.mxu0 0.0
      %3013 = vmatpush1.msra.mxu0 0.0
      %3014 = vmatprep.subr.mxu0 0.0
      %3015 = vmatpush1.msra.mxu0 0.0
      %3016 = vmatprep.subr.mxu0 0.0
      %3017 = vmatpush1.msra.mxu0 0.0
      %3018 = vmatprep.subr.mxu0 0.0
      %3019 = vmatpush1.msra.mxu0 0.0
      %3020 = vmatprep.subr.mxu0 0.0
      %3021 = vmatpush1.msra.mxu0 0.0
      %3022 = vmatprep.subr.mxu0 0.0
      %3023 = vmatpush1.msra.mxu0 0.0
      %3024 = vmatprep.subr.mxu0 0.0
      %3025 = vmatpush1.msra.mxu0 0.0
      %3026 = vmatprep.mubr.f32.mxu0 0.0
      %3027 = vmatmul.mubr.f32.gmra.mrb[0].mxu0 %v2687
      %v3028 = vpop.f32.mrb[0].mxu0
      %v3029 = vadd.f32 %v2960, %v3028
      %v3030 = vpop.f32.mrb[0].mxu0
      %3031 = vmatprep.mubr.f32.mxu0 0.0
      %3032 = vmatmul.mubr.f32.gmra.mrb[0].mxu0 %v2690
      %v3033 = vpop.f32.mrb[0].mxu0
      %v3034 = vadd.f32 %v2960, %v3033
      %v3035 = vpop.f32.mrb[0].mxu0
      %3036 = vdwg.mxu0
      %v3038 = vsel %vm874, %v3029, 0
      %v3041 = vsel %vm874, %v3034, 0
      %3043 = vmatprep.subr.mxu0 0.0
      %3044 = vmatpush1.xpose.msra.mxu0 %v2687
      %3045 = vmatprep.subr.mxu0 0.0
      %3046 = vmatpush1.xpose.msra.mxu0 %v2690
      %3047 = vmatprep.subr.mxu0 0.0
      %3048 = vmatpush1.xpose.msra.mxu0 0.0
      %3049 = vmatprep.subr.mxu0 0.0
      %3050 = vmatpush1.xpose.msra.mxu0 0.0
      %3051 = vmatprep.subr.mxu0 0.0
      %3052 = vmatpush1.xpose.msra.mxu0 0.0
      %3053 = vmatprep.subr.mxu0 0.0
      %3054 = vmatpush1.xpose.msra.mxu0 0.0
      %3055 = vmatprep.subr.mxu0 0.0
      %3056 = vmatpush1.xpose.msra.mxu0 0.0
      %3057 = vmatprep.subr.mxu0 0.0
      %3058 = vmatpush1.xpose.msra.mxu0 0.0
      %3059 = vmatprep.subr.mxu0 0.0
      %3060 = vmatpush1.xpose.msra.mxu0 0.0
      %3061 = vmatprep.subr.mxu0 0.0
      %3062 = vmatpush1.xpose.msra.mxu0 0.0
      %3063 = vmatprep.subr.mxu0 0.0
      %3064 = vmatpush1.xpose.msra.mxu0 0.0
      %3065 = vmatprep.subr.mxu0 0.0
      %3066 = vmatpush1.xpose.msra.mxu0 0.0
      %3067 = vmatprep.subr.mxu0 0.0
      %3068 = vmatpush1.xpose.msra.mxu0 0.0
      %3069 = vmatprep.subr.mxu0 0.0
      %3070 = vmatpush1.xpose.msra.mxu0 0.0
      %3071 = vmatprep.subr.mxu0 0.0
      %3072 = vmatpush1.xpose.msra.mxu0 0.0
      %3073 = vmatprep.subr.mxu0 0.0
      %3074 = vmatpush1.xpose.msra.mxu0 0.0
      %3075 = vmatprep.subr.mxu0 0.0
      %3076 = vmatpush1.xpose.msra.mxu0 0.0
      %3077 = vmatprep.subr.mxu0 0.0
      %3078 = vmatpush1.xpose.msra.mxu0 0.0
      %3079 = vmatprep.subr.mxu0 0.0
      %3080 = vmatpush1.xpose.msra.mxu0 0.0
      %3081 = vmatprep.subr.mxu0 0.0
      %3082 = vmatpush1.xpose.msra.mxu0 0.0
      %3083 = vmatprep.subr.mxu0 0.0
      %3084 = vmatpush1.xpose.msra.mxu0 0.0
      %3085 = vmatprep.subr.mxu0 0.0
      %3086 = vmatpush1.xpose.msra.mxu0 0.0
      %3087 = vmatprep.subr.mxu0 0.0
      %3088 = vmatpush1.xpose.msra.mxu0 0.0
      %3089 = vmatprep.subr.mxu0 0.0
      %3090 = vmatpush1.xpose.msra.mxu0 0.0
      %3091 = vmatprep.subr.mxu0 0.0
      %3092 = vmatpush1.xpose.msra.mxu0 0.0
      %3093 = vmatprep.subr.mxu0 0.0
      %3094 = vmatpush1.xpose.msra.mxu0 0.0
      %3095 = vmatprep.subr.mxu0 0.0
      %3096 = vmatpush1.xpose.msra.mxu0 0.0
      %3097 = vmatprep.subr.mxu0 0.0
      %3098 = vmatpush1.xpose.msra.mxu0 0.0
      %3099 = vmatprep.subr.mxu0 0.0
      %3100 = vmatpush1.xpose.msra.mxu0 0.0
      %3101 = vmatprep.subr.mxu0 0.0
      %3102 = vmatpush1.xpose.msra.mxu0 0.0
      %3103 = vmatprep.subr.mxu0 0.0
      %3104 = vmatpush1.xpose.msra.mxu0 0.0
      %3105 = vmatprep.subr.mxu0 0.0
      %3106 = vmatpush1.xpose.msra.mxu0 0.0
      %3107 = vmatprep.mubr.f32.mxu0 0.0
      %3108 = vmatmul.mubr.f32.gmra.mrb[0].mxu0 %v3038
      %v3109 = vpop.f32.mrb[0].mxu0
      %v3110 = vadd.f32 %v956, %v3109
      %v3111 = vpop.f32.mrb[0].mxu0
      %3112 = vmatprep.mubr.f32.mxu0 0.0
      %3113 = vmatmul.mubr.f32.gmra.mrb[0].mxu0 %v3041
      %v3114 = vpop.f32.mrb[0].mxu0
      %v3115 = vadd.f32 %v957, %v3114
      %v3116 = vpop.f32.mrb[0].mxu0
      %3117 = vdwg.mxu0
      %v3118 = vsel %vm1131, %v3110, -inf
      %3119 = vmax.xlane.f32.xlu0 %v3118
      %v3120 = vpop.xlane.xlu0 %3119
      %v3121 = vsel %vm1131, %v3115, -inf
      %3122 = vmax.xlane.f32.xlu0 %v3121
      %v3123 = vpop.xlane.xlu0 %3122
      %v3124 = vsub.f32 %v3110, %v3120
      %v3125 = vsub.f32 %v3115, %v3123
      %v3126 = vmul.f32 %v3124, 1.442695
      %v3127 = vpow.pop %v3126
      %v3128 = vmul.f32 %v3125, 1.442695
      %v3129 = vpow.pop %v3128
      %v3130 = vsel %vm1131, %v3127, 0.0
      %3131 = vadd.xlane.f32.xlu0 %v3130
      %v3132 = vpop.xlane.xlu0 %3131
      %v3133 = vsel %vm1131, %v3129, 0.0
      %3134 = vadd.xlane.f32.xlu0 %v3133
      %v3135 = vpop.xlane.xlu0 %3134
      %v3136 = vrcp.pop %v3132
      %v3137 = vmul.f32 %v3127, %v3136
      %v3138 = vrcp.pop %v3135
      %v3139 = vmul.f32 %v3129, %v3138
      %s3140 = scalar_lea.vmem %s18, 32
      %v3141 = vld [vmem:[%s3140] sm:$0xff]
      %v3142 = vld [vmem:[%s3140 + $0x8] sm:$0xff]
      %v3143 = vld [vmem:[%s3140 + $0x10] sm:$0xff]
      %v3144 = vld [vmem:[%s3140 + $0x18] sm:$0xff]
      %3145 = vmatprep.subr.mxu0 0.0
      %3146 = vmatpush1.msra.mxu0 %v3141
      %3147 = vmatprep.subr.mxu0 0.0
      %3148 = vmatpush1.msra.mxu0 %v3142
      %3149 = vmatprep.subr.mxu0 0.0
      %3150 = vmatpush1.msra.mxu0 %v3143
      %3151 = vmatprep.subr.mxu0 0.0
      %3152 = vmatpush1.msra.mxu0 %v3144
      %3153 = vmatprep.subr.mxu0 0.0
      %3154 = vmatpush1.msra.mxu0 0.0
      %3155 = vmatprep.subr.mxu0 0.0
      %3156 = vmatpush1.msra.mxu0 0.0
      %3157 = vmatprep.subr.mxu0 0.0
      %3158 = vmatpush1.msra.mxu0 0.0
      %3159 = vmatprep.subr.mxu0 0.0
      %3160 = vmatpush1.msra.mxu0 0.0
      %3161 = vmatprep.subr.mxu0 0.0
      %3162 = vmatpush1.msra.mxu0 0.0
      %3163 = vmatprep.subr.mxu0 0.0
      %3164 = vmatpush1.msra.mxu0 0.0
      %3165 = vmatprep.subr.mxu0 0.0
      %3166 = vmatpush1.msra.mxu0 0.0
      %3167 = vmatprep.subr.mxu0 0.0
      %3168 = vmatpush1.msra.mxu0 0.0
      %3169 = vmatprep.subr.mxu0 0.0
      %3170 = vmatpush1.msra.mxu0 0.0
      %3171 = vmatprep.subr.mxu0 0.0
      %3172 = vmatpush1.msra.mxu0 0.0
      %3173 = vmatprep.subr.mxu0 0.0
      %3174 = vmatpush1.msra.mxu0 0.0
      %3175 = vmatprep.subr.mxu0 0.0
      %3176 = vmatpush1.msra.mxu0 0.0
      %3177 = vmatprep.subr.mxu0 0.0
      %3178 = vmatpush1.msra.mxu0 0.0
      %3179 = vmatprep.subr.mxu0 0.0
      %3180 = vmatpush1.msra.mxu0 0.0
      %3181 = vmatprep.subr.mxu0 0.0
      %3182 = vmatpush1.msra.mxu0 0.0
      %3183 = vmatprep.subr.mxu0 0.0
      %3184 = vmatpush1.msra.mxu0 0.0
      %3185 = vmatprep.subr.mxu0 0.0
      %3186 = vmatpush1.msra.mxu0 0.0
      %3187 = vmatprep.subr.mxu0 0.0
      %3188 = vmatpush1.msra.mxu0 0.0
      %3189 = vmatprep.subr.mxu0 0.0
      %3190 = vmatpush1.msra.mxu0 0.0
      %3191 = vmatprep.subr.mxu0 0.0
      %3192 = vmatpush1.msra.mxu0 0.0
      %3193 = vmatprep.subr.mxu0 0.0
      %3194 = vmatpush1.msra.mxu0 0.0
      %3195 = vmatprep.subr.mxu0 0.0
      %3196 = vmatpush1.msra.mxu0 0.0
      %3197 = vmatprep.subr.mxu0 0.0
      %3198 = vmatpush1.msra.mxu0 0.0
      %3199 = vmatprep.subr.mxu0 0.0
      %3200 = vmatpush1.msra.mxu0 0.0
      %3201 = vmatprep.subr.mxu0 0.0
      %3202 = vmatpush1.msra.mxu0 0.0
      %3203 = vmatprep.subr.mxu0 0.0
      %3204 = vmatpush1.msra.mxu0 0.0
      %3205 = vmatprep.subr.mxu0 0.0
      %3206 = vmatpush1.msra.mxu0 0.0
      %3207 = vmatprep.subr.mxu0 0.0
      %3208 = vmatpush1.msra.mxu0 0.0
      %3209 = vmatprep.mubr.f32.mxu0 0.0
      %3210 = vmatmul.mubr.f32.gmra.mrb[0].mxu0 %v2687
      %v3211 = vpop.f32.mrb[0].mxu0
      %v3212 = vadd.f32 0.0, %v3211
      %v3213 = vpop.f32.mrb[0].mxu0
      %3214 = vmatprep.mubr.f32.mxu0 0.0
      %3215 = vmatmul.mubr.f32.gmra.mrb[0].mxu0 %v2690
      %v3216 = vpop.f32.mrb[0].mxu0
      %v3217 = vadd.f32 0.0, %v3216
      %v3218 = vpop.f32.mrb[0].mxu0
      %3219 = vdwg.mxu0
      %v3221 = vsel %vm1131, %v3137, 0
      %v3224 = vsel %vm1131, %v3139, 0
      %3226 = vmatprep.subr.mxu0 0.0
      %3227 = vmatpush1.msra.mxu0 %v3212
      %3228 = vmatprep.subr.mxu0 0.0
      %3229 = vmatpush1.msra.mxu0 %v3217
      %3230 = vmatprep.subr.mxu0 0.0
      %3231 = vmatpush1.msra.mxu0 0.0
      %3232 = vmatprep.subr.mxu0 0.0
      %3233 = vmatpush1.msra.mxu0 0.0
      %3234 = vmatprep.subr.mxu0 0.0
      %3235 = vmatpush1.msra.mxu0 0.0
      %3236 = vmatprep.subr.mxu0 0.0
      %3237 = vmatpush1.msra.mxu0 0.0
      %3238 = vmatprep.subr.mxu0 0.0
      %3239 = vmatpush1.msra.mxu0 0.0
      %3240 = vmatprep.subr.mxu0 0.0
      %3241 = vmatpush1.msra.mxu0 0.0
      %3242 = vmatprep.subr.mxu0 0.0
      %3243 = vmatpush1.msra.mxu0 0.0
      %3244 = vmatprep.subr.mxu0 0.0
      %3245 = vmatpush1.msra.mxu0 0.0
      %3246 = vmatprep.subr.mxu0 0.0
      %3247 = vmatpush1.msra.mxu0 0.0
      %3248 = vmatprep.subr.mxu0 0.0
      %3249 = vmatpush1.msra.mxu0 0.0
      %3250 = vmatprep.subr.mxu0 0.0
      %3251 = vmatpush1.msra.mxu0 0.0
      %3252 = vmatprep.subr.mxu0 0.0
      %3253 = vmatpush1.msra.mxu0 0.0
      %3254 = vmatprep.subr.mxu0 0.0
      %3255 = vmatpush1.msra.mxu0 0.0
      %3256 = vmatprep.subr.mxu0 0.0
      %3257 = vmatpush1.msra.mxu0 0.0
      %3258 = vmatprep.subr.mxu0 0.0
      %3259 = vmatpush1.msra.mxu0 0.0
      %3260 = vmatprep.subr.mxu0 0.0
      %3261 = vmatpush1.msra.mxu0 0.0
      %3262 = vmatprep.subr.mxu0 0.0
      %3263 = vmatpush1.msra.mxu0 0.0
      %3264 = vmatprep.subr.mxu0 0.0
      %3265 = vmatpush1.msra.mxu0 0.0
      %3266 = vmatprep.subr.mxu0 0.0
      %3267 = vmatpush1.msra.mxu0 0.0
      %3268 = vmatprep.subr.mxu0 0.0
      %3269 = vmatpush1.msra.mxu0 0.0
      %3270 = vmatprep.subr.mxu0 0.0
      %3271 = vmatpush1.msra.mxu0 0.0
      %3272 = vmatprep.subr.mxu0 0.0
      %3273 = vmatpush1.msra.mxu0 0.0
      %3274 = vmatprep.subr.mxu0 0.0
      %3275 = vmatpush1.msra.mxu0 0.0
      %3276 = vmatprep.subr.mxu0 0.0
      %3277 = vmatpush1.msra.mxu0 0.0
      %3278 = vmatprep.subr.mxu0 0.0
      %3279 = vmatpush1.msra.mxu0 0.0
      %3280 = vmatprep.subr.mxu0 0.0
      %3281 = vmatpush1.msra.mxu0 0.0
      %3282 = vmatprep.subr.mxu0 0.0
      %3283 = vmatpush1.msra.mxu0 0.0
      %3284 = vmatprep.subr.mxu0 0.0
      %3285 = vmatpush1.msra.mxu0 0.0
      %3286 = vmatprep.subr.mxu0 0.0
      %3287 = vmatpush1.msra.mxu0 0.0
      %3288 = vmatprep.subr.mxu0 0.0
      %3289 = vmatpush1.msra.mxu0 0.0
      %3290 = vmatprep.mubr.f32.mxu0 0.0
      %3291 = vmatmul.mubr.f32.gmra.mrb[0].mxu0 %v3221
      %v3292 = vpop.f32.mrb[0].mxu0
      %v3293 = vadd.f32 0.0, %v3292
      %v3294 = vpop.f32.mrb[0].mxu0
      %3295 = vmatprep.mubr.f32.mxu0 0.0
      %3296 = vmatmul.mubr.f32.gmra.mrb[0].mxu0 %v3224
      %v3297 = vpop.f32.mrb[0].mxu0
      %v3298 = vadd.f32 0.0, %v3297
      %v3299 = vpop.f32.mrb[0].mxu0
      %3300 = vdwg.mxu0
      %v3302 = vsel %vm1131, %v2867, 0
      %v3305 = vsel %vm1131, %v2869, 0
      %3307 = vmatprep.subr.mxu0 0.0
      %3308 = vmatpush1.msra.mxu0 %v2941
      %3309 = vmatprep.subr.mxu0 0.0
      %3310 = vmatpush1.msra.mxu0 %v2946
      %3311 = vmatprep.subr.mxu0 0.0
      %3312 = vmatpush1.msra.mxu0 0.0
      %3313 = vmatprep.subr.mxu0 0.0
      %3314 = vmatpush1.msra.mxu0 0.0
      %3315 = vmatprep.subr.mxu0 0.0
      %3316 = vmatpush1.msra.mxu0 0.0
      %3317 = vmatprep.subr.mxu0 0.0
      %3318 = vmatpush1.msra.mxu0 0.0
      %3319 = vmatprep.subr.mxu0 0.0
      %3320 = vmatpush1.msra.mxu0 0.0
      %3321 = vmatprep.subr.mxu0 0.0
      %3322 = vmatpush1.msra.mxu0 0.0
      %3323 = vmatprep.subr.mxu0 0.0
      %3324 = vmatpush1.msra.mxu0 0.0
      %3325 = vmatprep.subr.mxu0 0.0
      %3326 = vmatpush1.msra.mxu0 0.0
      %3327 = vmatprep.subr.mxu0 0.0
      %3328 = vmatpush1.msra.mxu0 0.0
      %3329 = vmatprep.subr.mxu0 0.0
      %3330 = vmatpush1.msra.mxu0 0.0
      %3331 = vmatprep.subr.mxu0 0.0
      %3332 = vmatpush1.msra.mxu0 0.0
      %3333 = vmatprep.subr.mxu0 0.0
      %3334 = vmatpush1.msra.mxu0 0.0
      %3335 = vmatprep.subr.mxu0 0.0
      %3336 = vmatpush1.msra.mxu0 0.0
      %3337 = vmatprep.subr.mxu0 0.0
      %3338 = vmatpush1.msra.mxu0 0.0
      %3339 = vmatprep.subr.mxu0 0.0
      %3340 = vmatpush1.msra.mxu0 0.0
      %3341 = vmatprep.subr.mxu0 0.0
      %3342 = vmatpush1.msra.mxu0 0.0
      %3343 = vmatprep.subr.mxu0 0.0
      %3344 = vmatpush1.msra.mxu0 0.0
      %3345 = vmatprep.subr.mxu0 0.0
      %3346 = vmatpush1.msra.mxu0 0.0
      %3347 = vmatprep.subr.mxu0 0.0
      %3348 = vmatpush1.msra.mxu0 0.0
      %3349 = vmatprep.subr.mxu0 0.0
      %3350 = vmatpush1.msra.mxu0 0.0
      %3351 = vmatprep.subr.mxu0 0.0
      %3352 = vmatpush1.msra.mxu0 0.0
      %3353 = vmatprep.subr.mxu0 0.0
      %3354 = vmatpush1.msra.mxu0 0.0
      %3355 = vmatprep.subr.mxu0 0.0
      %3356 = vmatpush1.msra.mxu0 0.0
      %3357 = vmatprep.subr.mxu0 0.0
      %3358 = vmatpush1.msra.mxu0 0.0
      %3359 = vmatprep.subr.mxu0 0.0
      %3360 = vmatpush1.msra.mxu0 0.0
      %3361 = vmatprep.subr.mxu0 0.0
      %3362 = vmatpush1.msra.mxu0 0.0
      %3363 = vmatprep.subr.mxu0 0.0
      %3364 = vmatpush1.msra.mxu0 0.0
      %3365 = vmatprep.subr.mxu0 0.0
      %3366 = vmatpush1.msra.mxu0 0.0
      %3367 = vmatprep.subr.mxu0 0.0
      %3368 = vmatpush1.msra.mxu0 0.0
      %3369 = vmatprep.subr.mxu0 0.0
      %3370 = vmatpush1.msra.mxu0 0.0
      %3371 = vmatprep.mubr.f32.mxu0 0.0
      %3372 = vmatmul.mubr.f32.gmra.mrb[0].mxu0 %v3302
      %v3373 = vpop.f32.mrb[0].mxu0
      %v3374 = vadd.f32 %v3293, %v3373
      %v3375 = vpop.f32.mrb[0].mxu0
      %3376 = vmatprep.mubr.f32.mxu0 0.0
      %3377 = vmatmul.mubr.f32.gmra.mrb[0].mxu0 %v3305
      %v3378 = vpop.f32.mrb[0].mxu0
      %v3379 = vadd.f32 %v3298, %v3378
      %v3380 = vpop.f32.mrb[0].mxu0
      %3381 = vdwg.mxu0
      %s3382 = scalar_lea.vmem %s16, 64
      %v3383 = vld [vmem:[%s3382] sm:$0xff]
      %v3384 = vld [vmem:[%s3382 + $0x8] sm:$0xff]
      %v3385 = vld [vmem:[%s3382 + $0x10] sm:$0xff]
      %v3386 = vld [vmem:[%s3382 + $0x18] sm:$0xff]
      %s3387 = scalar_lea.vmem %s17, 2
      %v3388 = vld [vmem:[%s3387] sm:$0x1]
      %v3390 = vlaneseq
      %v3391 = vshrl.u32 %v3390, 7
      %v3392 = vsub.s32 0, %v3391
      %v3393 = vrot.slane %v3388, %v3392
      %3395 = vmatprep.subr.mxu0 0.0
      %3396 = vmatpush1.msra.mxu0 %v3383
      %3397 = vmatprep.subr.mxu0 0.0
      %3398 = vmatpush1.msra.mxu0 %v3384
      %3399 = vmatprep.subr.mxu0 0.0
      %3400 = vmatpush1.msra.mxu0 %v3385
      %3401 = vmatprep.subr.mxu0 0.0
      %3402 = vmatpush1.msra.mxu0 %v3386
      %3403 = vmatprep.subr.mxu0 0.0
      %3404 = vmatpush1.msra.mxu0 0.0
      %3405 = vmatprep.subr.mxu0 0.0
      %3406 = vmatpush1.msra.mxu0 0.0
      %3407 = vmatprep.subr.mxu0 0.0
      %3408 = vmatpush1.msra.mxu0 0.0
      %3409 = vmatprep.subr.mxu0 0.0
      %3410 = vmatpush1.msra.mxu0 0.0
      %3411 = vmatprep.subr.mxu0 0.0
      %3412 = vmatpush1.msra.mxu0 0.0
      %3413 = vmatprep.subr.mxu0 0.0
      %3414 = vmatpush1.msra.mxu0 0.0
      %3415 = vmatprep.subr.mxu0 0.0
      %3416 = vmatpush1.msra.mxu0 0.0
      %3417 = vmatprep.subr.mxu0 0.0
      %3418 = vmatpush1.msra.mxu0 0.0
      %3419 = vmatprep.subr.mxu0 0.0
      %3420 = vmatpush1.msra.mxu0 0.0
      %3421 = vmatprep.subr.mxu0 0.0
      %3422 = vmatpush1.msra.mxu0 0.0
      %3423 = vmatprep.subr.mxu0 0.0
      %3424 = vmatpush1.msra.mxu0 0.0
      %3425 = vmatprep.subr.mxu0 0.0
      %3426 = vmatpush1.msra.mxu0 0.0
      %3427 = vmatprep.subr.mxu0 0.0
      %3428 = vmatpush1.msra.mxu0 0.0
      %3429 = vmatprep.subr.mxu0 0.0
      %3430 = vmatpush1.msra.mxu0 0.0
      %3431 = vmatprep.subr.mxu0 0.0
      %3432 = vmatpush1.msra.mxu0 0.0
      %3433 = vmatprep.subr.mxu0 0.0
      %3434 = vmatpush1.msra.mxu0 0.0
      %3435 = vmatprep.subr.mxu0 0.0
      %3436 = vmatpush1.msra.mxu0 0.0
      %3437 = vmatprep.subr.mxu0 0.0
      %3438 = vmatpush1.msra.mxu0 0.0
      %3439 = vmatprep.subr.mxu0 0.0
      %3440 = vmatpush1.msra.mxu0 0.0
      %3441 = vmatprep.subr.mxu0 0.0
      %3442 = vmatpush1.msra.mxu0 0.0
      %3443 = vmatprep.subr.mxu0 0.0
      %3444 = vmatpush1.msra.mxu0 0.0
      %3445 = vmatprep.subr.mxu0 0.0
      %3446 = vmatpush1.msra.mxu0 0.0
      %3447 = vmatprep.subr.mxu0 0.0
      %3448 = vmatpush1.msra.mxu0 0.0
      %3449 = vmatprep.subr.mxu0 0.0
      %3450 = vmatpush1.msra.mxu0 0.0
      %3451 = vmatprep.subr.mxu0 0.0
      %3452 = vmatpush1.msra.mxu0 0.0
      %3453 = vmatprep.subr.mxu0 0.0
      %3454 = vmatpush1.msra.mxu0 0.0
      %3455 = vmatprep.subr.mxu0 0.0
      %3456 = vmatpush1.msra.mxu0 0.0
      %3457 = vmatprep.subr.mxu0 0.0
      %3458 = vmatpush1.msra.mxu0 0.0
      %3459 = vmatprep.mubr.f32.mxu0 0.0
      %3460 = vmatmul.mubr.f32.gmra.mrb[0].mxu0 %v2687
      %v3461 = vpop.f32.mrb[0].mxu0
      %v3462 = vadd.f32 %v3393, %v3461
      %v3463 = vpop.f32.mrb[0].mxu0
      %3464 = vmatprep.mubr.f32.mxu0 0.0
      %3465 = vmatmul.mubr.f32.gmra.mrb[0].mxu0 %v2690
      %v3466 = vpop.f32.mrb[0].mxu0
      %v3467 = vadd.f32 %v3393, %v3466
      %v3468 = vpop.f32.mrb[0].mxu0
      %3469 = vdwg.mxu0
      %v3471 = vsel %vm874, %v3462, 0
      %v3474 = vsel %vm874, %v3467, 0
      %3476 = vmatprep.subr.mxu0 0.0
      %3477 = vmatpush1.xpose.msra.mxu0 %v2687
      %3478 = vmatprep.subr.mxu0 0.0
      %3479 = vmatpush1.xpose.msra.mxu0 %v2690
      %3480 = vmatprep.subr.mxu0 0.0
      %3481 = vmatpush1.xpose.msra.mxu0 0.0
      %3482 = vmatprep.subr.mxu0 0.0
      %3483 = vmatpush1.xpose.msra.mxu0 0.0
      %3484 = vmatprep.subr.mxu0 0.0
      %3485 = vmatpush1.xpose.msra.mxu0 0.0
      %3486 = vmatprep.subr.mxu0 0.0
      %3487 = vmatpush1.xpose.msra.mxu0 0.0
      %3488 = vmatprep.subr.mxu0 0.0
      %3489 = vmatpush1.xpose.msra.mxu0 0.0
      %3490 = vmatprep.subr.mxu0 0.0
      %3491 = vmatpush1.xpose.msra.mxu0 0.0
      %3492 = vmatprep.subr.mxu0 0.0
      %3493 = vmatpush1.xpose.msra.mxu0 0.0
      %3494 = vmatprep.subr.mxu0 0.0
      %3495 = vmatpush1.xpose.msra.mxu0 0.0
      %3496 = vmatprep.subr.mxu0 0.0
      %3497 = vmatpush1.xpose.msra.mxu0 0.0
      %3498 = vmatprep.subr.mxu0 0.0
      %3499 = vmatpush1.xpose.msra.mxu0 0.0
      %3500 = vmatprep.subr.mxu0 0.0
      %3501 = vmatpush1.xpose.msra.mxu0 0.0
      %3502 = vmatprep.subr.mxu0 0.0
      %3503 = vmatpush1.xpose.msra.mxu0 0.0
      %3504 = vmatprep.subr.mxu0 0.0
      %3505 = vmatpush1.xpose.msra.mxu0 0.0
      %3506 = vmatprep.subr.mxu0 0.0
      %3507 = vmatpush1.xpose.msra.mxu0 0.0
      %3508 = vmatprep.subr.mxu0 0.0
      %3509 = vmatpush1.xpose.msra.mxu0 0.0
      %3510 = vmatprep.subr.mxu0 0.0
      %3511 = vmatpush1.xpose.msra.mxu0 0.0
      %3512 = vmatprep.subr.mxu0 0.0
      %3513 = vmatpush1.xpose.msra.mxu0 0.0
      %3514 = vmatprep.subr.mxu0 0.0
      %3515 = vmatpush1.xpose.msra.mxu0 0.0
      %3516 = vmatprep.subr.mxu0 0.0
      %3517 = vmatpush1.xpose.msra.mxu0 0.0
      %3518 = vmatprep.subr.mxu0 0.0
      %3519 = vmatpush1.xpose.msra.mxu0 0.0
      %3520 = vmatprep.subr.mxu0 0.0
      %3521 = vmatpush1.xpose.msra.mxu0 0.0
      %3522 = vmatprep.subr.mxu0 0.0
      %3523 = vmatpush1.xpose.msra.mxu0 0.0
      %3524 = vmatprep.subr.mxu0 0.0
      %3525 = vmatpush1.xpose.msra.mxu0 0.0
      %3526 = vmatprep.subr.mxu0 0.0
      %3527 = vmatpush1.xpose.msra.mxu0 0.0
      %3528 = vmatprep.subr.mxu0 0.0
      %3529 = vmatpush1.xpose.msra.mxu0 0.0
      %3530 = vmatprep.subr.mxu0 0.0
      %3531 = vmatpush1.xpose.msra.mxu0 0.0
      %3532 = vmatprep.subr.mxu0 0.0
      %3533 = vmatpush1.xpose.msra.mxu0 0.0
      %3534 = vmatprep.subr.mxu0 0.0
      %3535 = vmatpush1.xpose.msra.mxu0 0.0
      %3536 = vmatprep.subr.mxu0 0.0
      %3537 = vmatpush1.xpose.msra.mxu0 0.0
      %3538 = vmatprep.subr.mxu0 0.0
      %3539 = vmatpush1.xpose.msra.mxu0 0.0
      %3540 = vmatprep.mubr.f32.mxu0 0.0
      %3541 = vmatmul.mubr.f32.gmra.mrb[0].mxu0 %v3471
      %v3542 = vpop.f32.mrb[0].mxu0
      %v3543 = vadd.f32 %v956, %v3542
      %v3544 = vpop.f32.mrb[0].mxu0
      %3545 = vmatprep.mubr.f32.mxu0 0.0
      %3546 = vmatmul.mubr.f32.gmra.mrb[0].mxu0 %v3474
      %v3547 = vpop.f32.mrb[0].mxu0
      %v3548 = vadd.f32 %v957, %v3547
      %v3549 = vpop.f32.mrb[0].mxu0
      %3550 = vdwg.mxu0
      %v3551 = vsel %vm1131, %v3543, -inf
      %3552 = vmax.xlane.f32.xlu0 %v3551
      %v3553 = vpop.xlane.xlu0 %3552
      %v3554 = vsel %vm1131, %v3548, -inf
      %3555 = vmax.xlane.f32.xlu0 %v3554
      %v3556 = vpop.xlane.xlu0 %3555
      %v3557 = vsub.f32 %v3543, %v3553
      %v3558 = vsub.f32 %v3548, %v3556
      %v3559 = vmul.f32 %v3557, 1.442695
      %v3560 = vpow.pop %v3559
      %v3561 = vmul.f32 %v3558, 1.442695
      %v3562 = vpow.pop %v3561
      %v3563 = vsel %vm1131, %v3560, 0.0
      %3564 = vadd.xlane.f32.xlu0 %v3563
      %v3565 = vpop.xlane.xlu0 %3564
      %v3566 = vsel %vm1131, %v3562, 0.0
      %3567 = vadd.xlane.f32.xlu0 %v3566
      %v3568 = vpop.xlane.xlu0 %3567
      %v3569 = vrcp.pop %v3565
      %v3570 = vmul.f32 %v3560, %v3569
      %v3571 = vrcp.pop %v3568
      %v3572 = vmul.f32 %v3562, %v3571
      %s3573 = scalar_lea.vmem %s18, 64
      %v3574 = vld [vmem:[%s3573] sm:$0xff]
      %v3575 = vld [vmem:[%s3573 + $0x8] sm:$0xff]
      %v3576 = vld [vmem:[%s3573 + $0x10] sm:$0xff]
      %v3577 = vld [vmem:[%s3573 + $0x18] sm:$0xff]
      %3578 = vmatprep.subr.mxu0 0.0
      %3579 = vmatpush1.msra.mxu0 %v3574
      %3580 = vmatprep.subr.mxu0 0.0
      %3581 = vmatpush1.msra.mxu0 %v3575
      %3582 = vmatprep.subr.mxu0 0.0
      %3583 = vmatpush1.msra.mxu0 %v3576
      %3584 = vmatprep.subr.mxu0 0.0
      %3585 = vmatpush1.msra.mxu0 %v3577
      %3586 = vmatprep.subr.mxu0 0.0
      %3587 = vmatpush1.msra.mxu0 0.0
      %3588 = vmatprep.subr.mxu0 0.0
      %3589 = vmatpush1.msra.mxu0 0.0
      %3590 = vmatprep.subr.mxu0 0.0
      %3591 = vmatpush1.msra.mxu0 0.0
      %3592 = vmatprep.subr.mxu0 0.0
      %3593 = vmatpush1.msra.mxu0 0.0
      %3594 = vmatprep.subr.mxu0 0.0
      %3595 = vmatpush1.msra.mxu0 0.0
      %3596 = vmatprep.subr.mxu0 0.0
      %3597 = vmatpush1.msra.mxu0 0.0
      %3598 = vmatprep.subr.mxu0 0.0
      %3599 = vmatpush1.msra.mxu0 0.0
      %3600 = vmatprep.subr.mxu0 0.0
      %3601 = vmatpush1.msra.mxu0 0.0
      %3602 = vmatprep.subr.mxu0 0.0
      %3603 = vmatpush1.msra.mxu0 0.0
      %3604 = vmatprep.subr.mxu0 0.0
      %3605 = vmatpush1.msra.mxu0 0.0
      %3606 = vmatprep.subr.mxu0 0.0
      %3607 = vmatpush1.msra.mxu0 0.0
      %3608 = vmatprep.subr.mxu0 0.0
      %3609 = vmatpush1.msra.mxu0 0.0
      %3610 = vmatprep.subr.mxu0 0.0
      %3611 = vmatpush1.msra.mxu0 0.0
      %3612 = vmatprep.subr.mxu0 0.0
      %3613 = vmatpush1.msra.mxu0 0.0
      %3614 = vmatprep.subr.mxu0 0.0
      %3615 = vmatpush1.msra.mxu0 0.0
      %3616 = vmatprep.subr.mxu0 0.0
      %3617 = vmatpush1.msra.mxu0 0.0
      %3618 = vmatprep.subr.mxu0 0.0
      %3619 = vmatpush1.msra.mxu0 0.0
      %3620 = vmatprep.subr.mxu0 0.0
      %3621 = vmatpush1.msra.mxu0 0.0
      %3622 = vmatprep.subr.mxu0 0.0
      %3623 = vmatpush1.msra.mxu0 0.0
      %3624 = vmatprep.subr.mxu0 0.0
      %3625 = vmatpush1.msra.mxu0 0.0
      %3626 = vmatprep.subr.mxu0 0.0
      %3627 = vmatpush1.msra.mxu0 0.0
      %3628 = vmatprep.subr.mxu0 0.0
      %3629 = vmatpush1.msra.mxu0 0.0
      %3630 = vmatprep.subr.mxu0 0.0
      %3631 = vmatpush1.msra.mxu0 0.0
      %3632 = vmatprep.subr.mxu0 0.0
      %3633 = vmatpush1.msra.mxu0 0.0
      %3634 = vmatprep.subr.mxu0 0.0
      %3635 = vmatpush1.msra.mxu0 0.0
      %3636 = vmatprep.subr.mxu0 0.0
      %3637 = vmatpush1.msra.mxu0 0.0
      %3638 = vmatprep.subr.mxu0 0.0
      %3639 = vmatpush1.msra.mxu0 0.0
      %3640 = vmatprep.subr.mxu0 0.0
      %3641 = vmatpush1.msra.mxu0 0.0
      %3642 = vmatprep.mubr.f32.mxu0 0.0
      %3643 = vmatmul.mubr.f32.gmra.mrb[0].mxu0 %v2687
      %v3644 = vpop.f32.mrb[0].mxu0
      %v3645 = vadd.f32 0.0, %v3644
      %v3646 = vpop.f32.mrb[0].mxu0
      %3647 = vmatprep.mubr.f32.mxu0 0.0
      %3648 = vmatmul.mubr.f32.gmra.mrb[0].mxu0 %v2690
      %v3649 = vpop.f32.mrb[0].mxu0
      %v3650 = vadd.f32 0.0, %v3649
      %v3651 = vpop.f32.mrb[0].mxu0
      %3652 = vdwg.mxu0
      %v3654 = vsel %vm1131, %v3570, 0
      %v3657 = vsel %vm1131, %v3572, 0
      %3659 = vmatprep.subr.mxu0 0.0
      %3660 = vmatpush1.msra.mxu0 %v3645
      %3661 = vmatprep.subr.mxu0 0.0
      %3662 = vmatpush1.msra.mxu0 %v3650
      %3663 = vmatprep.subr.mxu0 0.0
      %3664 = vmatpush1.msra.mxu0 0.0
      %3665 = vmatprep.subr.mxu0 0.0
      %3666 = vmatpush1.msra.mxu0 0.0
      %3667 = vmatprep.subr.mxu0 0.0
      %3668 = vmatpush1.msra.mxu0 0.0
      %3669 = vmatprep.subr.mxu0 0.0
      %3670 = vmatpush1.msra.mxu0 0.0
      %3671 = vmatprep.subr.mxu0 0.0
      %3672 = vmatpush1.msra.mxu0 0.0
      %3673 = vmatprep.subr.mxu0 0.0
      %3674 = vmatpush1.msra.mxu0 0.0
      %3675 = vmatprep.subr.mxu0 0.0
      %3676 = vmatpush1.msra.mxu0 0.0
      %3677 = vmatprep.subr.mxu0 0.0
      %3678 = vmatpush1.msra.mxu0 0.0
      %3679 = vmatprep.subr.mxu0 0.0
      %3680 = vmatpush1.msra.mxu0 0.0
      %3681 = vmatprep.subr.mxu0 0.0
      %3682 = vmatpush1.msra.mxu0 0.0
      %3683 = vmatprep.subr.mxu0 0.0
      %3684 = vmatpush1.msra.mxu0 0.0
      %3685 = vmatprep.subr.mxu0 0.0
      %3686 = vmatpush1.msra.mxu0 0.0
      %3687 = vmatprep.subr.mxu0 0.0
      %3688 = vmatpush1.msra.mxu0 0.0
      %3689 = vmatprep.subr.mxu0 0.0
      %3690 = vmatpush1.msra.mxu0 0.0
      %3691 = vmatprep.subr.mxu0 0.0
      %3692 = vmatpush1.msra.mxu0 0.0
      %3693 = vmatprep.subr.mxu0 0.0
      %3694 = vmatpush1.msra.mxu0 0.0
      %3695 = vmatprep.subr.mxu0 0.0
      %3696 = vmatpush1.msra.mxu0 0.0
      %3697 = vmatprep.subr.mxu0 0.0
      %3698 = vmatpush1.msra.mxu0 0.0
      %3699 = vmatprep.subr.mxu0 0.0
      %3700 = vmatpush1.msra.mxu0 0.0
      %3701 = vmatprep.subr.mxu0 0.0
      %3702 = vmatpush1.msra.mxu0 0.0
      %3703 = vmatprep.subr.mxu0 0.0
      %3704 = vmatpush1.msra.mxu0 0.0
      %3705 = vmatprep.subr.mxu0 0.0
      %3706 = vmatpush1.msra.mxu0 0.0
      %3707 = vmatprep.subr.mxu0 0.0
      %3708 = vmatpush1.msra.mxu0 0.0
      %3709 = vmatprep.subr.mxu0 0.0
      %3710 = vmatpush1.msra.mxu0 0.0
      %3711 = vmatprep.subr.mxu0 0.0
      %3712 = vmatpush1.msra.mxu0 0.0
      %3713 = vmatprep.subr.mxu0 0.0
      %3714 = vmatpush1.msra.mxu0 0.0
      %3715 = vmatprep.subr.mxu0 0.0
      %3716 = vmatpush1.msra.mxu0 0.0
      %3717 = vmatprep.subr.mxu0 0.0
      %3718 = vmatpush1.msra.mxu0 0.0
      %3719 = vmatprep.subr.mxu0 0.0
      %3720 = vmatpush1.msra.mxu0 0.0
      %3721 = vmatprep.subr.mxu0 0.0
      %3722 = vmatpush1.msra.mxu0 0.0
      %3723 = vmatprep.mubr.f32.mxu0 0.0
      %3724 = vmatmul.mubr.f32.gmra.mrb[0].mxu0 %v3654
      %v3725 = vpop.f32.mrb[0].mxu0
      %v3726 = vadd.f32 0.0, %v3725
      %v3727 = vpop.f32.mrb[0].mxu0
      %3728 = vmatprep.mubr.f32.mxu0 0.0
      %3729 = vmatmul.mubr.f32.gmra.mrb[0].mxu0 %v3657
      %v3730 = vpop.f32.mrb[0].mxu0
      %v3731 = vadd.f32 0.0, %v3730
      %v3732 = vpop.f32.mrb[0].mxu0
      %3733 = vdwg.mxu0
      %v3734 = vadd.f32 %v3374, %v3726
      %v3735 = vadd.f32 %v3379, %v3731
      %s3736 = scalar_lea.vmem %s16, 96
      %v3737 = vld [vmem:[%s3736] sm:$0xff]
      %v3738 = vld [vmem:[%s3736 + $0x8] sm:$0xff]
      %v3739 = vld [vmem:[%s3736 + $0x10] sm:$0xff]
      %v3740 = vld [vmem:[%s3736 + $0x18] sm:$0xff]
      %s3741 = scalar_lea.vmem %s17, 3
      %v3742 = vld [vmem:[%s3741] sm:$0x1]
      %v3744 = vlaneseq
      %v3745 = vshrl.u32 %v3744, 7
      %v3746 = vsub.s32 0, %v3745
      %v3747 = vrot.slane %v3742, %v3746
      %3749 = vmatprep.subr.mxu0 0.0
      %3750 = vmatpush1.msra.mxu0 %v3737
      %3751 = vmatprep.subr.mxu0 0.0
      %3752 = vmatpush1.msra.mxu0 %v3738
      %3753 = vmatprep.subr.mxu0 0.0
      %3754 = vmatpush1.msra.mxu0 %v3739
      %3755 = vmatprep.subr.mxu0 0.0
      %3756 = vmatpush1.msra.mxu0 %v3740
      %3757 = vmatprep.subr.mxu0 0.0
      %3758 = vmatpush1.msra.mxu0 0.0
      %3759 = vmatprep.subr.mxu0 0.0
      %3760 = vmatpush1.msra.mxu0 0.0
      %3761 = vmatprep.subr.mxu0 0.0
      %3762 = vmatpush1.msra.mxu0 0.0
      %3763 = vmatprep.subr.mxu0 0.0
      %3764 = vmatpush1.msra.mxu0 0.0
      %3765 = vmatprep.subr.mxu0 0.0
      %3766 = vmatpush1.msra.mxu0 0.0
      %3767 = vmatprep.subr.mxu0 0.0
      %3768 = vmatpush1.msra.mxu0 0.0
      %3769 = vmatprep.subr.mxu0 0.0
      %3770 = vmatpush1.msra.mxu0 0.0
      %3771 = vmatprep.subr.mxu0 0.0
      %3772 = vmatpush1.msra.mxu0 0.0
      %3773 = vmatprep.subr.mxu0 0.0
      %3774 = vmatpush1.msra.mxu0 0.0
      %3775 = vmatprep.subr.mxu0 0.0
      %3776 = vmatpush1.msra.mxu0 0.0
      %3777 = vmatprep.subr.mxu0 0.0
      %3778 = vmatpush1.msra.mxu0 0.0
      %3779 = vmatprep.subr.mxu0 0.0
      %3780 = vmatpush1.msra.mxu0 0.0
      %3781 = vmatprep.subr.mxu0 0.0
      %3782 = vmatpush1.msra.mxu0 0.0
      %3783 = vmatprep.subr.mxu0 0.0
      %3784 = vmatpush1.msra.mxu0 0.0
      %3785 = vmatprep.subr.mxu0 0.0
      %3786 = vmatpush1.msra.mxu0 0.0
      %3787 = vmatprep.subr.mxu0 0.0
      %3788 = vmatpush1.msra.mxu0 0.0
      %3789 = vmatprep.subr.mxu0 0.0
      %3790 = vmatpush1.msra.mxu0 0.0
      %3791 = vmatprep.subr.mxu0 0.0
      %3792 = vmatpush1.msra.mxu0 0.0
      %3793 = vmatprep.subr.mxu0 0.0
      %3794 = vmatpush1.msra.mxu0 0.0
      %3795 = vmatprep.subr.mxu0 0.0
      %3796 = vmatpush1.msra.mxu0 0.0
      %3797 = vmatprep.subr.mxu0 0.0
      %3798 = vmatpush1.msra.mxu0 0.0
      %3799 = vmatprep.subr.mxu0 0.0
      %3800 = vmatpush1.msra.mxu0 0.0
      %3801 = vmatprep.subr.mxu0 0.0
      %3802 = vmatpush1.msra.mxu0 0.0
      %3803 = vmatprep.subr.mxu0 0.0
      %3804 = vmatpush1.msra.mxu0 0.0
      %3805 = vmatprep.subr.mxu0 0.0
      %3806 = vmatpush1.msra.mxu0 0.0
      %3807 = vmatprep.subr.mxu0 0.0
      %3808 = vmatpush1.msra.mxu0 0.0
      %3809 = vmatprep.subr.mxu0 0.0
      %3810 = vmatpush1.msra.mxu0 0.0
      %3811 = vmatprep.subr.mxu0 0.0
      %3812 = vmatpush1.msra.mxu0 0.0
      %3813 = vmatprep.mubr.f32.mxu0 0.0
      %3814 = vmatmul.mubr.f32.gmra.mrb[0].mxu0 %v2687
      %v3815 = vpop.f32.mrb[0].mxu0
      %v3816 = vadd.f32 %v3747, %v3815
      %v3817 = vpop.f32.mrb[0].mxu0
      %3818 = vmatprep.mubr.f32.mxu0 0.0
      %3819 = vmatmul.mubr.f32.gmra.mrb[0].mxu0 %v2690
      %v3820 = vpop.f32.mrb[0].mxu0
      %v3821 = vadd.f32 %v3747, %v3820
      %v3822 = vpop.f32.mrb[0].mxu0
      %3823 = vdwg.mxu0
      %v3825 = vsel %vm874, %v3816, 0
      %v3828 = vsel %vm874, %v3821, 0
      %3830 = vmatprep.subr.mxu0 0.0
      %3831 = vmatpush1.xpose.msra.mxu0 %v2687
      %3832 = vmatprep.subr.mxu0 0.0
      %3833 = vmatpush1.xpose.msra.mxu0 %v2690
      %3834 = vmatprep.subr.mxu0 0.0
      %3835 = vmatpush1.xpose.msra.mxu0 0.0
      %3836 = vmatprep.subr.mxu0 0.0
      %3837 = vmatpush1.xpose.msra.mxu0 0.0
      %3838 = vmatprep.subr.mxu0 0.0
      %3839 = vmatpush1.xpose.msra.mxu0 0.0
      %3840 = vmatprep.subr.mxu0 0.0
      %3841 = vmatpush1.xpose.msra.mxu0 0.0
      %3842 = vmatprep.subr.mxu0 0.0
      %3843 = vmatpush1.xpose.msra.mxu0 0.0
      %3844 = vmatprep.subr.mxu0 0.0
      %3845 = vmatpush1.xpose.msra.mxu0 0.0
      %3846 = vmatprep.subr.mxu0 0.0
      %3847 = vmatpush1.xpose.msra.mxu0 0.0
      %3848 = vmatprep.subr.mxu0 0.0
      %3849 = vmatpush1.xpose.msra.mxu0 0.0
      %3850 = vmatprep.subr.mxu0 0.0
      %3851 = vmatpush1.xpose.msra.mxu0 0.0
      %3852 = vmatprep.subr.mxu0 0.0
      %3853 = vmatpush1.xpose.msra.mxu0 0.0
      %3854 = vmatprep.subr.mxu0 0.0
      %3855 = vmatpush1.xpose.msra.mxu0 0.0
      %3856 = vmatprep.subr.mxu0 0.0
      %3857 = vmatpush1.xpose.msra.mxu0 0.0
      %3858 = vmatprep.subr.mxu0 0.0
      %3859 = vmatpush1.xpose.msra.mxu0 0.0
      %3860 = vmatprep.subr.mxu0 0.0
      %3861 = vmatpush1.xpose.msra.mxu0 0.0
      %3862 = vmatprep.subr.mxu0 0.0
      %3863 = vmatpush1.xpose.msra.mxu0 0.0
      %3864 = vmatprep.subr.mxu0 0.0
      %3865 = vmatpush1.xpose.msra.mxu0 0.0
      %3866 = vmatprep.subr.mxu0 0.0
      %3867 = vmatpush1.xpose.msra.mxu0 0.0
      %3868 = vmatprep.subr.mxu0 0.0
      %3869 = vmatpush1.xpose.msra.mxu0 0.0
      %3870 = vmatprep.subr.mxu0 0.0
      %3871 = vmatpush1.xpose.msra.mxu0 0.0
      %3872 = vmatprep.subr.mxu0 0.0
      %3873 = vmatpush1.xpose.msra.mxu0 0.0
      %3874 = vmatprep.subr.mxu0 0.0
      %3875 = vmatpush1.xpose.msra.mxu0 0.0
      %3876 = vmatprep.subr.mxu0 0.0
      %3877 = vmatpush1.xpose.msra.mxu0 0.0
      %3878 = vmatprep.subr.mxu0 0.0
      %3879 = vmatpush1.xpose.msra.mxu0 0.0
      %3880 = vmatprep.subr.mxu0 0.0
      %3881 = vmatpush1.xpose.msra.mxu0 0.0
      %3882 = vmatprep.subr.mxu0 0.0
      %3883 = vmatpush1.xpose.msra.mxu0 0.0
      %3884 = vmatprep.subr.mxu0 0.0
      %3885 = vmatpush1.xpose.msra.mxu0 0.0
      %3886 = vmatprep.subr.mxu0 0.0
      %3887 = vmatpush1.xpose.msra.mxu0 0.0
      %3888 = vmatprep.subr.mxu0 0.0
      %3889 = vmatpush1.xpose.msra.mxu0 0.0
      %3890 = vmatprep.subr.mxu0 0.0
      %3891 = vmatpush1.xpose.msra.mxu0 0.0
      %3892 = vmatprep.subr.mxu0 0.0
      %3893 = vmatpush1.xpose.msra.mxu0 0.0
      %3894 = vmatprep.mubr.f32.mxu0 0.0
      %3895 = vmatmul.mubr.f32.gmra.mrb[0].mxu0 %v3825
      %v3896 = vpop.f32.mrb[0].mxu0
      %v3897 = vadd.f32 %v956, %v3896
      %v3898 = vpop.f32.mrb[0].mxu0
      %3899 = vmatprep.mubr.f32.mxu0 0.0
      %3900 = vmatmul.mubr.f32.gmra.mrb[0].mxu0 %v3828
      %v3901 = vpop.f32.mrb[0].mxu0
      %v3902 = vadd.f32 %v957, %v3901
      %v3903 = vpop.f32.mrb[0].mxu0
      %3904 = vdwg.mxu0
      %v3905 = vsel %vm1131, %v3897, -inf
      %3906 = vmax.xlane.f32.xlu0 %v3905
      %v3907 = vpop.xlane.xlu0 %3906
      %v3908 = vsel %vm1131, %v3902, -inf
      %3909 = vmax.xlane.f32.xlu0 %v3908
      %v3910 = vpop.xlane.xlu0 %3909
      %v3911 = vsub.f32 %v3897, %v3907
      %v3912 = vsub.f32 %v3902, %v3910
      %v3913 = vmul.f32 %v3911, 1.442695
      %v3914 = vpow.pop %v3913
      %v3915 = vmul.f32 %v3912, 1.442695
      %v3916 = vpow.pop %v3915
      %v3917 = vsel %vm1131, %v3914, 0.0
      %3918 = vadd.xlane.f32.xlu0 %v3917
      %v3919 = vpop.xlane.xlu0 %3918
      %v3920 = vsel %vm1131, %v3916, 0.0
      %3921 = vadd.xlane.f32.xlu0 %v3920
      %v3922 = vpop.xlane.xlu0 %3921
      %v3923 = vrcp.pop %v3919
      %v3924 = vmul.f32 %v3914, %v3923
      %v3925 = vrcp.pop %v3922
      %v3926 = vmul.f32 %v3916, %v3925
      %s3927 = scalar_lea.vmem %s18, 96
      %v3928 = vld [vmem:[%s3927] sm:$0xff]
      %v3929 = vld [vmem:[%s3927 + $0x8] sm:$0xff]
      %v3930 = vld [vmem:[%s3927 + $0x10] sm:$0xff]
      %v3931 = vld [vmem:[%s3927 + $0x18] sm:$0xff]
      %3932 = vmatprep.subr.mxu0 0.0
      %3933 = vmatpush1.msra.mxu0 %v3928
      %3934 = vmatprep.subr.mxu0 0.0
      %3935 = vmatpush1.msra.mxu0 %v3929
      %3936 = vmatprep.subr.mxu0 0.0
      %3937 = vmatpush1.msra.mxu0 %v3930
      %3938 = vmatprep.subr.mxu0 0.0
      %3939 = vmatpush1.msra.mxu0 %v3931
      %3940 = vmatprep.subr.mxu0 0.0
      %3941 = vmatpush1.msra.mxu0 0.0
      %3942 = vmatprep.subr.mxu0 0.0
      %3943 = vmatpush1.msra.mxu0 0.0
      %3944 = vmatprep.subr.mxu0 0.0
      %3945 = vmatpush1.msra.mxu0 0.0
      %3946 = vmatprep.subr.mxu0 0.0
      %3947 = vmatpush1.msra.mxu0 0.0
      %3948 = vmatprep.subr.mxu0 0.0
      %3949 = vmatpush1.msra.mxu0 0.0
      %3950 = vmatprep.subr.mxu0 0.0
      %3951 = vmatpush1.msra.mxu0 0.0
      %3952 = vmatprep.subr.mxu0 0.0
      %3953 = vmatpush1.msra.mxu0 0.0
      %3954 = vmatprep.subr.mxu0 0.0
      %3955 = vmatpush1.msra.mxu0 0.0
      %3956 = vmatprep.subr.mxu0 0.0
      %3957 = vmatpush1.msra.mxu0 0.0
      %3958 = vmatprep.subr.mxu0 0.0
      %3959 = vmatpush1.msra.mxu0 0.0
      %3960 = vmatprep.subr.mxu0 0.0
      %3961 = vmatpush1.msra.mxu0 0.0
      %3962 = vmatprep.subr.mxu0 0.0
      %3963 = vmatpush1.msra.mxu0 0.0
      %3964 = vmatprep.subr.mxu0 0.0
      %3965 = vmatpush1.msra.mxu0 0.0
      %3966 = vmatprep.subr.mxu0 0.0
      %3967 = vmatpush1.msra.mxu0 0.0
      %3968 = vmatprep.subr.mxu0 0.0
      %3969 = vmatpush1.msra.mxu0 0.0
      %3970 = vmatprep.subr.mxu0 0.0
      %3971 = vmatpush1.msra.mxu0 0.0
      %3972 = vmatprep.subr.mxu0 0.0
      %3973 = vmatpush1.msra.mxu0 0.0
      %3974 = vmatprep.subr.mxu0 0.0
      %3975 = vmatpush1.msra.mxu0 0.0
      %3976 = vmatprep.subr.mxu0 0.0
      %3977 = vmatpush1.msra.mxu0 0.0
      %3978 = vmatprep.subr.mxu0 0.0
      %3979 = vmatpush1.msra.mxu0 0.0
      %3980 = vmatprep.subr.mxu0 0.0
      %3981 = vmatpush1.msra.mxu0 0.0
      %3982 = vmatprep.subr.mxu0 0.0
      %3983 = vmatpush1.msra.mxu0 0.0
      %3984 = vmatprep.subr.mxu0 0.0
      %3985 = vmatpush1.msra.mxu0 0.0
      %3986 = vmatprep.subr.mxu0 0.0
      %3987 = vmatpush1.msra.mxu0 0.0
      %3988 = vmatprep.subr.mxu0 0.0
      %3989 = vmatpush1.msra.mxu0 0.0
      %3990 = vmatprep.subr.mxu0 0.0
      %3991 = vmatpush1.msra.mxu0 0.0
      %3992 = vmatprep.subr.mxu0 0.0
      %3993 = vmatpush1.msra.mxu0 0.0
      %3994 = vmatprep.subr.mxu0 0.0
      %3995 = vmatpush1.msra.mxu0 0.0
      %3996 = vmatprep.mubr.f32.mxu0 0.0
      %3997 = vmatmul.mubr.f32.gmra.mrb[0].mxu0 %v2687
      %v3998 = vpop.f32.mrb[0].mxu0
      %v3999 = vadd.f32 0.0, %v3998
      %v4000 = vpop.f32.mrb[0].mxu0
      %4001 = vmatprep.mubr.f32.mxu0 0.0
      %4002 = vmatmul.mubr.f32.gmra.mrb[0].mxu0 %v2690
      %v4003 = vpop.f32.mrb[0].mxu0
      %v4004 = vadd.f32 0.0, %v4003
      %v4005 = vpop.f32.mrb[0].mxu0
      %4006 = vdwg.mxu0
      %v4008 = vsel %vm1131, %v3924, 0
      %v4011 = vsel %vm1131, %v3926, 0
      %4013 = vmatprep.subr.mxu0 0.0
      %4014 = vmatpush1.msra.mxu0 %v3999
      %4015 = vmatprep.subr.mxu0 0.0
      %4016 = vmatpush1.msra.mxu0 %v4004
      %4017 = vmatprep.subr.mxu0 0.0
      %4018 = vmatpush1.msra.mxu0 0.0
      %4019 = vmatprep.subr.mxu0 0.0
      %4020 = vmatpush1.msra.mxu0 0.0
      %4021 = vmatprep.subr.mxu0 0.0
      %4022 = vmatpush1.msra.mxu0 0.0
      %4023 = vmatprep.subr.mxu0 0.0
      %4024 = vmatpush1.msra.mxu0 0.0
      %4025 = vmatprep.subr.mxu0 0.0
      %4026 = vmatpush1.msra.mxu0 0.0
      %4027 = vmatprep.subr.mxu0 0.0
      %4028 = vmatpush1.msra.mxu0 0.0
      %4029 = vmatprep.subr.mxu0 0.0
      %4030 = vmatpush1.msra.mxu0 0.0
      %4031 = vmatprep.subr.mxu0 0.0
      %4032 = vmatpush1.msra.mxu0 0.0
      %4033 = vmatprep.subr.mxu0 0.0
      %4034 = vmatpush1.msra.mxu0 0.0
      %4035 = vmatprep.subr.mxu0 0.0
      %4036 = vmatpush1.msra.mxu0 0.0
      %4037 = vmatprep.subr.mxu0 0.0
      %4038 = vmatpush1.msra.mxu0 0.0
      %4039 = vmatprep.subr.mxu0 0.0
      %4040 = vmatpush1.msra.mxu0 0.0
      %4041 = vmatprep.subr.mxu0 0.0
      %4042 = vmatpush1.msra.mxu0 0.0
      %4043 = vmatprep.subr.mxu0 0.0
      %4044 = vmatpush1.msra.mxu0 0.0
      %4045 = vmatprep.subr.mxu0 0.0
      %4046 = vmatpush1.msra.mxu0 0.0
      %4047 = vmatprep.subr.mxu0 0.0
      %4048 = vmatpush1.msra.mxu0 0.0
      %4049 = vmatprep.subr.mxu0 0.0
      %4050 = vmatpush1.msra.mxu0 0.0
      %4051 = vmatprep.subr.mxu0 0.0
      %4052 = vmatpush1.msra.mxu0 0.0
      %4053 = vmatprep.subr.mxu0 0.0
      %4054 = vmatpush1.msra.mxu0 0.0
      %4055 = vmatprep.subr.mxu0 0.0
      %4056 = vmatpush1.msra.mxu0 0.0
      %4057 = vmatprep.subr.mxu0 0.0
      %4058 = vmatpush1.msra.mxu0 0.0
      %4059 = vmatprep.subr.mxu0 0.0
      %4060 = vmatpush1.msra.mxu0 0.0
      %4061 = vmatprep.subr.mxu0 0.0
      %4062 = vmatpush1.msra.mxu0 0.0
      %4063 = vmatprep.subr.mxu0 0.0
      %4064 = vmatpush1.msra.mxu0 0.0
      %4065 = vmatprep.subr.mxu0 0.0
      %4066 = vmatpush1.msra.mxu0 0.0
      %4067 = vmatprep.subr.mxu0 0.0
      %4068 = vmatpush1.msra.mxu0 0.0
      %4069 = vmatprep.subr.mxu0 0.0
      %4070 = vmatpush1.msra.mxu0 0.0
      %4071 = vmatprep.subr.mxu0 0.0
      %4072 = vmatpush1.msra.mxu0 0.0
      %4073 = vmatprep.subr.mxu0 0.0
      %4074 = vmatpush1.msra.mxu0 0.0
      %4075 = vmatprep.subr.mxu0 0.0
      %4076 = vmatpush1.msra.mxu0 0.0
      %4077 = vmatprep.mubr.f32.mxu0 0.0
      %4078 = vmatmul.mubr.f32.gmra.mrb[0].mxu0 %v4008
      %v4079 = vpop.f32.mrb[0].mxu0
      %v4080 = vadd.f32 0.0, %v4079
      %v4081 = vpop.f32.mrb[0].mxu0
      %4082 = vmatprep.mubr.f32.mxu0 0.0
      %4083 = vmatmul.mubr.f32.gmra.mrb[0].mxu0 %v4011
      %v4084 = vpop.f32.mrb[0].mxu0
      %v4085 = vadd.f32 0.0, %v4084
      %v4086 = vpop.f32.mrb[0].mxu0
      %4087 = vdwg.mxu0
      %v4088 = vadd.f32 %v3734, %v4080
      %v4089 = vadd.f32 %v3735, %v4085
      %v4090 = vld [vmem:[%s19] sm:$0x1]
      %v4092 = vlaneseq
      %v4093 = vshrl.u32 %v4092, 7
      %v4094 = vsub.s32 0, %v4093
      %v4095 = vrot.slane %v4090, %v4094
      %v4097 = vadd.f32 %v4088, %v4095
      %v4098 = vadd.f32 %v4089, %v4095
      %v4099 = vadd.f32 %v2673, %v4097
      %v4100 = vadd.f32 %v2674, %v4098
      %v4101 = vld [vmem:[%s20] sm:$0x1]
      %v4102 = vld [vmem:[%s21] sm:$0x1]
      %v4103 = vsel %vm874, %v4099, 0.0
      %4104 = vadd.xlane.f32.xlu0 %v4103
      %v4105 = vpop.xlane.xlu0 %4104
      %v4106 = vsel %vm874, %v4100, 0.0
      %4107 = vadd.xlane.f32.xlu0 %v4106
      %v4108 = vpop.xlane.xlu0 %4107
      %v4109 = vmul.f32 %v4105, %v2393
      %v4110 = vmul.f32 %v4108, %v2393
      %v4111 = vmul.f32 %v4099, %v4099
      %v4112 = vmul.f32 %v4100, %v4100
      %v4113 = vsel %vm874, %v4111, 0.0
      %4114 = vadd.xlane.f32.xlu0 %v4113
      %v4115 = vpop.xlane.xlu0 %4114
      %v4116 = vsel %vm874, %v4112, 0.0
      %4117 = vadd.xlane.f32.xlu0 %v4116
      %v4118 = vpop.xlane.xlu0 %4117
      %v4119 = vmul.f32 %v4115, %v2393
      %v4120 = vmul.f32 %v4118, %v2393
      %v4121 = vmul.f32 %v4109, %v4109
      %v4122 = vmul.f32 %v4110, %v4110
      %v4123 = vsub.f32 %v4119, %v4121
      %v4124 = vsub.f32 %v4120, %v4122
      %v4125 = vsub.f32 %v4099, %v4109
      %v4126 = vsub.f32 %v4100, %v4110
      %v4127 = vadd.f32 %v4123, 1e-05
      %v4128 = vadd.f32 %v4124, 1e-05
      %v4129 = vrsqrt.pop %v4127
      %v4130 = vrsqrt.pop %v4128
      %v4131 = vmul.f32 %v4125, %v4129
      %v4132 = vmul.f32 %v4126, %v4130
      %v4134 = vlaneseq
      %v4135 = vshrl.u32 %v4134, 7
      %v4136 = vsub.s32 0, %v4135
      %v4137 = vrot.slane %v4101, %v4136
      %v4139 = vmul.f32 %v4131, %v4137
      %v4140 = vmul.f32 %v4132, %v4137
      %v4142 = vlaneseq
      %v4143 = vshrl.u32 %v4142, 7
      %v4144 = vsub.s32 0, %v4143
      %v4145 = vrot.slane %v4102, %v4144
      %v4147 = vadd.f32 %v4139, %v4145
      %v4148 = vadd.f32 %v4140, %v4145
      %v4149 = vld [vmem:[%s22] sm:$0xff]
      %v4150 = vld [vmem:[%s22 + $0x8] sm:$0xff]
      %v4151 = vld [vmem:[%s22 + $0x10] sm:$0xff]
      %v4152 = vld [vmem:[%s22 + $0x18] sm:$0xff]
      %v4153 = vld [vmem:[%s23] sm:$0x1]
      %v4155 = vlaneseq
      %v4156 = vshrl.u32 %v4155, 7
      %v4157 = vsub.s32 0, %v4156
      %v4158 = vrot.slane %v4153, %v4157
      %v4161 = vsel %vm874, %v4147, 0
      %v4164 = vsel %vm874, %v4148, 0
      %4166 = vmatprep.subr.mxu0 0.0
      %4167 = vmatpush1.msra.mxu0 %v4149
      %4168 = vmatprep.subr.mxu0 0.0
      %4169 = vmatpush1.msra.mxu0 %v4150
      %4170 = vmatprep.subr.mxu0 0.0
      %4171 = vmatpush1.msra.mxu0 %v4151
      %4172 = vmatprep.subr.mxu0 0.0
      %4173 = vmatpush1.msra.mxu0 %v4152
      %4174 = vmatprep.subr.mxu0 0.0
      %4175 = vmatpush1.msra.mxu0 0.0
      %4176 = vmatprep.subr.mxu0 0.0
      %4177 = vmatpush1.msra.mxu0 0.0
      %4178 = vmatprep.subr.mxu0 0.0
      %4179 = vmatpush1.msra.mxu0 0.0
      %4180 = vmatprep.subr.mxu0 0.0
      %4181 = vmatpush1.msra.mxu0 0.0
      %4182 = vmatprep.subr.mxu0 0.0
      %4183 = vmatpush1.msra.mxu0 0.0
      %4184 = vmatprep.subr.mxu0 0.0
      %4185 = vmatpush1.msra.mxu0 0.0
      %4186 = vmatprep.subr.mxu0 0.0
      %4187 = vmatpush1.msra.mxu0 0.0
      %4188 = vmatprep.subr.mxu0 0.0
      %4189 = vmatpush1.msra.mxu0 0.0
      %4190 = vmatprep.subr.mxu0 0.0
      %4191 = vmatpush1.msra.mxu0 0.0
      %4192 = vmatprep.subr.mxu0 0.0
      %4193 = vmatpush1.msra.mxu0 0.0
      %4194 = vmatprep.subr.mxu0 0.0
      %4195 = vmatpush1.msra.mxu0 0.0
      %4196 = vmatprep.subr.mxu0 0.0
      %4197 = vmatpush1.msra.mxu0 0.0
      %4198 = vmatprep.subr.mxu0 0.0
      %4199 = vmatpush1.msra.mxu0 0.0
      %4200 = vmatprep.subr.mxu0 0.0
      %4201 = vmatpush1.msra.mxu0 0.0
      %4202 = vmatprep.subr.mxu0 0.0
      %4203 = vmatpush1.msra.mxu0 0.0
      %4204 = vmatprep.subr.mxu0 0.0
      %4205 = vmatpush1.msra.mxu0 0.0
      %4206 = vmatprep.subr.mxu0 0.0
      %4207 = vmatpush1.msra.mxu0 0.0
      %4208 = vmatprep.subr.mxu0 0.0
      %4209 = vmatpush1.msra.mxu0 0.0
      %4210 = vmatprep.subr.mxu0 0.0
      %4211 = vmatpush1.msra.mxu0 0.0
      %4212 = vmatprep.subr.mxu0 0.0
      %4213 = vmatpush1.msra.mxu0 0.0
      %4214 = vmatprep.subr.mxu0 0.0
      %4215 = vmatpush1.msra.mxu0 0.0
      %4216 = vmatprep.subr.mxu0 0.0
      %4217 = vmatpush1.msra.mxu0 0.0
      %4218 = vmatprep.subr.mxu0 0.0
      %4219 = vmatpush1.msra.mxu0 0.0
      %4220 = vmatprep.subr.mxu0 0.0
      %4221 = vmatpush1.msra.mxu0 0.0
      %4222 = vmatprep.subr.mxu0 0.0
      %4223 = vmatpush1.msra.mxu0 0.0
      %4224 = vmatprep.subr.mxu0 0.0
      %4225 = vmatpush1.msra.mxu0 0.0
      %4226 = vmatprep.subr.mxu0 0.0
      %4227 = vmatpush1.msra.mxu0 0.0
      %4228 = vmatprep.subr.mxu0 0.0
      %4229 = vmatpush1.msra.mxu0 0.0
      %4230 = vmatprep.mubr.f32.mxu0 0.0
      %4231 = vmatmul.mubr.f32.gmra.mrb[0].mxu0 %v4161
      %v4232 = vpop.f32.mrb[0].mxu0
      %v4233 = vadd.f32 %v4158, %v4232
      %v4234 = vpop.f32.mrb[0].mxu0
      %4235 = vmatprep.mubr.f32.mxu0 0.0
      %4236 = vmatmul.mubr.f32.gmra.mrb[0].mxu0 %v4164
      %v4237 = vpop.f32.mrb[0].mxu0
      %v4238 = vadd.f32 %v4158, %v4237
      %v4239 = vpop.f32.mrb[0].mxu0
      %4240 = vdwg.mxu0
      %v4241 = vmax.f32 %v4233, 0.0
      %v4242 = vmax.f32 %v4238, 0.0
      %v4243 = vld [vmem:[%s24] sm:$0xff]
      %v4244 = vld [vmem:[%s24 + $0x8] sm:$0xff]
      %v4245 = vld [vmem:[%s24 + $0x10] sm:$0xff]
      %v4246 = vld [vmem:[%s24 + $0x18] sm:$0xff]
      %v4247 = vld [vmem:[%s24 + $0x20] sm:$0xff]
      %v4248 = vld [vmem:[%s24 + $0x28] sm:$0xff]
      %v4249 = vld [vmem:[%s24 + $0x30] sm:$0xff]
      %v4250 = vld [vmem:[%s24 + $0x38] sm:$0xff]
      %v4251 = vld [vmem:[%s25] sm:$0x1]
      %v4253 = vlaneseq
      %v4254 = vshrl.u32 %v4253, 7
      %v4255 = vsub.s32 0, %v4254
      %v4256 = vrot.slane %v4251, %v4255
      %v4259 = vsel %vm2543, %v4241, 0
      %v4262 = vsel %vm2543, %v4242, 0
      %4264 = vmatprep.subr.mxu0 0.0
      %4265 = vmatpush1.msra.mxu0 %v4243
      %4266 = vmatprep.subr.mxu0 0.0
      %4267 = vmatpush1.msra.mxu0 %v4244
      %4268 = vmatprep.subr.mxu0 0.0
      %4269 = vmatpush1.msra.mxu0 %v4245
      %4270 = vmatprep.subr.mxu0 0.0
      %4271 = vmatpush1.msra.mxu0 %v4246
      %4272 = vmatprep.subr.mxu0 0.0
      %4273 = vmatpush1.msra.mxu0 %v4247
      %4274 = vmatprep.subr.mxu0 0.0
      %4275 = vmatpush1.msra.mxu0 %v4248
      %4276 = vmatprep.subr.mxu0 0.0
      %4277 = vmatpush1.msra.mxu0 %v4249
      %4278 = vmatprep.subr.mxu0 0.0
      %4279 = vmatpush1.msra.mxu0 %v4250
      %4280 = vmatprep.subr.mxu0 0.0
      %4281 = vmatpush1.msra.mxu0 0.0
      %4282 = vmatprep.subr.mxu0 0.0
      %4283 = vmatpush1.msra.mxu0 0.0
      %4284 = vmatprep.subr.mxu0 0.0
      %4285 = vmatpush1.msra.mxu0 0.0
      %4286 = vmatprep.subr.mxu0 0.0
      %4287 = vmatpush1.msra.mxu0 0.0
      %4288 = vmatprep.subr.mxu0 0.0
      %4289 = vmatpush1.msra.mxu0 0.0
      %4290 = vmatprep.subr.mxu0 0.0
      %4291 = vmatpush1.msra.mxu0 0.0
      %4292 = vmatprep.subr.mxu0 0.0
      %4293 = vmatpush1.msra.mxu0 0.0
      %4294 = vmatprep.subr.mxu0 0.0
      %4295 = vmatpush1.msra.mxu0 0.0
      %4296 = vmatprep.subr.mxu0 0.0
      %4297 = vmatpush1.msra.mxu0 0.0
      %4298 = vmatprep.subr.mxu0 0.0
      %4299 = vmatpush1.msra.mxu0 0.0
      %4300 = vmatprep.subr.mxu0 0.0
      %4301 = vmatpush1.msra.mxu0 0.0
      %4302 = vmatprep.subr.mxu0 0.0
      %4303 = vmatpush1.msra.mxu0 0.0
      %4304 = vmatprep.subr.mxu0 0.0
      %4305 = vmatpush1.msra.mxu0 0.0
      %4306 = vmatprep.subr.mxu0 0.0
      %4307 = vmatpush1.msra.mxu0 0.0
      %4308 = vmatprep.subr.mxu0 0.0
      %4309 = vmatpush1.msra.mxu0 0.0
      %4310 = vmatprep.subr.mxu0 0.0
      %4311 = vmatpush1.msra.mxu0 0.0
      %4312 = vmatprep.subr.mxu0 0.0
      %4313 = vmatpush1.msra.mxu0 0.0
      %4314 = vmatprep.subr.mxu0 0.0
      %4315 = vmatpush1.msra.mxu0 0.0
      %4316 = vmatprep.subr.mxu0 0.0
      %4317 = vmatpush1.msra.mxu0 0.0
      %4318 = vmatprep.subr.mxu0 0.0
      %4319 = vmatpush1.msra.mxu0 0.0
      %4320 = vmatprep.subr.mxu0 0.0
      %4321 = vmatpush1.msra.mxu0 0.0
      %4322 = vmatprep.subr.mxu0 0.0
      %4323 = vmatpush1.msra.mxu0 0.0
      %4324 = vmatprep.subr.mxu0 0.0
      %4325 = vmatpush1.msra.mxu0 0.0
      %4326 = vmatprep.subr.mxu0 0.0
      %4327 = vmatpush1.msra.mxu0 0.0
      %4328 = vmatprep.mubr.f32.mxu0 0.0
      %4329 = vmatmul.mubr.f32.gmra.mrb[0].mxu0 %v4259
      %v4330 = vpop.f32.mrb[0].mxu0
      %v4331 = vadd.f32 %v4256, %v4330
      %v4332 = vpop.f32.mrb[0].mxu0
      %4333 = vmatprep.mubr.f32.mxu0 0.0
      %4334 = vmatmul.mubr.f32.gmra.mrb[0].mxu0 %v4262
      %v4335 = vpop.f32.mrb[0].mxu0
      %v4336 = vadd.f32 %v4256, %v4335
      %v4337 = vpop.f32.mrb[0].mxu0
      %4338 = vdwg.mxu0
      %v4339 = vadd.f32 %v4147, %v4331
      %v4340 = vadd.f32 %v4148, %v4336
      %v4341 = vld [vmem:[%s26] sm:$0x1]
      %v4342 = vld [vmem:[%s27] sm:$0x1]
      %v4343 = vsel %vm874, %v4339, 0.0
      %4344 = vadd.xlane.f32.xlu0 %v4343
      %v4345 = vpop.xlane.xlu0 %4344
      %v4346 = vsel %vm874, %v4340, 0.0
      %4347 = vadd.xlane.f32.xlu0 %v4346
      %v4348 = vpop.xlane.xlu0 %4347
      %v4349 = vmul.f32 %v4345, %v2393
      %v4350 = vmul.f32 %v4348, %v2393
      %v4351 = vmul.f32 %v4339, %v4339
      %v4352 = vmul.f32 %v4340, %v4340
      %v4353 = vsel %vm874, %v4351, 0.0
      %4354 = vadd.xlane.f32.xlu0 %v4353
      %v4355 = vpop.xlane.xlu0 %4354
      %v4356 = vsel %vm874, %v4352, 0.0
      %4357 = vadd.xlane.f32.xlu0 %v4356
      %v4358 = vpop.xlane.xlu0 %4357
      %v4359 = vmul.f32 %v4355, %v2393
      %v4360 = vmul.f32 %v4358, %v2393
      %v4361 = vmul.f32 %v4349, %v4349
      %v4362 = vmul.f32 %v4350, %v4350
      %v4363 = vsub.f32 %v4359, %v4361
      %v4364 = vsub.f32 %v4360, %v4362
      %v4365 = vsub.f32 %v4339, %v4349
      %v4366 = vsub.f32 %v4340, %v4350
      %v4367 = vadd.f32 %v4363, 1e-05
      %v4368 = vadd.f32 %v4364, 1e-05
      %v4369 = vrsqrt.pop %v4367
      %v4370 = vrsqrt.pop %v4368
      %v4371 = vmul.f32 %v4365, %v4369
      %v4372 = vmul.f32 %v4366, %v4370
      %v4374 = vlaneseq
      %v4375 = vshrl.u32 %v4374, 7
      %v4376 = vsub.s32 0, %v4375
      %v4377 = vrot.slane %v4341, %v4376
      %v4379 = vmul.f32 %v4371, %v4377
      %v4380 = vmul.f32 %v4372, %v4377
      %v4382 = vlaneseq
      %v4383 = vshrl.u32 %v4382, 7
      %v4384 = vsub.s32 0, %v4383
      %v4385 = vrot.slane %v4342, %v4384
      %v4387 = vadd.f32 %v4379, %v4385
      %v4388 = vadd.f32 %v4380, %v4385
      %4389 = vst.msk [vmem:[%s865] sm:$0xff] %vm874, %v4387
      %4390 = vst.msk [vmem:[%s865 + $0x8] sm:$0xff] %vm874, %v4388
      %p4391 = scmp.lt.s32.totalorder %s39, 1
      %s4392 = scalar_select %p4391, %s39, 1
      %s4393 = smul.addr %s4392, 2
      %s4394 = smul.addr %s4393, 8
      %s4395 = scalar_lea.vmem %s28, %s4394
      // Predicated region
      $region133: #{forward.1} parent=131 // pred_check
        %p4396 = pneg %p655
      $region134: #{forward.1} parent=131 // pred_check_branch
        %4398 = sbr.rel (%p4396) target = $region136
      $region135: #{forward.1} parent=131 // pred_region
        _
      $region136: #{forward.1} parent=131 // pred_fallthru
        _
    $region132: #{forward.1} parent=5 // pred_fallthru
      _
    %p4399 = scmp.le.s32.totalorder 2, %s34
    // Predicated region
    $region137: #{forward.1} parent=5 // pred_check
      %p4400 = pneg %p4399
    $region138: #{forward.1} parent=5 // pred_check_branch
      %4402 = sbr.rel (%p4400) target = $region140
    $region139: #{forward.1} parent=5 // pred_region
      %s4403 = ssub.s32 %s34, 2
      // Predicated region
      $region141: #{forward.1} parent=139 // pred_check
        %p4404 = pneg %p661
      $region142: #{forward.1} parent=139 // pred_check_branch
        %4406 = sbr.rel (%p4404) target = $region144
      $region143: #{forward.1} parent=139 // pred_region
        %p4407 = scmp.lt.s32.totalorder %s40, 1
        %s4408 = scalar_select %p4407, %s40, 1
        %s4409 = smul.addr %s4408, 2
        %s4410 = smul.addr %s4409, 8
        %s4411 = scalar_lea.vmem %s28, %s4410
      $region144: #{forward.1} parent=139 // pred_fallthru
        _
    $region140: #{forward.1} parent=5 // pred_fallthru
      _
  $region6: #{forward.1} parent=0 // loop_footer
    %s38 = sadd.s32 1, %s34
  $region7: #{forward.1} parent=0 // loop_footer_branch
    %33 = sbr.rel target = $region3
  $region8: #{forward.1} parent=0 // loop_exit
    _

</llo_original>
